<compile_context>
chip_gen: v7x
topology: tpu7x:2x2x1
jax: 0.10.0
libtpu: 0.0.40
codegen_flags: <defaults>
</compile_context>

<pallas_src>
import math

import numpy as np
import jax
import jax.numpy as jnp
from jax import lax
from jax.experimental import pallas as pl
from jax.experimental.pallas import tpu as pltpu

OUT_CHANNEL = 32
BN_EPS = 1e-5
LANE = 128


def _round_up(x, m):
    return (x + m - 1) // m * m


# ------------------------------ fused kernel ------------------------------- #

def make_fused_kernel(b_tile, H, W, cin, c1, c2, c3, classes_p):
    H2, W2 = H // 2, W // 2
    H3, W3 = H2 // 2, W2 // 2
    f32, bf16 = jnp.float32, jnp.bfloat16

    def kernel(p_ref, w1_ref, b1_ref, w2_ref, b2_ref, w3_ref, b3_ref,
               fcw_ref, fcb_ref, o_ref, a1_s, pad2_s, a2_s, pad3_s):
        # ---------- layer 1: conv(3x3, SAME) as one dense K=9*cin matmul + bias + ReLU ----------
        m1 = p_ref[...].reshape(b_tile * H * W, 9 * cin)                   # bf16
        z1 = jnp.dot(m1, w1_ref[...], preferred_element_type=f32)          # (B*H*W, c1)
        a1_s[...] = jnp.maximum(z1 + b1_ref[...], 0.0).reshape(b_tile, H, W, c1)

        # 2x2/stride-2 max pool: stride-2 sublane reads (columns) + major-dim pair max (rows).
        colmax = jnp.maximum(a1_s[:, :, pl.ds(0, W2, 2), :],
                             a1_s[:, :, pl.ds(1, W2, 2), :])               # (B, H, W2, c1)
        rowpair = colmax.reshape(b_tile, H2, 2, W2, c1)
        pooled1 = jnp.maximum(rowpair[:, :, 0], rowpair[:, :, 1])          # (B, H2, W2, c1)

        # zero-padded conv-2 input; single bf16 cast for the whole layer (hoisted).
        pad2_s[...] = jnp.zeros(pad2_s.shape, pad2_s.dtype)
        pad2_s[:, 1:H2 + 1, 1:W2 + 1, :] = pooled1.astype(bf16)

        # ---------- layer 2: 9 static shifted reads -> one K=9*c1 im2col matmul ----------
        cols2 = [pad2_s[:, dy:dy + H2, dx:dx + W2, :]
                 for dy in range(3) for dx in range(3)]
        m2 = jnp.concatenate(cols2, axis=-1).reshape(b_tile * H2 * W2, 9 * c1)
        z2 = jnp.dot(m2, w2_ref[...], preferred_element_type=f32)          # (B*H2*W2, c2)
        a2_s[...] = jnp.maximum(z2 + b2_ref[...], 0.0).reshape(b_tile, H2, W2, c2)

        colmax2 = jnp.maximum(a2_s[:, :, pl.ds(0, W3, 2), :],
                              a2_s[:, :, pl.ds(1, W3, 2), :])              # (B, H2, W3, c2)
        rowpair2 = colmax2.reshape(b_tile, H3, 2, W3, c2)
        pooled2 = jnp.maximum(rowpair2[:, :, 0], rowpair2[:, :, 1])        # (B, H3, W3, c2)

        pad3_s[...] = jnp.zeros(pad3_s.shape, pad3_s.dtype)
        pad3_s[:, 1:H3 + 1, 1:W3 + 1, :] = pooled2.astype(bf16)

        # ---------- layer 3: conv + bias + ReLU + global spatial max + FC head ----------
        cols3 = [pad3_s[:, dy:dy + H3, dx:dx + W3, :]
                 for dy in range(3) for dx in range(3)]
        m3 = jnp.concatenate(cols3, axis=-1).reshape(b_tile * H3 * W3, 9 * c2)
        z3 = jnp.dot(m3, w3_ref[...], preferred_element_type=f32)          # (B*H3*W3, c3)
        a3 = jnp.maximum(z3 + b3_ref[...], 0.0)
        gmax = jnp.max(a3.reshape(b_tile, H3 * W3, c3), axis=1)            # (B, c3)

        out = jnp.dot(gmax.astype(bf16), fcw_ref[...],
                      preferred_element_type=f32) + fcb_ref[...]           # (B, classes_p)
        o_ref[0] = out

    return kernel


# ------------------------------- wrapper (JAX) ------------------------------ #

def cnn_forward_pallas(x_nchw, params, b_tile=None):
    N, cin, H, W = x_nchw.shape
    assert H % 4 == 0 and W % 4 == 0
    c1, c2, c3 = OUT_CHANNEL, 2 * OUT_CHANNEL, 4 * OUT_CHANNEL
    H2, W2, H3, W3 = H // 2, W // 2, H // 4, W // 4
    classes = params["fc_w"].shape[1]
    classes_p = _round_up(classes, LANE)            # lane-dense FC weight / output store
    f32, bf16 = jnp.float32, jnp.bfloat16

    # Batch blocking: B_TILE images per grid step, >= 2 grid steps when N >= 2 (megacore).
    if b_tile is None:
        b_tile = max(1, -(-N // 2))
    grid_n = -(-N // b_tile)
    NB = grid_n * b_tile

    # Layer-1 im2col prep on the raw input (tiny: (NB, H*W, 9*cin) bf16), so conv1 is one
    # dense K=9*cin matmul inside the kernel.
    x = jnp.transpose(x_nchw, (0, 2, 3, 1))                     # NCHW -> NHWC
    if NB != N:
        x = jnp.pad(x, ((0, NB - N), (0, 0), (0, 0), (0, 0)))
    xp = jnp.pad(x, ((0, 0), (1, 1), (1, 1), (0, 0)))
    cols = [xp[:, dy:dy + H, dx:dx + W, :] for dy in range(3) for dx in range(3)]
    patches = jnp.concatenate(cols, axis=-1).reshape(NB, H * W, 9 * cin).astype(bf16)

    def fold(layer):
        # Fold BatchNorm (eval) scale into the conv weights (f32 multiply, then bf16 cast)
        # and conv-bias + BN shift into one f32 bias row.
        w, cb, g, be, mu, var = layer
        s = g / jnp.sqrt(var + BN_EPS)
        wf = (w * s).astype(bf16)
        b = (s * (cb - mu) + be).reshape(1, -1).astype(f32)
        kh, kw, ci, co = w.shape
        return wf.reshape(kh * kw * ci, co), b

    w1f, b1 = fold(params["c1"])
    w2f, b2 = fold(params["c2"])
    w3f, b3 = fold(params["c3"])
    fcw = jnp.pad(params["fc_w"], ((0, 0), (0, classes_p - classes))).astype(bf16)
    fcb = jnp.pad(params["fc_b"], (0, classes_p - classes)).reshape(1, -1).astype(f32)

    inputs = (patches, w1f, b1, w2f, b2, w3f, b3, fcw, fcb)

    def bcast_spec(a):                  # grid-invariant operand (constant block index)
        nd = a.ndim
        return pl.BlockSpec(a.shape, lambda n, _nd=nd: (0,) * _nd)

    in_specs = [pl.BlockSpec((b_tile, H * W, 9 * cin), lambda n: (n, 0, 0))]
    in_specs += [bcast_spec(a) for a in inputs[1:]]
    out_specs = pl.BlockSpec((1, b_tile, classes_p), lambda n: (n, 0, 0))

    scratch_shapes = [
        pltpu.VMEM((b_tile, H, W, c1), f32),             # layer-1 activations (pool source)
        pltpu.VMEM((b_tile, H2 + 2, W2 + 2, c1), bf16),  # zero-padded conv-2 input
        pltpu.VMEM((b_tile, H2, W2, c2), f32),           # layer-2 activations (pool source)
        pltpu.VMEM((b_tile, H3 + 2, W3 + 2, c2), bf16),  # zero-padded conv-3 input
    ]

    flops = 2 * NB * (H * W * 9 * cin * c1 + H2 * W2 * 9 * c1 * c2
                      + H3 * W3 * 9 * c2 * c3 + c3 * classes_p)
    bytes_accessed = sum(int(np.prod(a.shape)) * a.dtype.itemsize for a in inputs) \
        + NB * classes_p * 4

    kernel = make_fused_kernel(b_tile, H, W, cin, c1, c2, c3, classes_p)
    out = pl.pallas_call(
        kernel,
        out_shape=jax.ShapeDtypeStruct((grid_n, b_tile, classes_p), f32),
        grid=(grid_n,),
        in_specs=in_specs,
        out_specs=out_specs,
        scratch_shapes=scratch_shapes,
        compiler_params=pltpu.CompilerParams(
            dimension_semantics=("parallel",),
            vmem_limit_bytes=32 * 1024 * 1024),   # usage is ~1-2 MiB; explicit, portable budget
        cost_estimate=pl.CostEstimate(flops=flops, transcendentals=0,
                                      bytes_accessed=bytes_accessed),
    )(*inputs)
    return out.reshape(NB, classes_p)[:N, :classes]


# --------------------------- pure-JAX reference ----------------------------- #

def cnn_forward_ref(x_nchw, params):
    y = jnp.transpose(x_nchw, (0, 2, 3, 1))
    for name, pool in (("c1", True), ("c2", True), ("c3", False)):
        w, cb, g, be, mu, var = params[name]
        y = lax.conv_general_dilated(
            y, w, (1, 1), "SAME",
            dimension_numbers=("NHWC", "HWIO", "NHWC")) + cb
        y = g * (y - mu) / jnp.sqrt(var + BN_EPS) + be
        y = jnp.maximum(y, 0.0)
        if pool:
            N, H, W, C = y.shape
            y = y.reshape(N, H // 2, 2, W // 2, 2, C).max(axis=(2, 4))
        else:
            y = y.max(axis=(1, 2))
    return y @ params["fc_w"] + params["fc_b"]


# ------------------------------ param init ---------------------------------- #

def init_conv_layer(key, cin, cout):
    k1, k2, k3, k4, k5, k6 = jax.random.split(key, 6)
    w = jax.random.normal(k1, (3, 3, cin, cout), jnp.float32) / jnp.sqrt(9.0 * cin)
    b = 0.1 * jax.random.normal(k2, (cout,), jnp.float32)
    gamma = 1.0 + 0.1 * jax.random.normal(k3, (cout,), jnp.float32)
    beta = 0.1 * jax.random.normal(k4, (cout,), jnp.float32)
    mean = 0.1 * jax.random.normal(k5, (cout,), jnp.float32)
    var = jax.random.uniform(k6, (cout,), jnp.float32, minval=0.5, maxval=1.5)
    return (w, b, gamma, beta, mean, var)


def init_params(key, input_feature, classes):
    k1, k2, k3, k4, k5 = jax.random.split(key, 5)
    c1 = init_conv_layer(k1, input_feature, OUT_CHANNEL)
    c2 = init_conv_layer(k2, OUT_CHANNEL, OUT_CHANNEL * 2)
    c3 = init_conv_layer(k3, OUT_CHANNEL * 2, OUT_CHANNEL * 4)
    fc_w = jax.random.normal(k4, (OUT_CHANNEL * 4, classes), jnp.float32) / jnp.sqrt(
        float(OUT_CHANNEL * 4))
    fc_b = 0.1 * jax.random.normal(k5, (classes,), jnp.float32)
    return {"c1": c1, "c2": c2, "c3": c3, "fc_w": fc_w, "fc_b": fc_b}


# ----------------------------------- main ----------------------------------- #

if __name__ == "__main__":
    key = jax.random.PRNGKey(0)
    kp, kx = jax.random.split(key)

    input_feature, classes = 4, 10
    params = init_params(kp, input_feature, classes)

    # PyTorch-style NCHW input: batch=4 (=> B_TILE=2 images per grid step, 2 grid steps),
    # 4 channels, 16x16 spatial.
    x = jax.random.normal(kx, (4, input_feature, 16, 16), jnp.float32)

    out = jax.block_until_ready(cnn_forward_pallas(x, params))
    assert out.shape == (4, classes), out.shape

    ref = jax.block_until_ready(cnn_forward_ref(x, params))
    max_err = float(jnp.max(jnp.abs(out - ref)))
    ref_scale = max(1.0, float(jnp.max(jnp.abs(ref))))
    # bf16 matmul operands with f32 accumulation -> expect O(1e-2) error on O(1) outputs.
    if not (max_err <= 5e-2 * ref_scale):
        raise AssertionError(
            f"Pallas output mismatch vs reference: max_err={max_err}, ref_scale={ref_scale}")

    print("KERNEL_OK")
</pallas_src>

<mosaic_0001>
module attributes {stable_mosaic.version = 11 : i64} {
  func.func @kernel(%arg0: i32, %arg1: memref<2x256x36xbf16, #tpu.memory_space<vmem>>, %arg2: memref<36x32xbf16, #tpu.memory_space<vmem>>, %arg3: memref<1x32xf32, #tpu.memory_space<vmem>>, %arg4: memref<288x64xbf16, #tpu.memory_space<vmem>>, %arg5: memref<1x64xf32, #tpu.memory_space<vmem>>, %arg6: memref<576x128xbf16, #tpu.memory_space<vmem>>, %arg7: memref<1x128xf32, #tpu.memory_space<vmem>>, %arg8: memref<128x128xbf16, #tpu.memory_space<vmem>>, %arg9: memref<1x128xf32, #tpu.memory_space<vmem>>, %arg10: memref<1x2x128xf32, #tpu.memory_space<vmem>>, %arg11: memref<2x16x16x32xf32, #tpu.memory_space<vmem>>, %arg12: memref<2x10x10x32xbf16, #tpu.memory_space<vmem>>, %arg13: memref<2x8x8x64xf32, #tpu.memory_space<vmem>>, %arg14: memref<2x6x6x64xbf16, #tpu.memory_space<vmem>>) attributes {dimension_semantics = [#tpu.dimension_semantics<parallel>], iteration_bounds = array<i64: 2>, scalar_prefetch = 0 : i64, scratch_operands = 4 : i64, tpu.core_type = #tpu.core_type<tc>, window_params = [{transform_indices = @transform_0, window_bounds = array<i64: 2, 256, 36>}, {pipeline_mode = #tpu.pipeline_mode<synchronous>, transform_indices = @transform_1, window_bounds = array<i64: 36, 32>}, {pipeline_mode = #tpu.pipeline_mode<synchronous>, transform_indices = @transform_2, window_bounds = array<i64: 1, 32>}, {pipeline_mode = #tpu.pipeline_mode<synchronous>, transform_indices = @transform_3, window_bounds = array<i64: 288, 64>}, {pipeline_mode = #tpu.pipeline_mode<synchronous>, transform_indices = @transform_4, window_bounds = array<i64: 1, 64>}, {pipeline_mode = #tpu.pipeline_mode<synchronous>, transform_indices = @transform_5, window_bounds = array<i64: 576, 128>}, {pipeline_mode = #tpu.pipeline_mode<synchronous>, transform_indices = @transform_6, window_bounds = array<i64: 1, 128>}, {pipeline_mode = #tpu.pipeline_mode<synchronous>, transform_indices = @transform_7, window_bounds = array<i64: 128, 128>}, {pipeline_mode = #tpu.pipeline_mode<synchronous>, transform_indices = @transform_8, window_bounds = array<i64: 1, 128>}, {transform_indices = @transform_9, window_bounds = array<i64: 1, 2, 128>}]} {
    %c0 = arith.constant 0 : index
    %c0_0 = arith.constant 0 : index
    %c0_1 = arith.constant 0 : index
    %0 = vector.load %arg1[%c0, %c0_0, %c0_1] : memref<2x256x36xbf16, #tpu.memory_space<vmem>>, vector<2x256x36xbf16>
    %1 = vector.shape_cast %0 : vector<2x256x36xbf16> to vector<512x36xbf16>
    %c0_2 = arith.constant 0 : index
    %c0_3 = arith.constant 0 : index
    %2 = vector.load %arg2[%c0_2, %c0_3] : memref<36x32xbf16, #tpu.memory_space<vmem>>, vector<36x32xbf16>
    %cst = arith.constant dense<0.000000e+00> : vector<512x32xf32>
    %3 = tpu.matmul %1, %2, %cst {dimension_numbers = #tpu.dot_dimension_numbers<[1], [0], [0], [1], [0, 0, 1, 1], [], []>} : vector<512x36xbf16>, vector<36x32xbf16>, vector<512x32xf32> -> vector<512x32xf32>
    %c0_4 = arith.constant 0 : index
    %c0_5 = arith.constant 0 : index
    %4 = vector.load %arg3[%c0_4, %c0_5] : memref<1x32xf32, #tpu.memory_space<vmem>>, vector<1x32xf32>
    %5 = vector.broadcast %4 : vector<1x32xf32> to vector<512x32xf32>
    %6 = arith.addf %3, %5 : vector<512x32xf32>
    %cst_6 = arith.constant 0.000000e+00 : f32
    %7 = vector.broadcast %cst_6 : f32 to vector<512x32xf32>
    %8 = arith.maximumf %6, %7 : vector<512x32xf32>
    %9 = vector.shape_cast %8 : vector<512x32xf32> to vector<2x16x16x32xf32>
    %c0_7 = arith.constant 0 : index
    %c0_8 = arith.constant 0 : index
    %c0_9 = arith.constant 0 : index
    %c0_10 = arith.constant 0 : index
    %10 = vector.load %arg11[%c0_7, %c0_8, %c0_9, %c0_10] : memref<2x16x16x32xf32, #tpu.memory_space<vmem>>, vector<2x16x16x32xf32>
    tpu.vector_store %arg11[%c0_7, %c0_8, %c0_9, %c0_10], %9 {strides = array<i32>} : memref<2x16x16x32xf32, #tpu.memory_space<vmem>>, vector<2x16x16x32xf32>,
    %c0_11 = arith.constant 0 : index
    %c0_12 = arith.constant 0 : index
    %c0_13 = arith.constant 0 : index
    %c0_14 = arith.constant 0 : index
    %11 = tpu.strided_load %arg11[%c0_11, %c0_12, %c0_13, %c0_14] {strides = array<i32: 1, 1, 2, 1>} : memref<2x16x16x32xf32, #tpu.memory_space<vmem>>, vector<2x16x8x32xf32>
    %c0_15 = arith.constant 0 : index
    %c0_16 = arith.constant 0 : index
    %c1 = arith.constant 1 : index
    %c0_17 = arith.constant 0 : index
    %12 = tpu.strided_load %arg11[%c0_15, %c0_16, %c1, %c0_17] {strides = array<i32: 1, 1, 2, 1>} : memref<2x16x16x32xf32, #tpu.memory_space<vmem>>, vector<2x16x8x32xf32>
    %13 = arith.maximumf %11, %12 : vector<2x16x8x32xf32>
    %14 = vector.shape_cast %13 : vector<2x16x8x32xf32> to vector<2x8x2x8x32xf32>
    %15 = vector.extract_strided_slice %14 {offsets = [0, 0, 0, 0, 0], sizes = [2, 8, 1, 8, 32], strides = [1, 1, 1, 1, 1]} : vector<2x8x2x8x32xf32> to vector<2x8x1x8x32xf32>
    %16 = vector.shape_cast %15 : vector<2x8x1x8x32xf32> to vector<2x8x8x32xf32>
    %17 = vector.extract_strided_slice %14 {offsets = [0, 0, 1, 0, 0], sizes = [2, 8, 1, 8, 32], strides = [1, 1, 1, 1, 1]} : vector<2x8x2x8x32xf32> to vector<2x8x1x8x32xf32>
    %18 = vector.shape_cast %17 : vector<2x8x1x8x32xf32> to vector<2x8x8x32xf32>
    %19 = arith.maximumf %16, %18 : vector<2x8x8x32xf32>
    %cst_18 = arith.constant 0.000000e+00 : bf16
    %20 = vector.broadcast %cst_18 : bf16 to vector<2x10x10x32xbf16>
    %c0_19 = arith.constant 0 : index
    %c0_20 = arith.constant 0 : index
    %c0_21 = arith.constant 0 : index
    %c0_22 = arith.constant 0 : index
    %21 = vector.load %arg12[%c0_19, %c0_20, %c0_21, %c0_22] : memref<2x10x10x32xbf16, #tpu.memory_space<vmem>>, vector<2x10x10x32xbf16>
    tpu.vector_store %arg12[%c0_19, %c0_20, %c0_21, %c0_22], %20 {strides = array<i32>} : memref<2x10x10x32xbf16, #tpu.memory_space<vmem>>, vector<2x10x10x32xbf16>,
    %22 = arith.truncf %19 : vector<2x8x8x32xf32> to vector<2x8x8x32xbf16>
    %c0_23 = arith.constant 0 : index
    %c1_24 = arith.constant 1 : index
    %c1_25 = arith.constant 1 : index
    %c0_26 = arith.constant 0 : index
    %23 = vector.load %arg12[%c0_23, %c1_24, %c1_25, %c0_26] : memref<2x10x10x32xbf16, #tpu.memory_space<vmem>>, vector<2x8x8x32xbf16>
    tpu.vector_store %arg12[%c0_23, %c1_24, %c1_25, %c0_26], %22 {strides = array<i32>} : memref<2x10x10x32xbf16, #tpu.memory_space<vmem>>, vector<2x8x8x32xbf16>,
    %c0_27 = arith.constant 0 : index
    %c0_28 = arith.constant 0 : index
    %c0_29 = arith.constant 0 : index
    %c0_30 = arith.constant 0 : index
    %24 = vector.load %arg12[%c0_27, %c0_28, %c0_29, %c0_30] : memref<2x10x10x32xbf16, #tpu.memory_space<vmem>>, vector<2x8x8x32xbf16>
    %c0_31 = arith.constant 0 : index
    %c0_32 = arith.constant 0 : index
    %c1_33 = arith.constant 1 : index
    %c0_34 = arith.constant 0 : index
    %25 = vector.load %arg12[%c0_31, %c0_32, %c1_33, %c0_34] : memref<2x10x10x32xbf16, #tpu.memory_space<vmem>>, vector<2x8x8x32xbf16>
    %c0_35 = arith.constant 0 : index
    %c0_36 = arith.constant 0 : index
    %c2 = arith.constant 2 : index
    %c0_37 = arith.constant 0 : index
    %26 = vector.load %arg12[%c0_35, %c0_36, %c2, %c0_37] : memref<2x10x10x32xbf16, #tpu.memory_space<vmem>>, vector<2x8x8x32xbf16>
    %c0_38 = arith.constant 0 : index
    %c1_39 = arith.constant 1 : index
    %c0_40 = arith.constant 0 : index
    %c0_41 = arith.constant 0 : index
    %27 = vector.load %arg12[%c0_38, %c1_39, %c0_40, %c0_41] : memref<2x10x10x32xbf16, #tpu.memory_space<vmem>>, vector<2x8x8x32xbf16>
    %c0_42 = arith.constant 0 : index
    %c1_43 = arith.constant 1 : index
    %c1_44 = arith.constant 1 : index
    %c0_45 = arith.constant 0 : index
    %28 = vector.load %arg12[%c0_42, %c1_43, %c1_44, %c0_45] : memref<2x10x10x32xbf16, #tpu.memory_space<vmem>>, vector<2x8x8x32xbf16>
    %c0_46 = arith.constant 0 : index
    %c1_47 = arith.constant 1 : index
    %c2_48 = arith.constant 2 : index
    %c0_49 = arith.constant 0 : index
    %29 = vector.load %arg12[%c0_46, %c1_47, %c2_48, %c0_49] : memref<2x10x10x32xbf16, #tpu.memory_space<vmem>>, vector<2x8x8x32xbf16>
    %c0_50 = arith.constant 0 : index
    %c2_51 = arith.constant 2 : index
    %c0_52 = arith.constant 0 : index
    %c0_53 = arith.constant 0 : index
    %30 = vector.load %arg12[%c0_50, %c2_51, %c0_52, %c0_53] : memref<2x10x10x32xbf16, #tpu.memory_space<vmem>>, vector<2x8x8x32xbf16>
    %c0_54 = arith.constant 0 : index
    %c2_55 = arith.constant 2 : index
    %c1_56 = arith.constant 1 : index
    %c0_57 = arith.constant 0 : index
    %31 = vector.load %arg12[%c0_54, %c2_55, %c1_56, %c0_57] : memref<2x10x10x32xbf16, #tpu.memory_space<vmem>>, vector<2x8x8x32xbf16>
    %c0_58 = arith.constant 0 : index
    %c2_59 = arith.constant 2 : index
    %c2_60 = arith.constant 2 : index
    %c0_61 = arith.constant 0 : index
    %32 = vector.load %arg12[%c0_58, %c2_59, %c2_60, %c0_61] : memref<2x10x10x32xbf16, #tpu.memory_space<vmem>>, vector<2x8x8x32xbf16>
    %33 = tpu.concatenate %24, %25, %26, %27, %28, %29, %30, %31, %32 in 3 : vector<2x8x8x32xbf16>, vector<2x8x8x32xbf16>, vector<2x8x8x32xbf16>, vector<2x8x8x32xbf16>, vector<2x8x8x32xbf16>, vector<2x8x8x32xbf16>, vector<2x8x8x32xbf16>, vector<2x8x8x32xbf16>, vector<2x8x8x32xbf16> -> vector<2x8x8x288xbf16>
    %34 = vector.shape_cast %33 : vector<2x8x8x288xbf16> to vector<128x288xbf16>
    %c0_62 = arith.constant 0 : index
    %c0_63 = arith.constant 0 : index
    %35 = vector.load %arg4[%c0_62, %c0_63] : memref<288x64xbf16, #tpu.memory_space<vmem>>, vector<288x64xbf16>
    %cst_64 = arith.constant dense<0.000000e+00> : vector<128x64xf32>
    %36 = tpu.matmul %34, %35, %cst_64 {dimension_numbers = #tpu.dot_dimension_numbers<[1], [0], [0], [1], [0, 0, 1, 1], [], []>} : vector<128x288xbf16>, vector<288x64xbf16>, vector<128x64xf32> -> vector<128x64xf32>
    %c0_65 = arith.constant 0 : index
    %c0_66 = arith.constant 0 : index
    %37 = vector.load %arg5[%c0_65, %c0_66] : memref<1x64xf32, #tpu.memory_space<vmem>>, vector<1x64xf32>
    %38 = vector.broadcast %37 : vector<1x64xf32> to vector<128x64xf32>
    %39 = arith.addf %36, %38 : vector<128x64xf32>
    %cst_67 = arith.constant 0.000000e+00 : f32
    %40 = vector.broadcast %cst_67 : f32 to vector<128x64xf32>
    %41 = arith.maximumf %39, %40 : vector<128x64xf32>
    %42 = vector.shape_cast %41 : vector<128x64xf32> to vector<2x8x8x64xf32>
    %c0_68 = arith.constant 0 : index
    %c0_69 = arith.constant 0 : index
    %c0_70 = arith.constant 0 : index
    %c0_71 = arith.constant 0 : index
    %43 = vector.load %arg13[%c0_68, %c0_69, %c0_70, %c0_71] : memref<2x8x8x64xf32, #tpu.memory_space<vmem>>, vector<2x8x8x64xf32>
    tpu.vector_store %arg13[%c0_68, %c0_69, %c0_70, %c0_71], %42 {strides = array<i32>} : memref<2x8x8x64xf32, #tpu.memory_space<vmem>>, vector<2x8x8x64xf32>,
    %c0_72 = arith.constant 0 : index
    %c0_73 = arith.constant 0 : index
    %c0_74 = arith.constant 0 : index
    %c0_75 = arith.constant 0 : index
    %44 = tpu.strided_load %arg13[%c0_72, %c0_73, %c0_74, %c0_75] {strides = array<i32: 1, 1, 2, 1>} : memref<2x8x8x64xf32, #tpu.memory_space<vmem>>, vector<2x8x4x64xf32>
    %c0_76 = arith.constant 0 : index
    %c0_77 = arith.constant 0 : index
    %c1_78 = arith.constant 1 : index
    %c0_79 = arith.constant 0 : index
    %45 = tpu.strided_load %arg13[%c0_76, %c0_77, %c1_78, %c0_79] {strides = array<i32: 1, 1, 2, 1>} : memref<2x8x8x64xf32, #tpu.memory_space<vmem>>, vector<2x8x4x64xf32>
    %46 = arith.maximumf %44, %45 : vector<2x8x4x64xf32>
    %47 = vector.shape_cast %46 : vector<2x8x4x64xf32> to vector<2x4x2x4x64xf32>
    %48 = vector.extract_strided_slice %47 {offsets = [0, 0, 0, 0, 0], sizes = [2, 4, 1, 4, 64], strides = [1, 1, 1, 1, 1]} : vector<2x4x2x4x64xf32> to vector<2x4x1x4x64xf32>
    %49 = vector.shape_cast %48 : vector<2x4x1x4x64xf32> to vector<2x4x4x64xf32>
    %50 = vector.extract_strided_slice %47 {offsets = [0, 0, 1, 0, 0], sizes = [2, 4, 1, 4, 64], strides = [1, 1, 1, 1, 1]} : vector<2x4x2x4x64xf32> to vector<2x4x1x4x64xf32>
    %51 = vector.shape_cast %50 : vector<2x4x1x4x64xf32> to vector<2x4x4x64xf32>
    %52 = arith.maximumf %49, %51 : vector<2x4x4x64xf32>
    %cst_80 = arith.constant 0.000000e+00 : bf16
    %53 = vector.broadcast %cst_80 : bf16 to vector<2x6x6x64xbf16>
    %c0_81 = arith.constant 0 : index
    %c0_82 = arith.constant 0 : index
    %c0_83 = arith.constant 0 : index
    %c0_84 = arith.constant 0 : index
    %54 = vector.load %arg14[%c0_81, %c0_82, %c0_83, %c0_84] : memref<2x6x6x64xbf16, #tpu.memory_space<vmem>>, vector<2x6x6x64xbf16>
    tpu.vector_store %arg14[%c0_81, %c0_82, %c0_83, %c0_84], %53 {strides = array<i32>} : memref<2x6x6x64xbf16, #tpu.memory_space<vmem>>, vector<2x6x6x64xbf16>,
    %55 = arith.truncf %52 : vector<2x4x4x64xf32> to vector<2x4x4x64xbf16>
    %c0_85 = arith.constant 0 : index
    %c1_86 = arith.constant 1 : index
    %c1_87 = arith.constant 1 : index
    %c0_88 = arith.constant 0 : index
    %56 = vector.load %arg14[%c0_85, %c1_86, %c1_87, %c0_88] : memref<2x6x6x64xbf16, #tpu.memory_space<vmem>>, vector<2x4x4x64xbf16>
    tpu.vector_store %arg14[%c0_85, %c1_86, %c1_87, %c0_88], %55 {strides = array<i32>} : memref<2x6x6x64xbf16, #tpu.memory_space<vmem>>, vector<2x4x4x64xbf16>,
    %c0_89 = arith.constant 0 : index
    %c0_90 = arith.constant 0 : index
    %c0_91 = arith.constant 0 : index
    %c0_92 = arith.constant 0 : index
    %57 = vector.load %arg14[%c0_89, %c0_90, %c0_91, %c0_92] : memref<2x6x6x64xbf16, #tpu.memory_space<vmem>>, vector<2x4x4x64xbf16>
    %c0_93 = arith.constant 0 : index
    %c0_94 = arith.constant 0 : index
    %c1_95 = arith.constant 1 : index
    %c0_96 = arith.constant 0 : index
    %58 = vector.load %arg14[%c0_93, %c0_94, %c1_95, %c0_96] : memref<2x6x6x64xbf16, #tpu.memory_space<vmem>>, vector<2x4x4x64xbf16>
    %c0_97 = arith.constant 0 : index
    %c0_98 = arith.constant 0 : index
    %c2_99 = arith.constant 2 : index
    %c0_100 = arith.constant 0 : index
    %59 = vector.load %arg14[%c0_97, %c0_98, %c2_99, %c0_100] : memref<2x6x6x64xbf16, #tpu.memory_space<vmem>>, vector<2x4x4x64xbf16>
    %c0_101 = arith.constant 0 : index
    %c1_102 = arith.constant 1 : index
    %c0_103 = arith.constant 0 : index
    %c0_104 = arith.constant 0 : index
    %60 = vector.load %arg14[%c0_101, %c1_102, %c0_103, %c0_104] : memref<2x6x6x64xbf16, #tpu.memory_space<vmem>>, vector<2x4x4x64xbf16>
    %c0_105 = arith.constant 0 : index
    %c1_106 = arith.constant 1 : index
    %c1_107 = arith.constant 1 : index
    %c0_108 = arith.constant 0 : index
    %61 = vector.load %arg14[%c0_105, %c1_106, %c1_107, %c0_108] : memref<2x6x6x64xbf16, #tpu.memory_space<vmem>>, vector<2x4x4x64xbf16>
    %c0_109 = arith.constant 0 : index
    %c1_110 = arith.constant 1 : index
    %c2_111 = arith.constant 2 : index
    %c0_112 = arith.constant 0 : index
    %62 = vector.load %arg14[%c0_109, %c1_110, %c2_111, %c0_112] : memref<2x6x6x64xbf16, #tpu.memory_space<vmem>>, vector<2x4x4x64xbf16>
    %c0_113 = arith.constant 0 : index
    %c2_114 = arith.constant 2 : index
    %c0_115 = arith.constant 0 : index
    %c0_116 = arith.constant 0 : index
    %63 = vector.load %arg14[%c0_113, %c2_114, %c0_115, %c0_116] : memref<2x6x6x64xbf16, #tpu.memory_space<vmem>>, vector<2x4x4x64xbf16>
    %c0_117 = arith.constant 0 : index
    %c2_118 = arith.constant 2 : index
    %c1_119 = arith.constant 1 : index
    %c0_120 = arith.constant 0 : index
    %64 = vector.load %arg14[%c0_117, %c2_118, %c1_119, %c0_120] : memref<2x6x6x64xbf16, #tpu.memory_space<vmem>>, vector<2x4x4x64xbf16>
    %c0_121 = arith.constant 0 : index
    %c2_122 = arith.constant 2 : index
    %c2_123 = arith.constant 2 : index
    %c0_124 = arith.constant 0 : index
    %65 = vector.load %arg14[%c0_121, %c2_122, %c2_123, %c0_124] : memref<2x6x6x64xbf16, #tpu.memory_space<vmem>>, vector<2x4x4x64xbf16>
    %66 = tpu.concatenate %57, %58, %59, %60, %61, %62, %63, %64, %65 in 3 : vector<2x4x4x64xbf16>, vector<2x4x4x64xbf16>, vector<2x4x4x64xbf16>, vector<2x4x4x64xbf16>, vector<2x4x4x64xbf16>, vector<2x4x4x64xbf16>, vector<2x4x4x64xbf16>, vector<2x4x4x64xbf16>, vector<2x4x4x64xbf16> -> vector<2x4x4x576xbf16>
    %67 = vector.shape_cast %66 : vector<2x4x4x576xbf16> to vector<32x576xbf16>
    %c0_125 = arith.constant 0 : index
    %c0_126 = arith.constant 0 : index
    %68 = vector.load %arg6[%c0_125, %c0_126] : memref<576x128xbf16, #tpu.memory_space<vmem>>, vector<576x128xbf16>
    %cst_127 = arith.constant dense<0.000000e+00> : vector<32x128xf32>
    %69 = tpu.matmul %67, %68, %cst_127 {dimension_numbers = #tpu.dot_dimension_numbers<[1], [0], [0], [1], [0, 0, 1, 1], [], []>} : vector<32x576xbf16>, vector<576x128xbf16>, vector<32x128xf32> -> vector<32x128xf32>
    %c0_128 = arith.constant 0 : index
    %c0_129 = arith.constant 0 : index
    %70 = vector.load %arg7[%c0_128, %c0_129] : memref<1x128xf32, #tpu.memory_space<vmem>>, vector<1x128xf32>
    %71 = vector.broadcast %70 : vector<1x128xf32> to vector<32x128xf32>
    %72 = arith.addf %69, %71 : vector<32x128xf32>
    %cst_130 = arith.constant 0.000000e+00 : f32
    %73 = vector.broadcast %cst_130 : f32 to vector<32x128xf32>
    %74 = arith.maximumf %72, %73 : vector<32x128xf32>
    %75 = vector.shape_cast %74 : vector<32x128xf32> to vector<2x16x128xf32>
    %cst_131 = arith.constant dense<0xFF800000> : vector<2x128xf32>
    %76 = vector.multi_reduction <maximumf>, %75, %cst_131 [1] : vector<2x16x128xf32> to vector<2x128xf32>
    %77 = arith.truncf %76 : vector<2x128xf32> to vector<2x128xbf16>
    %c0_132 = arith.constant 0 : index
    %c0_133 = arith.constant 0 : index
    %78 = vector.load %arg8[%c0_132, %c0_133] : memref<128x128xbf16, #tpu.memory_space<vmem>>, vector<128x128xbf16>
    %cst_134 = arith.constant dense<0.000000e+00> : vector<2x128xf32>
    %79 = tpu.matmul %77, %78, %cst_134 {dimension_numbers = #tpu.dot_dimension_numbers<[1], [0], [0], [1], [0, 0, 1, 1], [], []>} : vector<2x128xbf16>, vector<128x128xbf16>, vector<2x128xf32> -> vector<2x128xf32>
    %c0_135 = arith.constant 0 : index
    %c0_136 = arith.constant 0 : index
    %80 = vector.load %arg9[%c0_135, %c0_136] : memref<1x128xf32, #tpu.memory_space<vmem>>, vector<1x128xf32>
    %81 = vector.broadcast %80 : vector<1x128xf32> to vector<2x128xf32>
    %82 = arith.addf %79, %81 : vector<2x128xf32>
    %c0_137 = arith.constant 0 : index
    %c0_138 = arith.constant 0 : index
    %c0_139 = arith.constant 0 : index
    %83 = vector.load %arg10[%c0_137, %c0_138, %c0_139] : memref<1x2x128xf32, #tpu.memory_space<vmem>>, vector<1x2x128xf32>
    %84 = vector.shape_cast %83 : vector<1x2x128xf32> to vector<2x128xf32>
    %85 = vector.shape_cast %82 : vector<2x128xf32> to vector<1x2x128xf32>
    tpu.vector_store %arg10[%c0_137, %c0_138, %c0_139], %85 {strides = array<i32>} : memref<1x2x128xf32, #tpu.memory_space<vmem>>, vector<1x2x128xf32>,
    return
  }
  func.func @transform_0(%arg0: i32) -> (i32, i32, i32) {
    %c0_i32 = arith.constant 0 : i32
    %c0_i32_0 = arith.constant 0 : i32
    %c0_i32_1 = arith.constant 0 : i32
    return %arg0, %c0_i32, %c0_i32_0 : i32, i32, i32
  }
  func.func @transform_1(%arg0: i32) -> (i32, i32) {
    %c0_i32 = arith.constant 0 : i32
    %c0_i32_0 = arith.constant 0 : i32
    %c0_i32_1 = arith.constant 0 : i32
    return %c0_i32, %c0_i32_0 : i32, i32
  }
  func.func @transform_2(%arg0: i32) -> (i32, i32) {
    %c0_i32 = arith.constant 0 : i32
    %c0_i32_0 = arith.constant 0 : i32
    %c0_i32_1 = arith.constant 0 : i32
    return %c0_i32, %c0_i32_0 : i32, i32
  }
  func.func @transform_3(%arg0: i32) -> (i32, i32) {
    %c0_i32 = arith.constant 0 : i32
    %c0_i32_0 = arith.constant 0 : i32
    %c0_i32_1 = arith.constant 0 : i32
    return %c0_i32, %c0_i32_0 : i32, i32
  }
  func.func @transform_4(%arg0: i32) -> (i32, i32) {
    %c0_i32 = arith.constant 0 : i32
    %c0_i32_0 = arith.constant 0 : i32
    %c0_i32_1 = arith.constant 0 : i32
    return %c0_i32, %c0_i32_0 : i32, i32
  }
  func.func @transform_5(%arg0: i32) -> (i32, i32) {
    %c0_i32 = arith.constant 0 : i32
    %c0_i32_0 = arith.constant 0 : i32
    %c0_i32_1 = arith.constant 0 : i32
    return %c0_i32, %c0_i32_0 : i32, i32
  }
  func.func @transform_6(%arg0: i32) -> (i32, i32) {
    %c0_i32 = arith.constant 0 : i32
    %c0_i32_0 = arith.constant 0 : i32
    %c0_i32_1 = arith.constant 0 : i32
    return %c0_i32, %c0_i32_0 : i32, i32
  }
  func.func @transform_7(%arg0: i32) -> (i32, i32) {
    %c0_i32 = arith.constant 0 : i32
    %c0_i32_0 = arith.constant 0 : i32
    %c0_i32_1 = arith.constant 0 : i32
    return %c0_i32, %c0_i32_0 : i32, i32
  }
  func.func @transform_8(%arg0: i32) -> (i32, i32) {
    %c0_i32 = arith.constant 0 : i32
    %c0_i32_0 = arith.constant 0 : i32
    %c0_i32_1 = arith.constant 0 : i32
    return %c0_i32, %c0_i32_0 : i32, i32
  }
  func.func @transform_9(%arg0: i32) -> (i32, i32, i32) {
    %c0_i32 = arith.constant 0 : i32
    %c0_i32_0 = arith.constant 0 : i32
    %c0_i32_1 = arith.constant 0 : i32
    return %arg0, %c0_i32, %c0_i32_0 : i32, i32, i32
  }
}

</mosaic_0001>

<llo_original>
// kernel: tpu_custom_call.1
$region0: #{tpu_custom_call.1}
  #allocation0 [shape = 'u32[]', space=smem, size = 0x4, offset = 0x4, fixed_abs, tag = 'smem constant byte address 0x4 - core index']
  #allocation1 [shape = 'u32[144,128]{1,0:T(1,128)}', space=vmem, size = 0x12000, scoped, tag = 'internal scratch']
  #allocation2 [shape = 'f32[2,16,16,32]{3,2,1,0:T(8,128)}', space=vmem, size = 0x40000, scoped, tag = 'scratch operand']
  #allocation3 [shape = 'bf16[2,10,10,32]{3,2,1,0:T(8,128)(2,1)}', space=vmem, size = 0x14000, scoped, tag = 'scratch operand']
  #allocation4 [shape = 'f32[2,8,8,64]{3,2,1,0:T(8,128)}', space=vmem, size = 0x10000, scoped, tag = 'scratch operand']
  #allocation5 [shape = 'bf16[2,6,6,64]{3,2,1,0:T(8,128)(2,1)}', space=vmem, size = 0x6000, scoped, tag = 'scratch operand']
  %s0 = inlined_call_operand.vmem [shape: bf16[4,256,36], index: 0, kind: input, shape index: {}]
  %s1 = inlined_call_operand.vmem [shape: bf16[36,32], index: 1, kind: input, shape index: {}]
  %s2 = inlined_call_operand.vmem [shape: f32[1,32], index: 2, kind: input, shape index: {}]
  %s3 = inlined_call_operand.vmem [shape: bf16[288,64], index: 3, kind: input, shape index: {}]
  %s4 = inlined_call_operand.vmem [shape: f32[1,64], index: 4, kind: input, shape index: {}]
  %s5 = inlined_call_operand.vmem [shape: bf16[576,128], index: 5, kind: input, shape index: {}]
  %s6 = inlined_call_operand.vmem [shape: f32[1,128], index: 6, kind: input, shape index: {}]
  %s7 = inlined_call_operand.vmem [shape: bf16[128,128], index: 7, kind: input, shape index: {}]
  %s8 = inlined_call_operand.vmem [shape: f32[1,128], index: 8, kind: input, shape index: {}]
  %s9 = inlined_call_operand.hbm [shape: f32[2,2,128], index: 9, kind: output, shape index: {}]
  %s10 = sld [smem:[#allocation0]]
  $region69: #{tpu_custom_call.1} parent=0
    _
  %s12 = ssub.s32 1, %s10
  %s13 = scalar_select 0, %s12, %s10
  $region1: #{tpu_custom_call.1} parent=0
    #allocation6 [shape = 'u8[2048]{0}', space=vmem, size = 0x800, scoped, tag = 'output window, operand 0']
    #allocation7 [shape = 's32[2]{0}', space=sflag, size = 0x8, scoped, tag = 'scoped memory for tpu_custom_call.1']
    %14 = vsyncpa [#allocation7], 0
    %s15 = scalar_lea.sflag [#allocation7], 1
    %16 = vsyncpa %s15, 0
    loop: start=0, step=1, limit=4
    $region2: #{tpu_custom_call.1} parent=1 // loop_pre_header
      _
    $region3: #{tpu_custom_call.1} parent=1 // loop_header
      %s18 = sphi 0, %s22
      %p19 = scmp.ge.s32.totalorder %s18, 4
      %s28 = sphi 0, %s30
      %s31 = sphi 0, %s28
      %s32 = sphi 0, %s31
      %s48 = sphi 0, %s32
      %s52 = sphi 0, %s52
      %s54 = sphi 0, %s52
      %s55 = sphi 0, %s54
      %s69 = sphi 0, %s55
      %s73 = sphi 0, %s73
      %s75 = sphi 0, %s73
      %s76 = sphi 0, %s75
      %s90 = sphi 0, %s76
      %s94 = sphi 0, %s94
      %s96 = sphi 0, %s94
      %s97 = sphi 0, %s96
      %s111 = sphi 0, %s97
      %s115 = sphi 0, %s115
      %s117 = sphi 0, %s115
      %s118 = sphi 0, %s117
      %s132 = sphi 0, %s118
      %s136 = sphi 0, %s136
      %s138 = sphi 0, %s136
      %s139 = sphi 0, %s138
      %s153 = sphi 0, %s139
      %s157 = sphi 0, %s157
      %s159 = sphi 0, %s157
      %s160 = sphi 0, %s159
      %s174 = sphi 0, %s160
      %s178 = sphi 0, %s178
      %s180 = sphi 0, %s178
      %s181 = sphi 0, %s180
      %s195 = sphi 0, %s181
      %s199 = sphi 0, %s199
      %s201 = sphi 0, %s199
      %s202 = sphi 0, %s201
      %s216 = sphi 0, %s202
      %s222 = sphi 0, %s224
      %s225 = sphi 0, %s222
      %s226 = sphi 0, %s225
      %s242 = sphi 0, %s226
    $region4: #{tpu_custom_call.1} parent=1 // loop_header_branch
      %21 = sbr.rel (%p19) target = $region8
    $region5: #{tpu_custom_call.1} parent=1 // loop_body
      %s23 = ssub.s32 %s18, 1
      %s24 = ssub.s32 %s18, 2
      %s25 = sadd.s32 %s18, 1
      %s26 = ssub.s32 %s18, %s25
      %p27 = scmp.eq.s32.totalorder %s26, 0
      %s29 = sadd.s32 %s28, 1
      %s30 = scalar_select %p27, %s28, %s29
      %p33 = pneg %p27
      %p34 = scmp.eq.s32.totalorder %s18, 1
      %p35 = por %p33, %p34
      %p36 = scmp.ne.s32.totalorder %s28, %s31
      %p37 = scmp.eq.s32.totalorder %s18, 0
      %p38 = por %p36, %p37
      %p39 = scmp.ne.s32.totalorder %s28, %s31
      %p40 = scmp.eq.s32.totalorder %s23, 1
      %p41 = por %p39, %p40
      %p42 = scmp.ne.s32.totalorder %s31, %s32
      %p43 = scmp.eq.s32.totalorder %s23, 0
      %p44 = por %p42, %p43
      %p45 = scmp.ne.s32.totalorder %s31, %s32
      %p46 = scmp.eq.s32.totalorder %s24, 1
      %p47 = por %p45, %p46
      %p49 = scmp.ne.s32.totalorder %s32, %s48
      %p50 = scmp.eq.s32.totalorder %s24, 0
      %p51 = por %p49, %p50
      %s53 = sadd.s32 %s52, 1
      %p56 = scmp.eq.s32.totalorder %s18, 1
      %p57 = scmp.ne.s32.totalorder %s52, %s54
      %p58 = scmp.eq.s32.totalorder %s18, 0
      %p59 = por %p57, %p58
      %p60 = scmp.ne.s32.totalorder %s52, %s54
      %p61 = scmp.eq.s32.totalorder %s23, 1
      %p62 = por %p60, %p61
      %p63 = scmp.ne.s32.totalorder %s54, %s55
      %p64 = scmp.eq.s32.totalorder %s23, 0
      %p65 = por %p63, %p64
      %p66 = scmp.ne.s32.totalorder %s54, %s55
      %p67 = scmp.eq.s32.totalorder %s24, 1
      %p68 = por %p66, %p67
      %p70 = scmp.ne.s32.totalorder %s55, %s69
      %p71 = scmp.eq.s32.totalorder %s24, 0
      %p72 = por %p70, %p71
      %s74 = sadd.s32 %s73, 1
      %p77 = scmp.eq.s32.totalorder %s18, 1
      %p78 = scmp.ne.s32.totalorder %s73, %s75
      %p79 = scmp.eq.s32.totalorder %s18, 0
      %p80 = por %p78, %p79
      %p81 = scmp.ne.s32.totalorder %s73, %s75
      %p82 = scmp.eq.s32.totalorder %s23, 1
      %p83 = por %p81, %p82
      %p84 = scmp.ne.s32.totalorder %s75, %s76
      %p85 = scmp.eq.s32.totalorder %s23, 0
      %p86 = por %p84, %p85
      %p87 = scmp.ne.s32.totalorder %s75, %s76
      %p88 = scmp.eq.s32.totalorder %s24, 1
      %p89 = por %p87, %p88
      %p91 = scmp.ne.s32.totalorder %s76, %s90
      %p92 = scmp.eq.s32.totalorder %s24, 0
      %p93 = por %p91, %p92
      %s95 = sadd.s32 %s94, 1
      %p98 = scmp.eq.s32.totalorder %s18, 1
      %p99 = scmp.ne.s32.totalorder %s94, %s96
      %p100 = scmp.eq.s32.totalorder %s18, 0
      %p101 = por %p99, %p100
      %p102 = scmp.ne.s32.totalorder %s94, %s96
      %p103 = scmp.eq.s32.totalorder %s23, 1
      %p104 = por %p102, %p103
      %p105 = scmp.ne.s32.totalorder %s96, %s97
      %p106 = scmp.eq.s32.totalorder %s23, 0
      %p107 = por %p105, %p106
      %p108 = scmp.ne.s32.totalorder %s96, %s97
      %p109 = scmp.eq.s32.totalorder %s24, 1
      %p110 = por %p108, %p109
      %p112 = scmp.ne.s32.totalorder %s97, %s111
      %p113 = scmp.eq.s32.totalorder %s24, 0
      %p114 = por %p112, %p113
      %s116 = sadd.s32 %s115, 1
      %p119 = scmp.eq.s32.totalorder %s18, 1
      %p120 = scmp.ne.s32.totalorder %s115, %s117
      %p121 = scmp.eq.s32.totalorder %s18, 0
      %p122 = por %p120, %p121
      %p123 = scmp.ne.s32.totalorder %s115, %s117
      %p124 = scmp.eq.s32.totalorder %s23, 1
      %p125 = por %p123, %p124
      %p126 = scmp.ne.s32.totalorder %s117, %s118
      %p127 = scmp.eq.s32.totalorder %s23, 0
      %p128 = por %p126, %p127
      %p129 = scmp.ne.s32.totalorder %s117, %s118
      %p130 = scmp.eq.s32.totalorder %s24, 1
      %p131 = por %p129, %p130
      %p133 = scmp.ne.s32.totalorder %s118, %s132
      %p134 = scmp.eq.s32.totalorder %s24, 0
      %p135 = por %p133, %p134
      %s137 = sadd.s32 %s136, 1
      %p140 = scmp.eq.s32.totalorder %s18, 1
      %p141 = scmp.ne.s32.totalorder %s136, %s138
      %p142 = scmp.eq.s32.totalorder %s18, 0
      %p143 = por %p141, %p142
      %p144 = scmp.ne.s32.totalorder %s136, %s138
      %p145 = scmp.eq.s32.totalorder %s23, 1
      %p146 = por %p144, %p145
      %p147 = scmp.ne.s32.totalorder %s138, %s139
      %p148 = scmp.eq.s32.totalorder %s23, 0
      %p149 = por %p147, %p148
      %p150 = scmp.ne.s32.totalorder %s138, %s139
      %p151 = scmp.eq.s32.totalorder %s24, 1
      %p152 = por %p150, %p151
      %p154 = scmp.ne.s32.totalorder %s139, %s153
      %p155 = scmp.eq.s32.totalorder %s24, 0
      %p156 = por %p154, %p155
      %s158 = sadd.s32 %s157, 1
      %p161 = scmp.eq.s32.totalorder %s18, 1
      %p162 = scmp.ne.s32.totalorder %s157, %s159
      %p163 = scmp.eq.s32.totalorder %s18, 0
      %p164 = por %p162, %p163
      %p165 = scmp.ne.s32.totalorder %s157, %s159
      %p166 = scmp.eq.s32.totalorder %s23, 1
      %p167 = por %p165, %p166
      %p168 = scmp.ne.s32.totalorder %s159, %s160
      %p169 = scmp.eq.s32.totalorder %s23, 0
      %p170 = por %p168, %p169
      %p171 = scmp.ne.s32.totalorder %s159, %s160
      %p172 = scmp.eq.s32.totalorder %s24, 1
      %p173 = por %p171, %p172
      %p175 = scmp.ne.s32.totalorder %s160, %s174
      %p176 = scmp.eq.s32.totalorder %s24, 0
      %p177 = por %p175, %p176
      %s179 = sadd.s32 %s178, 1
      %p182 = scmp.eq.s32.totalorder %s18, 1
      %p183 = scmp.ne.s32.totalorder %s178, %s180
      %p184 = scmp.eq.s32.totalorder %s18, 0
      %p185 = por %p183, %p184
      %p186 = scmp.ne.s32.totalorder %s178, %s180
      %p187 = scmp.eq.s32.totalorder %s23, 1
      %p188 = por %p186, %p187
      %p189 = scmp.ne.s32.totalorder %s180, %s181
      %p190 = scmp.eq.s32.totalorder %s23, 0
      %p191 = por %p189, %p190
      %p192 = scmp.ne.s32.totalorder %s180, %s181
      %p193 = scmp.eq.s32.totalorder %s24, 1
      %p194 = por %p192, %p193
      %p196 = scmp.ne.s32.totalorder %s181, %s195
      %p197 = scmp.eq.s32.totalorder %s24, 0
      %p198 = por %p196, %p197
      %s200 = sadd.s32 %s199, 1
      %p203 = scmp.eq.s32.totalorder %s18, 1
      %p204 = scmp.ne.s32.totalorder %s199, %s201
      %p205 = scmp.eq.s32.totalorder %s18, 0
      %p206 = por %p204, %p205
      %p207 = scmp.ne.s32.totalorder %s199, %s201
      %p208 = scmp.eq.s32.totalorder %s23, 1
      %p209 = por %p207, %p208
      %p210 = scmp.ne.s32.totalorder %s201, %s202
      %p211 = scmp.eq.s32.totalorder %s23, 0
      %p212 = por %p210, %p211
      %p213 = scmp.ne.s32.totalorder %s201, %s202
      %p214 = scmp.eq.s32.totalorder %s24, 1
      %p215 = por %p213, %p214
      %p217 = scmp.ne.s32.totalorder %s202, %s216
      %p218 = scmp.eq.s32.totalorder %s24, 0
      %p219 = por %p217, %p218
      %s220 = ssub.s32 %s18, %s25
      %p221 = scmp.eq.s32.totalorder %s220, 0
      %s223 = sadd.s32 %s222, 1
      %s224 = scalar_select %p221, %s222, %s223
      %p227 = pneg %p221
      %p228 = scmp.eq.s32.totalorder %s18, 1
      %p229 = por %p227, %p228
      %p230 = scmp.ne.s32.totalorder %s222, %s225
      %p231 = scmp.eq.s32.totalorder %s18, 0
      %p232 = por %p230, %p231
      %p233 = scmp.ne.s32.totalorder %s222, %s225
      %p234 = scmp.eq.s32.totalorder %s23, 1
      %p235 = por %p233, %p234
      %p236 = scmp.ne.s32.totalorder %s225, %s226
      %p237 = scmp.eq.s32.totalorder %s23, 0
      %p238 = por %p236, %p237
      %p239 = scmp.ne.s32.totalorder %s225, %s226
      %p240 = scmp.eq.s32.totalorder %s24, 1
      %p241 = por %p239, %p240
      %p243 = scmp.ne.s32.totalorder %s226, %s242
      %p244 = scmp.eq.s32.totalorder %s24, 0
      %p245 = por %p243, %p244
      %p246 = scmp.le.s32.totalorder 1, %s18
      %p247 = scmp.lt.s32.totalorder %s18, 3
      %p248 = pnand %p246, %p247
      %p249 = pneg %p248
      // Predicated region
      $region9: #{tpu_custom_call.1} parent=5 // pred_check
        _
      $region10: #{tpu_custom_call.1} parent=5 // pred_check_branch
        %251 = sbr.rel (%p248) target = $region12
      $region11: #{tpu_custom_call.1} parent=5 // pred_region
        %s252 = ssub.s32 %s18, 1
        // Predicated region
        $region13: #{tpu_custom_call.1} parent=11 // pred_check
          %p253 = pneg %p65
        $region14: #{tpu_custom_call.1} parent=11 // pred_check_branch
          %255 = sbr.rel (%p253) target = $region16
        $region15: #{tpu_custom_call.1} parent=11 // pred_region
          _
        $region16: #{tpu_custom_call.1} parent=11 // pred_fallthru
          _
        // Predicated region
        $region17: #{tpu_custom_call.1} parent=11 // pred_check
          %p256 = pneg %p86
        $region18: #{tpu_custom_call.1} parent=11 // pred_check_branch
          %258 = sbr.rel (%p256) target = $region20
        $region19: #{tpu_custom_call.1} parent=11 // pred_region
          _
        $region20: #{tpu_custom_call.1} parent=11 // pred_fallthru
          _
        // Predicated region
        $region21: #{tpu_custom_call.1} parent=11 // pred_check
          %p259 = pneg %p107
        $region22: #{tpu_custom_call.1} parent=11 // pred_check_branch
          %261 = sbr.rel (%p259) target = $region24
        $region23: #{tpu_custom_call.1} parent=11 // pred_region
          _
        $region24: #{tpu_custom_call.1} parent=11 // pred_fallthru
          _
        // Predicated region
        $region25: #{tpu_custom_call.1} parent=11 // pred_check
          %p262 = pneg %p128
        $region26: #{tpu_custom_call.1} parent=11 // pred_check_branch
          %264 = sbr.rel (%p262) target = $region28
        $region27: #{tpu_custom_call.1} parent=11 // pred_region
          _
        $region28: #{tpu_custom_call.1} parent=11 // pred_fallthru
          _
        // Predicated region
        $region29: #{tpu_custom_call.1} parent=11 // pred_check
          %p265 = pneg %p149
        $region30: #{tpu_custom_call.1} parent=11 // pred_check_branch
          %267 = sbr.rel (%p265) target = $region32
        $region31: #{tpu_custom_call.1} parent=11 // pred_region
          _
        $region32: #{tpu_custom_call.1} parent=11 // pred_fallthru
          _
        // Predicated region
        $region33: #{tpu_custom_call.1} parent=11 // pred_check
          %p268 = pneg %p170
        $region34: #{tpu_custom_call.1} parent=11 // pred_check_branch
          %270 = sbr.rel (%p268) target = $region36
        $region35: #{tpu_custom_call.1} parent=11 // pred_region
          _
        $region36: #{tpu_custom_call.1} parent=11 // pred_fallthru
          _
        // Predicated region
        $region37: #{tpu_custom_call.1} parent=11 // pred_check
          %p271 = pneg %p191
        $region38: #{tpu_custom_call.1} parent=11 // pred_check_branch
          %273 = sbr.rel (%p271) target = $region40
        $region39: #{tpu_custom_call.1} parent=11 // pred_region
          _
        $region40: #{tpu_custom_call.1} parent=11 // pred_fallthru
          _
        // Predicated region
        $region41: #{tpu_custom_call.1} parent=11 // pred_check
          %p274 = pneg %p212
        $region42: #{tpu_custom_call.1} parent=11 // pred_check_branch
          %276 = sbr.rel (%p274) target = $region44
        $region43: #{tpu_custom_call.1} parent=11 // pred_region
          _
        $region44: #{tpu_custom_call.1} parent=11 // pred_fallthru
          _
      $region12: #{tpu_custom_call.1} parent=5 // pred_fallthru
        _
      %p277 = scmp.lt.s32.totalorder %s18, 2
      // Predicated region
      $region45: #{tpu_custom_call.1} parent=5 // pred_check
        %p278 = pneg %p277
      $region46: #{tpu_custom_call.1} parent=5 // pred_check_branch
        %280 = sbr.rel (%p278) target = $region48
      $region47: #{tpu_custom_call.1} parent=5 // pred_region
        // Predicated region
        $region49: #{tpu_custom_call.1} parent=47 // pred_check
          %p281 = pneg %p38
        $region50: #{tpu_custom_call.1} parent=47 // pred_check_branch
          %283 = sbr.rel (%p281) target = $region52
        $region51: #{tpu_custom_call.1} parent=47 // pred_region
          %s284 = smul.u32 2, %s18
          %p285 = scmp.lt.s32.totalorder %s284, 3
          %s286 = scalar_select %p285, %s284, 3
          %s287 = smul.addr %s286, 32
          %s288 = smul.addr %s287, 4
          %s289 = scalar_lea.vmem %s0, %s288
          %s290 = smul.u32 2, %s18
        $region52: #{tpu_custom_call.1} parent=47 // pred_fallthru
          _
      $region48: #{tpu_custom_call.1} parent=5 // pred_fallthru
        _
      %p291 = scmp.le.s32.totalorder 1, %s18
      %p292 = scmp.lt.s32.totalorder %s18, 3
      %p293 = pnand %p291, %p292
      %p294 = pneg %p293
      // Predicated region
      $region53: #{tpu_custom_call.1} parent=5 // pred_check
        _
      $region54: #{tpu_custom_call.1} parent=5 // pred_check_branch
        %296 = sbr.rel (%p293) target = $region56
      $region55: #{tpu_custom_call.1} parent=5 // pred_region
        %s297 = ssub.s32 %s18, 1
        %s298 = smul.u32 2, %s23
        %p299 = scmp.lt.s32.totalorder %s298, 3
        %s300 = scalar_select %p299, %s298, 3
        %s301 = smul.addr %s300, 32
        %s302 = smul.addr %s301, 4
        %s303 = scalar_lea.vmem %s0, %s302
        %p304 = pneg %p44
        %p305 = pneg %p41
        %p306 = pneg %p65
        %p307 = pneg %p62
        %p308 = pneg %p86
        %p309 = pneg %p83
        %p310 = pneg %p107
        %p311 = pneg %p104
        %p312 = pneg %p128
        %p313 = pneg %p125
        %p314 = pneg %p149
        %p315 = pneg %p146
        %p316 = pneg %p170
        %p317 = pneg %p167
        %p318 = pneg %p191
        %p319 = pneg %p188
        %p320 = pneg %p212
        %p321 = pneg %p209
        %p322 = pneg %p238
        %p323 = pneg %p235
        %s324 = sand.u32 %s225, 1
        %s325 = scalar_lea.sflag [#allocation7], %s324
        %s326 = sand.u32 %s225, 1
        %s327 = smul.addr %s326, 2
        %s328 = scalar_lea.vmem [#allocation6], %s327
        %s329 = smul.u32 2, %s23
        %p330 = scmp.lt.s32.totalorder %s329, 3
        %s331 = scalar_select %p330, %s329, 3
        %s332 = smul.addr %s331, 32
        %s333 = smul.addr %s332, 4
        %s334 = scalar_lea.vmem %s0, %s333
        %s335 = smul.u32 2, %s23
        %v337 = vld [vmem:[%s334] sm:$0xf]
        %v338 = vld [vmem:[%s334 + $0x4] sm:$0xf]
        %v339 = vld [vmem:[%s334 + $0x8] sm:$0xf]
        %v340 = vld [vmem:[%s334 + $0xc] sm:$0xf]
        %v341 = vld [vmem:[%s334 + $0x10] sm:$0xf]
        %v342 = vld [vmem:[%s334 + $0x14] sm:$0xf]
        %v343 = vld [vmem:[%s334 + $0x18] sm:$0xf]
        %v344 = vld [vmem:[%s334 + $0x1c] sm:$0xf]
        %v345 = vld [vmem:[%s334 + $0x20] sm:$0xf]
        %v346 = vld [vmem:[%s334 + $0x24] sm:$0xf]
        %v347 = vld [vmem:[%s334 + $0x28] sm:$0xf]
        %v348 = vld [vmem:[%s334 + $0x2c] sm:$0xf]
        %v349 = vld [vmem:[%s334 + $0x30] sm:$0xf]
        %v350 = vld [vmem:[%s334 + $0x34] sm:$0xf]
        %v351 = vld [vmem:[%s334 + $0x38] sm:$0xf]
        %v352 = vld [vmem:[%s334 + $0x3c] sm:$0xf]
        %v353 = vld [vmem:[%s334 + $0x40] sm:$0xf]
        %v354 = vld [vmem:[%s334 + $0x44] sm:$0xf]
        %v355 = vld [vmem:[%s334 + $0x48] sm:$0xf]
        %v356 = vld [vmem:[%s334 + $0x4c] sm:$0xf]
        %v357 = vld [vmem:[%s334 + $0x50] sm:$0xf]
        %v358 = vld [vmem:[%s334 + $0x54] sm:$0xf]
        %v359 = vld [vmem:[%s334 + $0x58] sm:$0xf]
        %v360 = vld [vmem:[%s334 + $0x5c] sm:$0xf]
        %v361 = vld [vmem:[%s334 + $0x60] sm:$0xf]
        %v362 = vld [vmem:[%s334 + $0x64] sm:$0xf]
        %v363 = vld [vmem:[%s334 + $0x68] sm:$0xf]
        %v364 = vld [vmem:[%s334 + $0x6c] sm:$0xf]
        %v365 = vld [vmem:[%s334 + $0x70] sm:$0xf]
        %v366 = vld [vmem:[%s334 + $0x74] sm:$0xf]
        %v367 = vld [vmem:[%s334 + $0x78] sm:$0xf]
        %v368 = vld [vmem:[%s334 + $0x7c] sm:$0xf]
        %v369 = vld [vmem:[%s334 + $0x80] sm:$0xf]
        %v370 = vld [vmem:[%s334 + $0x84] sm:$0xf]
        %v371 = vld [vmem:[%s334 + $0x88] sm:$0xf]
        %v372 = vld [vmem:[%s334 + $0x8c] sm:$0xf]
        %v373 = vld [vmem:[%s334 + $0x90] sm:$0xf]
        %v374 = vld [vmem:[%s334 + $0x94] sm:$0xf]
        %v375 = vld [vmem:[%s334 + $0x98] sm:$0xf]
        %v376 = vld [vmem:[%s334 + $0x9c] sm:$0xf]
        %v377 = vld [vmem:[%s334 + $0xa0] sm:$0xf]
        %v378 = vld [vmem:[%s334 + $0xa4] sm:$0xf]
        %v379 = vld [vmem:[%s334 + $0xa8] sm:$0xf]
        %v380 = vld [vmem:[%s334 + $0xac] sm:$0xf]
        %v381 = vld [vmem:[%s334 + $0xb0] sm:$0xf]
        %v382 = vld [vmem:[%s334 + $0xb4] sm:$0xf]
        %v383 = vld [vmem:[%s334 + $0xb8] sm:$0xf]
        %v384 = vld [vmem:[%s334 + $0xbc] sm:$0xf]
        %v385 = vld [vmem:[%s334 + $0xc0] sm:$0xf]
        %v386 = vld [vmem:[%s334 + $0xc4] sm:$0xf]
        %v387 = vld [vmem:[%s334 + $0xc8] sm:$0xf]
        %v388 = vld [vmem:[%s334 + $0xcc] sm:$0xf]
        %v389 = vld [vmem:[%s334 + $0xd0] sm:$0xf]
        %v390 = vld [vmem:[%s334 + $0xd4] sm:$0xf]
        %v391 = vld [vmem:[%s334 + $0xd8] sm:$0xf]
        %v392 = vld [vmem:[%s334 + $0xdc] sm:$0xf]
        %v393 = vld [vmem:[%s334 + $0xe0] sm:$0xf]
        %v394 = vld [vmem:[%s334 + $0xe4] sm:$0xf]
        %v395 = vld [vmem:[%s334 + $0xe8] sm:$0xf]
        %v396 = vld [vmem:[%s334 + $0xec] sm:$0xf]
        %v397 = vld [vmem:[%s334 + $0xf0] sm:$0xf]
        %v398 = vld [vmem:[%s334 + $0xf4] sm:$0xf]
        %v399 = vld [vmem:[%s334 + $0xf8] sm:$0xf]
        %v400 = vld [vmem:[%s334 + $0xfc] sm:$0xf]
        %v401 = vld [vmem:[%s1] sm:$0xf]
        %v402 = vld [vmem:[%s1 + $0x4] sm:$0xf]
        %v403 = vld [vmem:[%s1 + $0x8] sm:$0xf]
        %v404 = vld [vmem:[%s1 + $0xc] sm:$0xf]
        %v405 = vld [vmem:[%s1 + $0x10] sm:$0x3]
        %v406 = vld [vmem:[%s2] sm:$0x1]
        %v408 = vlaneseq
        %v409 = vshrl.u32 %v408, 7
        %v410 = vsub.s32 0, %v409
        %v411 = vrot.slane %v406, %v410
        %v477 = vunpack.c.l.b16 %v337
        %v478 = vunpack.c.l.b16 %v338
        %v479 = vunpack.c.l.b16 %v339
        %v480 = vunpack.c.l.b16 %v340
        %v481 = vunpack.c.l.b16 %v341
        %v482 = vunpack.c.l.b16 %v342
        %v483 = vunpack.c.l.b16 %v343
        %v484 = vunpack.c.l.b16 %v344
        %v485 = vunpack.c.l.b16 %v345
        %v486 = vunpack.c.l.b16 %v346
        %v487 = vunpack.c.l.b16 %v347
        %v488 = vunpack.c.l.b16 %v348
        %v489 = vunpack.c.l.b16 %v349
        %v490 = vunpack.c.l.b16 %v350
        %v491 = vunpack.c.l.b16 %v351
        %v492 = vunpack.c.l.b16 %v352
        %v493 = vunpack.c.l.b16 %v353
        %v494 = vunpack.c.l.b16 %v354
        %v495 = vunpack.c.l.b16 %v355
        %v496 = vunpack.c.l.b16 %v356
        %v497 = vunpack.c.l.b16 %v357
        %v498 = vunpack.c.l.b16 %v358
        %v499 = vunpack.c.l.b16 %v359
        %v500 = vunpack.c.l.b16 %v360
        %v501 = vunpack.c.l.b16 %v361
        %v502 = vunpack.c.l.b16 %v362
        %v503 = vunpack.c.l.b16 %v363
        %v504 = vunpack.c.l.b16 %v364
        %v505 = vunpack.c.l.b16 %v365
        %v506 = vunpack.c.l.b16 %v366
        %v507 = vunpack.c.l.b16 %v367
        %v508 = vunpack.c.l.b16 %v368
        %v509 = vunpack.c.l.b16 %v369
        %v510 = vunpack.c.l.b16 %v370
        %v511 = vunpack.c.l.b16 %v371
        %v512 = vunpack.c.l.b16 %v372
        %v513 = vunpack.c.l.b16 %v373
        %v514 = vunpack.c.l.b16 %v374
        %v515 = vunpack.c.l.b16 %v375
        %v516 = vunpack.c.l.b16 %v376
        %v517 = vunpack.c.l.b16 %v377
        %v518 = vunpack.c.l.b16 %v378
        %v519 = vunpack.c.l.b16 %v379
        %v520 = vunpack.c.l.b16 %v380
        %v521 = vunpack.c.l.b16 %v381
        %v522 = vunpack.c.l.b16 %v382
        %v523 = vunpack.c.l.b16 %v383
        %v524 = vunpack.c.l.b16 %v384
        %v525 = vunpack.c.l.b16 %v385
        %v526 = vunpack.c.l.b16 %v386
        %v527 = vunpack.c.l.b16 %v387
        %v528 = vunpack.c.l.b16 %v388
        %v529 = vunpack.c.l.b16 %v389
        %v530 = vunpack.c.l.b16 %v390
        %v531 = vunpack.c.l.b16 %v391
        %v532 = vunpack.c.l.b16 %v392
        %v533 = vunpack.c.l.b16 %v393
        %v534 = vunpack.c.l.b16 %v394
        %v535 = vunpack.c.l.b16 %v395
        %v536 = vunpack.c.l.b16 %v396
        %v537 = vunpack.c.l.b16 %v397
        %v538 = vunpack.c.l.b16 %v398
        %v539 = vunpack.c.l.b16 %v399
        %v540 = vunpack.c.l.b16 %v400
        %v541 = vpack.c.b16 %v478, %v477
        %v542 = vpack.c.b16 %v480, %v479
        %v543 = vpack.c.b16 %v482, %v481
        %v544 = vpack.c.b16 %v484, %v483
        %v545 = vpack.c.b16 %v486, %v485
        %v546 = vpack.c.b16 %v488, %v487
        %v547 = vpack.c.b16 %v490, %v489
        %v548 = vpack.c.b16 %v492, %v491
        %v549 = vpack.c.b16 %v494, %v493
        %v550 = vpack.c.b16 %v496, %v495
        %v551 = vpack.c.b16 %v498, %v497
        %v552 = vpack.c.b16 %v500, %v499
        %v553 = vpack.c.b16 %v502, %v501
        %v554 = vpack.c.b16 %v504, %v503
        %v555 = vpack.c.b16 %v506, %v505
        %v556 = vpack.c.b16 %v508, %v507
        %v557 = vpack.c.b16 %v510, %v509
        %v558 = vpack.c.b16 %v512, %v511
        %v559 = vpack.c.b16 %v514, %v513
        %v560 = vpack.c.b16 %v516, %v515
        %v561 = vpack.c.b16 %v518, %v517
        %v562 = vpack.c.b16 %v520, %v519
        %v563 = vpack.c.b16 %v522, %v521
        %v564 = vpack.c.b16 %v524, %v523
        %v565 = vpack.c.b16 %v526, %v525
        %v566 = vpack.c.b16 %v528, %v527
        %v567 = vpack.c.b16 %v530, %v529
        %v568 = vpack.c.b16 %v532, %v531
        %v569 = vpack.c.b16 %v534, %v533
        %v570 = vpack.c.b16 %v536, %v535
        %v571 = vpack.c.b16 %v538, %v537
        %v572 = vpack.c.b16 %v540, %v539
        %v578 = vunpack.c.l.b16 %v401
        %v579 = vunpack.c.l.b16 %v402
        %v580 = vunpack.c.l.b16 %v403
        %v581 = vunpack.c.l.b16 %v404
        %v582 = vunpack.c.l.b16 %v405
        %v583 = vpack.c.b16 %v579, %v578
        %v584 = vpack.c.b16 %v581, %v580
        %v585 = vpack.c.b16 %v582, %v582
        %vm588 = vcmask 293888
        %v590 = vsel %vm588, %v541, 0
        %v593 = vsel %vm588, %v542, 0
        %v596 = vsel %vm588, %v543, 0
        %v599 = vsel %vm588, %v544, 0
        %v602 = vsel %vm588, %v545, 0
        %v605 = vsel %vm588, %v546, 0
        %v608 = vsel %vm588, %v547, 0
        %v611 = vsel %vm588, %v548, 0
        %v614 = vsel %vm588, %v549, 0
        %v617 = vsel %vm588, %v550, 0
        %v620 = vsel %vm588, %v551, 0
        %v623 = vsel %vm588, %v552, 0
        %v626 = vsel %vm588, %v553, 0
        %v629 = vsel %vm588, %v554, 0
        %v632 = vsel %vm588, %v555, 0
        %v635 = vsel %vm588, %v556, 0
        %v638 = vsel %vm588, %v557, 0
        %v641 = vsel %vm588, %v558, 0
        %v644 = vsel %vm588, %v559, 0
        %v647 = vsel %vm588, %v560, 0
        %v650 = vsel %vm588, %v561, 0
        %v653 = vsel %vm588, %v562, 0
        %v656 = vsel %vm588, %v563, 0
        %v659 = vsel %vm588, %v564, 0
        %v662 = vsel %vm588, %v565, 0
        %v665 = vsel %vm588, %v566, 0
        %v668 = vsel %vm588, %v567, 0
        %v671 = vsel %vm588, %v568, 0
        %v674 = vsel %vm588, %v569, 0
        %v677 = vsel %vm588, %v570, 0
        %v680 = vsel %vm588, %v571, 0
        %v683 = vsel %vm588, %v572, 0
        %vm685 = vcmask 1041408
        %v687 = vsel %vm685, %v585, 0
        %689 = vmatprep.subr.bf16.mxu0 0
        %690 = vmatpush1.bf16.msra.mxu0 %v583
        %691 = vmatprep.subr.bf16.mxu0 0
        %692 = vmatpush1.bf16.msra.mxu0 %v584
        %693 = vmatprep.subr.bf16.mxu0 0
        %694 = vmatpush1.bf16.msra.mxu0 %v687
        %695 = vmatprep.subr.bf16.mxu0 0
        %696 = vmatpush1.bf16.msra.mxu0 0
        %697 = vmatprep.subr.bf16.mxu0 0
        %698 = vmatpush1.bf16.msra.mxu0 0
        %699 = vmatprep.subr.bf16.mxu0 0
        %700 = vmatpush1.bf16.msra.mxu0 0
        %701 = vmatprep.subr.bf16.mxu0 0
        %702 = vmatpush1.bf16.msra.mxu0 0
        %703 = vmatprep.subr.bf16.mxu0 0
        %704 = vmatpush1.bf16.msra.mxu0 0
        %705 = vmatprep.subr.bf16.mxu0 0
        %706 = vmatpush1.bf16.msra.mxu0 0
        %707 = vmatprep.subr.bf16.mxu0 0
        %708 = vmatpush1.bf16.msra.mxu0 0
        %709 = vmatprep.subr.bf16.mxu0 0
        %710 = vmatpush1.bf16.msra.mxu0 0
        %711 = vmatprep.subr.bf16.mxu0 0
        %712 = vmatpush1.bf16.msra.mxu0 0
        %713 = vmatprep.subr.bf16.mxu0 0
        %714 = vmatpush1.bf16.msra.mxu0 0
        %715 = vmatprep.subr.bf16.mxu0 0
        %716 = vmatpush1.bf16.msra.mxu0 0
        %717 = vmatprep.subr.bf16.mxu0 0
        %718 = vmatpush1.bf16.msra.mxu0 0
        %719 = vmatprep.subr.bf16.mxu0 0
        %720 = vmatpush1.bf16.msra.mxu0 0
        %721 = vmatprep.mubr.bf16.mxu0 0
        %722 = vmatmul.mubr.bf16.gmra.mrb[0].mxu0 %v590
        %v723 = vpop.f32.mrb[0].mxu0
        %v724 = vadd.f32 %v411, %v723
        %v725 = vpop.f32.mrb[0].mxu0
        %v726 = vpop.f32.mrb[0].mxu0
        %v727 = vadd.f32 %v411, %v726
        %v728 = vpop.f32.mrb[0].mxu0
        %729 = vmatprep.mubr.bf16.mxu0 0
        %730 = vmatmul.mubr.bf16.gmra.mrb[0].mxu0 %v593
        %v731 = vpop.f32.mrb[0].mxu0
        %v732 = vadd.f32 %v411, %v731
        %v733 = vpop.f32.mrb[0].mxu0
        %v734 = vpop.f32.mrb[0].mxu0
        %v735 = vadd.f32 %v411, %v734
        %v736 = vpop.f32.mrb[0].mxu0
        %737 = vmatprep.mubr.bf16.mxu0 0
        %738 = vmatmul.mubr.bf16.gmra.mrb[0].mxu0 %v596
        %v739 = vpop.f32.mrb[0].mxu0
        %v740 = vadd.f32 %v411, %v739
        %v741 = vpop.f32.mrb[0].mxu0
        %v742 = vpop.f32.mrb[0].mxu0
        %v743 = vadd.f32 %v411, %v742
        %v744 = vpop.f32.mrb[0].mxu0
        %745 = vmatprep.mubr.bf16.mxu0 0
        %746 = vmatmul.mubr.bf16.gmra.mrb[0].mxu0 %v599
        %v747 = vpop.f32.mrb[0].mxu0
        %v748 = vadd.f32 %v411, %v747
        %v749 = vpop.f32.mrb[0].mxu0
        %v750 = vpop.f32.mrb[0].mxu0
        %v751 = vadd.f32 %v411, %v750
        %v752 = vpop.f32.mrb[0].mxu0
        %753 = vmatprep.mubr.bf16.mxu0 0
        %754 = vmatmul.mubr.bf16.gmra.mrb[0].mxu0 %v602
        %v755 = vpop.f32.mrb[0].mxu0
        %v756 = vadd.f32 %v411, %v755
        %v757 = vpop.f32.mrb[0].mxu0
        %v758 = vpop.f32.mrb[0].mxu0
        %v759 = vadd.f32 %v411, %v758
        %v760 = vpop.f32.mrb[0].mxu0
        %761 = vmatprep.mubr.bf16.mxu0 0
        %762 = vmatmul.mubr.bf16.gmra.mrb[0].mxu0 %v605
        %v763 = vpop.f32.mrb[0].mxu0
        %v764 = vadd.f32 %v411, %v763
        %v765 = vpop.f32.mrb[0].mxu0
        %v766 = vpop.f32.mrb[0].mxu0
        %v767 = vadd.f32 %v411, %v766
        %v768 = vpop.f32.mrb[0].mxu0
        %769 = vmatprep.mubr.bf16.mxu0 0
        %770 = vmatmul.mubr.bf16.gmra.mrb[0].mxu0 %v608
        %v771 = vpop.f32.mrb[0].mxu0
        %v772 = vadd.f32 %v411, %v771
        %v773 = vpop.f32.mrb[0].mxu0
        %v774 = vpop.f32.mrb[0].mxu0
        %v775 = vadd.f32 %v411, %v774
        %v776 = vpop.f32.mrb[0].mxu0
        %777 = vmatprep.mubr.bf16.mxu0 0
        %778 = vmatmul.mubr.bf16.gmra.mrb[0].mxu0 %v611
        %v779 = vpop.f32.mrb[0].mxu0
        %v780 = vadd.f32 %v411, %v779
        %v781 = vpop.f32.mrb[0].mxu0
        %v782 = vpop.f32.mrb[0].mxu0
        %v783 = vadd.f32 %v411, %v782
        %v784 = vpop.f32.mrb[0].mxu0
        %785 = vmatprep.mubr.bf16.mxu0 0
        %786 = vmatmul.mubr.bf16.gmra.mrb[0].mxu0 %v614
        %v787 = vpop.f32.mrb[0].mxu0
        %v788 = vadd.f32 %v411, %v787
        %v789 = vpop.f32.mrb[0].mxu0
        %v790 = vpop.f32.mrb[0].mxu0
        %v791 = vadd.f32 %v411, %v790
        %v792 = vpop.f32.mrb[0].mxu0
        %793 = vmatprep.mubr.bf16.mxu0 0
        %794 = vmatmul.mubr.bf16.gmra.mrb[0].mxu0 %v617
        %v795 = vpop.f32.mrb[0].mxu0
        %v796 = vadd.f32 %v411, %v795
        %v797 = vpop.f32.mrb[0].mxu0
        %v798 = vpop.f32.mrb[0].mxu0
        %v799 = vadd.f32 %v411, %v798
        %v800 = vpop.f32.mrb[0].mxu0
        %801 = vmatprep.mubr.bf16.mxu0 0
        %802 = vmatmul.mubr.bf16.gmra.mrb[0].mxu0 %v620
        %v803 = vpop.f32.mrb[0].mxu0
        %v804 = vadd.f32 %v411, %v803
        %v805 = vpop.f32.mrb[0].mxu0
        %v806 = vpop.f32.mrb[0].mxu0
        %v807 = vadd.f32 %v411, %v806
        %v808 = vpop.f32.mrb[0].mxu0
        %809 = vmatprep.mubr.bf16.mxu0 0
        %810 = vmatmul.mubr.bf16.gmra.mrb[0].mxu0 %v623
        %v811 = vpop.f32.mrb[0].mxu0
        %v812 = vadd.f32 %v411, %v811
        %v813 = vpop.f32.mrb[0].mxu0
        %v814 = vpop.f32.mrb[0].mxu0
        %v815 = vadd.f32 %v411, %v814
        %v816 = vpop.f32.mrb[0].mxu0
        %817 = vmatprep.mubr.bf16.mxu0 0
        %818 = vmatmul.mubr.bf16.gmra.mrb[0].mxu0 %v626
        %v819 = vpop.f32.mrb[0].mxu0
        %v820 = vadd.f32 %v411, %v819
        %v821 = vpop.f32.mrb[0].mxu0
        %v822 = vpop.f32.mrb[0].mxu0
        %v823 = vadd.f32 %v411, %v822
        %v824 = vpop.f32.mrb[0].mxu0
        %825 = vmatprep.mubr.bf16.mxu0 0
        %826 = vmatmul.mubr.bf16.gmra.mrb[0].mxu0 %v629
        %v827 = vpop.f32.mrb[0].mxu0
        %v828 = vadd.f32 %v411, %v827
        %v829 = vpop.f32.mrb[0].mxu0
        %v830 = vpop.f32.mrb[0].mxu0
        %v831 = vadd.f32 %v411, %v830
        %v832 = vpop.f32.mrb[0].mxu0
        %833 = vmatprep.mubr.bf16.mxu0 0
        %834 = vmatmul.mubr.bf16.gmra.mrb[0].mxu0 %v632
        %v835 = vpop.f32.mrb[0].mxu0
        %v836 = vadd.f32 %v411, %v835
        %v837 = vpop.f32.mrb[0].mxu0
        %v838 = vpop.f32.mrb[0].mxu0
        %v839 = vadd.f32 %v411, %v838
        %v840 = vpop.f32.mrb[0].mxu0
        %841 = vmatprep.mubr.bf16.mxu0 0
        %842 = vmatmul.mubr.bf16.gmra.mrb[0].mxu0 %v635
        %v843 = vpop.f32.mrb[0].mxu0
        %v844 = vadd.f32 %v411, %v843
        %v845 = vpop.f32.mrb[0].mxu0
        %v846 = vpop.f32.mrb[0].mxu0
        %v847 = vadd.f32 %v411, %v846
        %v848 = vpop.f32.mrb[0].mxu0
        %849 = vmatprep.mubr.bf16.mxu0 0
        %850 = vmatmul.mubr.bf16.gmra.mrb[0].mxu0 %v638
        %v851 = vpop.f32.mrb[0].mxu0
        %v852 = vadd.f32 %v411, %v851
        %v853 = vpop.f32.mrb[0].mxu0
        %v854 = vpop.f32.mrb[0].mxu0
        %v855 = vadd.f32 %v411, %v854
        %v856 = vpop.f32.mrb[0].mxu0
        %857 = vmatprep.mubr.bf16.mxu0 0
        %858 = vmatmul.mubr.bf16.gmra.mrb[0].mxu0 %v641
        %v859 = vpop.f32.mrb[0].mxu0
        %v860 = vadd.f32 %v411, %v859
        %v861 = vpop.f32.mrb[0].mxu0
        %v862 = vpop.f32.mrb[0].mxu0
        %v863 = vadd.f32 %v411, %v862
        %v864 = vpop.f32.mrb[0].mxu0
        %865 = vmatprep.mubr.bf16.mxu0 0
        %866 = vmatmul.mubr.bf16.gmra.mrb[0].mxu0 %v644
        %v867 = vpop.f32.mrb[0].mxu0
        %v868 = vadd.f32 %v411, %v867
        %v869 = vpop.f32.mrb[0].mxu0
        %v870 = vpop.f32.mrb[0].mxu0
        %v871 = vadd.f32 %v411, %v870
        %v872 = vpop.f32.mrb[0].mxu0
        %873 = vmatprep.mubr.bf16.mxu0 0
        %874 = vmatmul.mubr.bf16.gmra.mrb[0].mxu0 %v647
        %v875 = vpop.f32.mrb[0].mxu0
        %v876 = vadd.f32 %v411, %v875
        %v877 = vpop.f32.mrb[0].mxu0
        %v878 = vpop.f32.mrb[0].mxu0
        %v879 = vadd.f32 %v411, %v878
        %v880 = vpop.f32.mrb[0].mxu0
        %881 = vmatprep.mubr.bf16.mxu0 0
        %882 = vmatmul.mubr.bf16.gmra.mrb[0].mxu0 %v650
        %v883 = vpop.f32.mrb[0].mxu0
        %v884 = vadd.f32 %v411, %v883
        %v885 = vpop.f32.mrb[0].mxu0
        %v886 = vpop.f32.mrb[0].mxu0
        %v887 = vadd.f32 %v411, %v886
        %v888 = vpop.f32.mrb[0].mxu0
        %889 = vmatprep.mubr.bf16.mxu0 0
        %890 = vmatmul.mubr.bf16.gmra.mrb[0].mxu0 %v653
        %v891 = vpop.f32.mrb[0].mxu0
        %v892 = vadd.f32 %v411, %v891
        %v893 = vpop.f32.mrb[0].mxu0
        %v894 = vpop.f32.mrb[0].mxu0
        %v895 = vadd.f32 %v411, %v894
        %v896 = vpop.f32.mrb[0].mxu0
        %897 = vmatprep.mubr.bf16.mxu0 0
        %898 = vmatmul.mubr.bf16.gmra.mrb[0].mxu0 %v656
        %v899 = vpop.f32.mrb[0].mxu0
        %v900 = vadd.f32 %v411, %v899
        %v901 = vpop.f32.mrb[0].mxu0
        %v902 = vpop.f32.mrb[0].mxu0
        %v903 = vadd.f32 %v411, %v902
        %v904 = vpop.f32.mrb[0].mxu0
        %905 = vmatprep.mubr.bf16.mxu0 0
        %906 = vmatmul.mubr.bf16.gmra.mrb[0].mxu0 %v659
        %v907 = vpop.f32.mrb[0].mxu0
        %v908 = vadd.f32 %v411, %v907
        %v909 = vpop.f32.mrb[0].mxu0
        %v910 = vpop.f32.mrb[0].mxu0
        %v911 = vadd.f32 %v411, %v910
        %v912 = vpop.f32.mrb[0].mxu0
        %913 = vmatprep.mubr.bf16.mxu0 0
        %914 = vmatmul.mubr.bf16.gmra.mrb[0].mxu0 %v662
        %v915 = vpop.f32.mrb[0].mxu0
        %v916 = vadd.f32 %v411, %v915
        %v917 = vpop.f32.mrb[0].mxu0
        %v918 = vpop.f32.mrb[0].mxu0
        %v919 = vadd.f32 %v411, %v918
        %v920 = vpop.f32.mrb[0].mxu0
        %921 = vmatprep.mubr.bf16.mxu0 0
        %922 = vmatmul.mubr.bf16.gmra.mrb[0].mxu0 %v665
        %v923 = vpop.f32.mrb[0].mxu0
        %v924 = vadd.f32 %v411, %v923
        %v925 = vpop.f32.mrb[0].mxu0
        %v926 = vpop.f32.mrb[0].mxu0
        %v927 = vadd.f32 %v411, %v926
        %v928 = vpop.f32.mrb[0].mxu0
        %929 = vmatprep.mubr.bf16.mxu0 0
        %930 = vmatmul.mubr.bf16.gmra.mrb[0].mxu0 %v668
        %v931 = vpop.f32.mrb[0].mxu0
        %v932 = vadd.f32 %v411, %v931
        %v933 = vpop.f32.mrb[0].mxu0
        %v934 = vpop.f32.mrb[0].mxu0
        %v935 = vadd.f32 %v411, %v934
        %v936 = vpop.f32.mrb[0].mxu0
        %937 = vmatprep.mubr.bf16.mxu0 0
        %938 = vmatmul.mubr.bf16.gmra.mrb[0].mxu0 %v671
        %v939 = vpop.f32.mrb[0].mxu0
        %v940 = vadd.f32 %v411, %v939
        %v941 = vpop.f32.mrb[0].mxu0
        %v942 = vpop.f32.mrb[0].mxu0
        %v943 = vadd.f32 %v411, %v942
        %v944 = vpop.f32.mrb[0].mxu0
        %945 = vmatprep.mubr.bf16.mxu0 0
        %946 = vmatmul.mubr.bf16.gmra.mrb[0].mxu0 %v674
        %v947 = vpop.f32.mrb[0].mxu0
        %v948 = vadd.f32 %v411, %v947
        %v949 = vpop.f32.mrb[0].mxu0
        %v950 = vpop.f32.mrb[0].mxu0
        %v951 = vadd.f32 %v411, %v950
        %v952 = vpop.f32.mrb[0].mxu0
        %953 = vmatprep.mubr.bf16.mxu0 0
        %954 = vmatmul.mubr.bf16.gmra.mrb[0].mxu0 %v677
        %v955 = vpop.f32.mrb[0].mxu0
        %v956 = vadd.f32 %v411, %v955
        %v957 = vpop.f32.mrb[0].mxu0
        %v958 = vpop.f32.mrb[0].mxu0
        %v959 = vadd.f32 %v411, %v958
        %v960 = vpop.f32.mrb[0].mxu0
        %961 = vmatprep.mubr.bf16.mxu0 0
        %962 = vmatmul.mubr.bf16.gmra.mrb[0].mxu0 %v680
        %v963 = vpop.f32.mrb[0].mxu0
        %v964 = vadd.f32 %v411, %v963
        %v965 = vpop.f32.mrb[0].mxu0
        %v966 = vpop.f32.mrb[0].mxu0
        %v967 = vadd.f32 %v411, %v966
        %v968 = vpop.f32.mrb[0].mxu0
        %969 = vmatprep.mubr.bf16.mxu0 0
        %970 = vmatmul.mubr.bf16.gmra.mrb[0].mxu0 %v683
        %v971 = vpop.f32.mrb[0].mxu0
        %v972 = vadd.f32 %v411, %v971
        %v973 = vpop.f32.mrb[0].mxu0
        %v974 = vpop.f32.mrb[0].mxu0
        %v975 = vadd.f32 %v411, %v974
        %v976 = vpop.f32.mrb[0].mxu0
        %977 = vdwg.mxu0
        %v978 = vmax.f32 %v724, 0.0
        %v979 = vmax.f32 %v727, 0.0
        %v980 = vmax.f32 %v732, 0.0
        %v981 = vmax.f32 %v735, 0.0
        %v982 = vmax.f32 %v740, 0.0
        %v983 = vmax.f32 %v743, 0.0
        %v984 = vmax.f32 %v748, 0.0
        %v985 = vmax.f32 %v751, 0.0
        %v986 = vmax.f32 %v756, 0.0
        %v987 = vmax.f32 %v759, 0.0
        %v988 = vmax.f32 %v764, 0.0
        %v989 = vmax.f32 %v767, 0.0
        %v990 = vmax.f32 %v772, 0.0
        %v991 = vmax.f32 %v775, 0.0
        %v992 = vmax.f32 %v780, 0.0
        %v993 = vmax.f32 %v783, 0.0
        %v994 = vmax.f32 %v788, 0.0
        %v995 = vmax.f32 %v791, 0.0
        %v996 = vmax.f32 %v796, 0.0
        %v997 = vmax.f32 %v799, 0.0
        %v998 = vmax.f32 %v804, 0.0
        %v999 = vmax.f32 %v807, 0.0
        %v1000 = vmax.f32 %v812, 0.0
        %v1001 = vmax.f32 %v815, 0.0
        %v1002 = vmax.f32 %v820, 0.0
        %v1003 = vmax.f32 %v823, 0.0
        %v1004 = vmax.f32 %v828, 0.0
        %v1005 = vmax.f32 %v831, 0.0
        %v1006 = vmax.f32 %v836, 0.0
        %v1007 = vmax.f32 %v839, 0.0
        %v1008 = vmax.f32 %v844, 0.0
        %v1009 = vmax.f32 %v847, 0.0
        %v1010 = vmax.f32 %v852, 0.0
        %v1011 = vmax.f32 %v855, 0.0
        %v1012 = vmax.f32 %v860, 0.0
        %v1013 = vmax.f32 %v863, 0.0
        %v1014 = vmax.f32 %v868, 0.0
        %v1015 = vmax.f32 %v871, 0.0
        %v1016 = vmax.f32 %v876, 0.0
        %v1017 = vmax.f32 %v879, 0.0
        %v1018 = vmax.f32 %v884, 0.0
        %v1019 = vmax.f32 %v887, 0.0
        %v1020 = vmax.f32 %v892, 0.0
        %v1021 = vmax.f32 %v895, 0.0
        %v1022 = vmax.f32 %v900, 0.0
        %v1023 = vmax.f32 %v903, 0.0
        %v1024 = vmax.f32 %v908, 0.0
        %v1025 = vmax.f32 %v911, 0.0
        %v1026 = vmax.f32 %v916, 0.0
        %v1027 = vmax.f32 %v919, 0.0
        %v1028 = vmax.f32 %v924, 0.0
        %v1029 = vmax.f32 %v927, 0.0
        %v1030 = vmax.f32 %v932, 0.0
        %v1031 = vmax.f32 %v935, 0.0
        %v1032 = vmax.f32 %v940, 0.0
        %v1033 = vmax.f32 %v943, 0.0
        %v1034 = vmax.f32 %v948, 0.0
        %v1035 = vmax.f32 %v951, 0.0
        %v1036 = vmax.f32 %v956, 0.0
        %v1037 = vmax.f32 %v959, 0.0
        %v1038 = vmax.f32 %v964, 0.0
        %v1039 = vmax.f32 %v967, 0.0
        %v1040 = vmax.f32 %v972, 0.0
        %v1041 = vmax.f32 %v975, 0.0
        %vm1042 = vcmask 261120
        %1043 = vst.msk [vmem:[#allocation2] sm:$0xff] %vm1042, %v978
        %1044 = vst.msk [vmem:[#allocation2 + $0x8] sm:$0xff] %vm1042, %v979
        %1045 = vst.msk [vmem:[#allocation2 + $0x10] sm:$0xff] %vm1042, %v980
        %1046 = vst.msk [vmem:[#allocation2 + $0x18] sm:$0xff] %vm1042, %v981
        %1047 = vst.msk [vmem:[#allocation2 + $0x20] sm:$0xff] %vm1042, %v982
        %1048 = vst.msk [vmem:[#allocation2 + $0x28] sm:$0xff] %vm1042, %v983
        %1049 = vst.msk [vmem:[#allocation2 + $0x30] sm:$0xff] %vm1042, %v984
        %1050 = vst.msk [vmem:[#allocation2 + $0x38] sm:$0xff] %vm1042, %v985
        %1051 = vst.msk [vmem:[#allocation2 + $0x40] sm:$0xff] %vm1042, %v986
        %1052 = vst.msk [vmem:[#allocation2 + $0x48] sm:$0xff] %vm1042, %v987
        %1053 = vst.msk [vmem:[#allocation2 + $0x50] sm:$0xff] %vm1042, %v988
        %1054 = vst.msk [vmem:[#allocation2 + $0x58] sm:$0xff] %vm1042, %v989
        %1055 = vst.msk [vmem:[#allocation2 + $0x60] sm:$0xff] %vm1042, %v990
        %1056 = vst.msk [vmem:[#allocation2 + $0x68] sm:$0xff] %vm1042, %v991
        %1057 = vst.msk [vmem:[#allocation2 + $0x70] sm:$0xff] %vm1042, %v992
        %1058 = vst.msk [vmem:[#allocation2 + $0x78] sm:$0xff] %vm1042, %v993
        %1059 = vst.msk [vmem:[#allocation2 + $0x80] sm:$0xff] %vm1042, %v994
        %1060 = vst.msk [vmem:[#allocation2 + $0x88] sm:$0xff] %vm1042, %v995
        %1061 = vst.msk [vmem:[#allocation2 + $0x90] sm:$0xff] %vm1042, %v996
        %1062 = vst.msk [vmem:[#allocation2 + $0x98] sm:$0xff] %vm1042, %v997
        %1063 = vst.msk [vmem:[#allocation2 + $0xa0] sm:$0xff] %vm1042, %v998
        %1064 = vst.msk [vmem:[#allocation2 + $0xa8] sm:$0xff] %vm1042, %v999
        %1065 = vst.msk [vmem:[#allocation2 + $0xb0] sm:$0xff] %vm1042, %v1000
        %1066 = vst.msk [vmem:[#allocation2 + $0xb8] sm:$0xff] %vm1042, %v1001
        %1067 = vst.msk [vmem:[#allocation2 + $0xc0] sm:$0xff] %vm1042, %v1002
        %1068 = vst.msk [vmem:[#allocation2 + $0xc8] sm:$0xff] %vm1042, %v1003
        %1069 = vst.msk [vmem:[#allocation2 + $0xd0] sm:$0xff] %vm1042, %v1004
        %1070 = vst.msk [vmem:[#allocation2 + $0xd8] sm:$0xff] %vm1042, %v1005
        %1071 = vst.msk [vmem:[#allocation2 + $0xe0] sm:$0xff] %vm1042, %v1006
        %1072 = vst.msk [vmem:[#allocation2 + $0xe8] sm:$0xff] %vm1042, %v1007
        %1073 = vst.msk [vmem:[#allocation2 + $0xf0] sm:$0xff] %vm1042, %v1008
        %1074 = vst.msk [vmem:[#allocation2 + $0xf8] sm:$0xff] %vm1042, %v1009
        %1075 = vst.msk [vmem:[#allocation2 + $0x100] sm:$0xff] %vm1042, %v1010
        %1076 = vst.msk [vmem:[#allocation2 + $0x108] sm:$0xff] %vm1042, %v1011
        %1077 = vst.msk [vmem:[#allocation2 + $0x110] sm:$0xff] %vm1042, %v1012
        %1078 = vst.msk [vmem:[#allocation2 + $0x118] sm:$0xff] %vm1042, %v1013
        %1079 = vst.msk [vmem:[#allocation2 + $0x120] sm:$0xff] %vm1042, %v1014
        %1080 = vst.msk [vmem:[#allocation2 + $0x128] sm:$0xff] %vm1042, %v1015
        %1081 = vst.msk [vmem:[#allocation2 + $0x130] sm:$0xff] %vm1042, %v1016
        %1082 = vst.msk [vmem:[#allocation2 + $0x138] sm:$0xff] %vm1042, %v1017
        %1083 = vst.msk [vmem:[#allocation2 + $0x140] sm:$0xff] %vm1042, %v1018
        %1084 = vst.msk [vmem:[#allocation2 + $0x148] sm:$0xff] %vm1042, %v1019
        %1085 = vst.msk [vmem:[#allocation2 + $0x150] sm:$0xff] %vm1042, %v1020
        %1086 = vst.msk [vmem:[#allocation2 + $0x158] sm:$0xff] %vm1042, %v1021
        %1087 = vst.msk [vmem:[#allocation2 + $0x160] sm:$0xff] %vm1042, %v1022
        %1088 = vst.msk [vmem:[#allocation2 + $0x168] sm:$0xff] %vm1042, %v1023
        %1089 = vst.msk [vmem:[#allocation2 + $0x170] sm:$0xff] %vm1042, %v1024
        %1090 = vst.msk [vmem:[#allocation2 + $0x178] sm:$0xff] %vm1042, %v1025
        %1091 = vst.msk [vmem:[#allocation2 + $0x180] sm:$0xff] %vm1042, %v1026
        %1092 = vst.msk [vmem:[#allocation2 + $0x188] sm:$0xff] %vm1042, %v1027
        %1093 = vst.msk [vmem:[#allocation2 + $0x190] sm:$0xff] %vm1042, %v1028
        %1094 = vst.msk [vmem:[#allocation2 + $0x198] sm:$0xff] %vm1042, %v1029
        %1095 = vst.msk [vmem:[#allocation2 + $0x1a0] sm:$0xff] %vm1042, %v1030
        %1096 = vst.msk [vmem:[#allocation2 + $0x1a8] sm:$0xff] %vm1042, %v1031
        %1097 = vst.msk [vmem:[#allocation2 + $0x1b0] sm:$0xff] %vm1042, %v1032
        %1098 = vst.msk [vmem:[#allocation2 + $0x1b8] sm:$0xff] %vm1042, %v1033
        %1099 = vst.msk [vmem:[#allocation2 + $0x1c0] sm:$0xff] %vm1042, %v1034
        %1100 = vst.msk [vmem:[#allocation2 + $0x1c8] sm:$0xff] %vm1042, %v1035
        %1101 = vst.msk [vmem:[#allocation2 + $0x1d0] sm:$0xff] %vm1042, %v1036
        %1102 = vst.msk [vmem:[#allocation2 + $0x1d8] sm:$0xff] %vm1042, %v1037
        %1103 = vst.msk [vmem:[#allocation2 + $0x1e0] sm:$0xff] %vm1042, %v1038
        %1104 = vst.msk [vmem:[#allocation2 + $0x1e8] sm:$0xff] %vm1042, %v1039
        %1105 = vst.msk [vmem:[#allocation2 + $0x1f0] sm:$0xff] %vm1042, %v1040
        %1106 = vst.msk [vmem:[#allocation2 + $0x1f8] sm:$0xff] %vm1042, %v1041
        %v1107 = vld [vmem:[#allocation2] ss:$2 sm:$0xff]
        %s1108 = scalar_lea.vmem [#allocation2], 16
        %v1109 = vld [vmem:[%s1108] ss:$2 sm:$0xff]
        %s1110 = scalar_lea.vmem [#allocation2], 32
        %v1111 = vld [vmem:[%s1110] ss:$2 sm:$0xff]
        %s1112 = scalar_lea.vmem [#allocation2], 48
        %v1113 = vld [vmem:[%s1112] ss:$2 sm:$0xff]
        %s1114 = scalar_lea.vmem [#allocation2], 64
        %v1115 = vld [vmem:[%s1114] ss:$2 sm:$0xff]
        %s1116 = scalar_lea.vmem [#allocation2], 80
        %v1117 = vld [vmem:[%s1116] ss:$2 sm:$0xff]
        %s1118 = scalar_lea.vmem [#allocation2], 96
        %v1119 = vld [vmem:[%s1118] ss:$2 sm:$0xff]
        %s1120 = scalar_lea.vmem [#allocation2], 112
        %v1121 = vld [vmem:[%s1120] ss:$2 sm:$0xff]
        %s1122 = scalar_lea.vmem [#allocation2], 128
        %v1123 = vld [vmem:[%s1122] ss:$2 sm:$0xff]
        %s1124 = scalar_lea.vmem [#allocation2], 144
        %v1125 = vld [vmem:[%s1124] ss:$2 sm:$0xff]
        %s1126 = scalar_lea.vmem [#allocation2], 160
        %v1127 = vld [vmem:[%s1126] ss:$2 sm:$0xff]
        %s1128 = scalar_lea.vmem [#allocation2], 176
        %v1129 = vld [vmem:[%s1128] ss:$2 sm:$0xff]
        %s1130 = scalar_lea.vmem [#allocation2], 192
        %v1131 = vld [vmem:[%s1130] ss:$2 sm:$0xff]
        %s1132 = scalar_lea.vmem [#allocation2], 208
        %v1133 = vld [vmem:[%s1132] ss:$2 sm:$0xff]
        %s1134 = scalar_lea.vmem [#allocation2], 224
        %v1135 = vld [vmem:[%s1134] ss:$2 sm:$0xff]
        %s1136 = scalar_lea.vmem [#allocation2], 240
        %v1137 = vld [vmem:[%s1136] ss:$2 sm:$0xff]
        %s1138 = scalar_lea.vmem [#allocation2], 256
        %v1139 = vld [vmem:[%s1138] ss:$2 sm:$0xff]
        %s1140 = scalar_lea.vmem [#allocation2], 272
        %v1141 = vld [vmem:[%s1140] ss:$2 sm:$0xff]
        %s1142 = scalar_lea.vmem [#allocation2], 288
        %v1143 = vld [vmem:[%s1142] ss:$2 sm:$0xff]
        %s1144 = scalar_lea.vmem [#allocation2], 304
        %v1145 = vld [vmem:[%s1144] ss:$2 sm:$0xff]
        %s1146 = scalar_lea.vmem [#allocation2], 320
        %v1147 = vld [vmem:[%s1146] ss:$2 sm:$0xff]
        %s1148 = scalar_lea.vmem [#allocation2], 336
        %v1149 = vld [vmem:[%s1148] ss:$2 sm:$0xff]
        %s1150 = scalar_lea.vmem [#allocation2], 352
        %v1151 = vld [vmem:[%s1150] ss:$2 sm:$0xff]
        %s1152 = scalar_lea.vmem [#allocation2], 368
        %v1153 = vld [vmem:[%s1152] ss:$2 sm:$0xff]
        %s1154 = scalar_lea.vmem [#allocation2], 384
        %v1155 = vld [vmem:[%s1154] ss:$2 sm:$0xff]
        %s1156 = scalar_lea.vmem [#allocation2], 400
        %v1157 = vld [vmem:[%s1156] ss:$2 sm:$0xff]
        %s1158 = scalar_lea.vmem [#allocation2], 416
        %v1159 = vld [vmem:[%s1158] ss:$2 sm:$0xff]
        %s1160 = scalar_lea.vmem [#allocation2], 432
        %v1161 = vld [vmem:[%s1160] ss:$2 sm:$0xff]
        %s1162 = scalar_lea.vmem [#allocation2], 448
        %v1163 = vld [vmem:[%s1162] ss:$2 sm:$0xff]
        %s1164 = scalar_lea.vmem [#allocation2], 464
        %v1165 = vld [vmem:[%s1164] ss:$2 sm:$0xff]
        %s1166 = scalar_lea.vmem [#allocation2], 480
        %v1167 = vld [vmem:[%s1166] ss:$2 sm:$0xff]
        %s1168 = scalar_lea.vmem [#allocation2], 496
        %v1169 = vld [vmem:[%s1168] ss:$2 sm:$0xff]
        %s1170 = scalar_lea.vmem [#allocation2], 1
        %v1171 = vld [vmem:[%s1170] ss:$2 sm:$0xff]
        %s1172 = scalar_lea.vmem [#allocation2], 17
        %v1173 = vld [vmem:[%s1172] ss:$2 sm:$0xff]
        %s1174 = scalar_lea.vmem [#allocation2], 33
        %v1175 = vld [vmem:[%s1174] ss:$2 sm:$0xff]
        %s1176 = scalar_lea.vmem [#allocation2], 49
        %v1177 = vld [vmem:[%s1176] ss:$2 sm:$0xff]
        %s1178 = scalar_lea.vmem [#allocation2], 65
        %v1179 = vld [vmem:[%s1178] ss:$2 sm:$0xff]
        %s1180 = scalar_lea.vmem [#allocation2], 81
        %v1181 = vld [vmem:[%s1180] ss:$2 sm:$0xff]
        %s1182 = scalar_lea.vmem [#allocation2], 97
        %v1183 = vld [vmem:[%s1182] ss:$2 sm:$0xff]
        %s1184 = scalar_lea.vmem [#allocation2], 113
        %v1185 = vld [vmem:[%s1184] ss:$2 sm:$0xff]
        %s1186 = scalar_lea.vmem [#allocation2], 129
        %v1187 = vld [vmem:[%s1186] ss:$2 sm:$0xff]
        %s1188 = scalar_lea.vmem [#allocation2], 145
        %v1189 = vld [vmem:[%s1188] ss:$2 sm:$0xff]
        %s1190 = scalar_lea.vmem [#allocation2], 161
        %v1191 = vld [vmem:[%s1190] ss:$2 sm:$0xff]
        %s1192 = scalar_lea.vmem [#allocation2], 177
        %v1193 = vld [vmem:[%s1192] ss:$2 sm:$0xff]
        %s1194 = scalar_lea.vmem [#allocation2], 193
        %v1195 = vld [vmem:[%s1194] ss:$2 sm:$0xff]
        %s1196 = scalar_lea.vmem [#allocation2], 209
        %v1197 = vld [vmem:[%s1196] ss:$2 sm:$0xff]
        %s1198 = scalar_lea.vmem [#allocation2], 225
        %v1199 = vld [vmem:[%s1198] ss:$2 sm:$0xff]
        %s1200 = scalar_lea.vmem [#allocation2], 241
        %v1201 = vld [vmem:[%s1200] ss:$2 sm:$0xff]
        %s1202 = scalar_lea.vmem [#allocation2], 257
        %v1203 = vld [vmem:[%s1202] ss:$2 sm:$0xff]
        %s1204 = scalar_lea.vmem [#allocation2], 273
        %v1205 = vld [vmem:[%s1204] ss:$2 sm:$0xff]
        %s1206 = scalar_lea.vmem [#allocation2], 289
        %v1207 = vld [vmem:[%s1206] ss:$2 sm:$0xff]
        %s1208 = scalar_lea.vmem [#allocation2], 305
        %v1209 = vld [vmem:[%s1208] ss:$2 sm:$0xff]
        %s1210 = scalar_lea.vmem [#allocation2], 321
        %v1211 = vld [vmem:[%s1210] ss:$2 sm:$0xff]
        %s1212 = scalar_lea.vmem [#allocation2], 337
        %v1213 = vld [vmem:[%s1212] ss:$2 sm:$0xff]
        %s1214 = scalar_lea.vmem [#allocation2], 353
        %v1215 = vld [vmem:[%s1214] ss:$2 sm:$0xff]
        %s1216 = scalar_lea.vmem [#allocation2], 369
        %v1217 = vld [vmem:[%s1216] ss:$2 sm:$0xff]
        %s1218 = scalar_lea.vmem [#allocation2], 385
        %v1219 = vld [vmem:[%s1218] ss:$2 sm:$0xff]
        %s1220 = scalar_lea.vmem [#allocation2], 401
        %v1221 = vld [vmem:[%s1220] ss:$2 sm:$0xff]
        %s1222 = scalar_lea.vmem [#allocation2], 417
        %v1223 = vld [vmem:[%s1222] ss:$2 sm:$0xff]
        %s1224 = scalar_lea.vmem [#allocation2], 433
        %v1225 = vld [vmem:[%s1224] ss:$2 sm:$0xff]
        %s1226 = scalar_lea.vmem [#allocation2], 449
        %v1227 = vld [vmem:[%s1226] ss:$2 sm:$0xff]
        %s1228 = scalar_lea.vmem [#allocation2], 465
        %v1229 = vld [vmem:[%s1228] ss:$2 sm:$0xff]
        %s1230 = scalar_lea.vmem [#allocation2], 481
        %v1231 = vld [vmem:[%s1230] ss:$2 sm:$0xff]
        %s1232 = scalar_lea.vmem [#allocation2], 497
        %v1233 = vld [vmem:[%s1232] ss:$2 sm:$0xff]
        %v1234 = vmax.f32 %v1107, %v1171
        %v1235 = vmax.f32 %v1109, %v1173
        %v1236 = vmax.f32 %v1111, %v1175
        %v1237 = vmax.f32 %v1113, %v1177
        %v1238 = vmax.f32 %v1115, %v1179
        %v1239 = vmax.f32 %v1117, %v1181
        %v1240 = vmax.f32 %v1119, %v1183
        %v1241 = vmax.f32 %v1121, %v1185
        %v1242 = vmax.f32 %v1123, %v1187
        %v1243 = vmax.f32 %v1125, %v1189
        %v1244 = vmax.f32 %v1127, %v1191
        %v1245 = vmax.f32 %v1129, %v1193
        %v1246 = vmax.f32 %v1131, %v1195
        %v1247 = vmax.f32 %v1133, %v1197
        %v1248 = vmax.f32 %v1135, %v1199
        %v1249 = vmax.f32 %v1137, %v1201
        %v1250 = vmax.f32 %v1139, %v1203
        %v1251 = vmax.f32 %v1141, %v1205
        %v1252 = vmax.f32 %v1143, %v1207
        %v1253 = vmax.f32 %v1145, %v1209
        %v1254 = vmax.f32 %v1147, %v1211
        %v1255 = vmax.f32 %v1149, %v1213
        %v1256 = vmax.f32 %v1151, %v1215
        %v1257 = vmax.f32 %v1153, %v1217
        %v1258 = vmax.f32 %v1155, %v1219
        %v1259 = vmax.f32 %v1157, %v1221
        %v1260 = vmax.f32 %v1159, %v1223
        %v1261 = vmax.f32 %v1161, %v1225
        %v1262 = vmax.f32 %v1163, %v1227
        %v1263 = vmax.f32 %v1165, %v1229
        %v1264 = vmax.f32 %v1167, %v1231
        %v1265 = vmax.f32 %v1169, %v1233
        %v1266 = vmax.f32 %v1234, %v1235
        %v1267 = vmax.f32 %v1236, %v1237
        %v1268 = vmax.f32 %v1238, %v1239
        %v1269 = vmax.f32 %v1240, %v1241
        %v1270 = vmax.f32 %v1242, %v1243
        %v1271 = vmax.f32 %v1244, %v1245
        %v1272 = vmax.f32 %v1246, %v1247
        %v1273 = vmax.f32 %v1248, %v1249
        %v1274 = vmax.f32 %v1250, %v1251
        %v1275 = vmax.f32 %v1252, %v1253
        %v1276 = vmax.f32 %v1254, %v1255
        %v1277 = vmax.f32 %v1256, %v1257
        %v1278 = vmax.f32 %v1258, %v1259
        %v1279 = vmax.f32 %v1260, %v1261
        %v1280 = vmax.f32 %v1262, %v1263
        %v1281 = vmax.f32 %v1264, %v1265
        %vm1282 = vcmask 257024
        %1283 = vst.msk [vmem:[#allocation3] sm:$0xf] %vm1282, 0
        %vm1284 = vcmask 253952
        %1285 = vst.msk [vmem:[#allocation3 + $0x4] sm:$0x1] %vm1284, 0
        %1286 = vst.msk [vmem:[#allocation3 + $0x8] sm:$0xf] %vm1282, 0
        %1287 = vst.msk [vmem:[#allocation3 + $0xc] sm:$0x1] %vm1284, 0
        %1288 = vst.msk [vmem:[#allocation3 + $0x10] sm:$0xf] %vm1282, 0
        %1289 = vst.msk [vmem:[#allocation3 + $0x14] sm:$0x1] %vm1284, 0
        %1290 = vst.msk [vmem:[#allocation3 + $0x18] sm:$0xf] %vm1282, 0
        %1291 = vst.msk [vmem:[#allocation3 + $0x1c] sm:$0x1] %vm1284, 0
        %1292 = vst.msk [vmem:[#allocation3 + $0x20] sm:$0xf] %vm1282, 0
        %1293 = vst.msk [vmem:[#allocation3 + $0x24] sm:$0x1] %vm1284, 0
        %1294 = vst.msk [vmem:[#allocation3 + $0x28] sm:$0xf] %vm1282, 0
        %1295 = vst.msk [vmem:[#allocation3 + $0x2c] sm:$0x1] %vm1284, 0
        %1296 = vst.msk [vmem:[#allocation3 + $0x30] sm:$0xf] %vm1282, 0
        %1297 = vst.msk [vmem:[#allocation3 + $0x34] sm:$0x1] %vm1284, 0
        %1298 = vst.msk [vmem:[#allocation3 + $0x38] sm:$0xf] %vm1282, 0
        %1299 = vst.msk [vmem:[#allocation3 + $0x3c] sm:$0x1] %vm1284, 0
        %1300 = vst.msk [vmem:[#allocation3 + $0x40] sm:$0xf] %vm1282, 0
        %1301 = vst.msk [vmem:[#allocation3 + $0x44] sm:$0x1] %vm1284, 0
        %1302 = vst.msk [vmem:[#allocation3 + $0x48] sm:$0xf] %vm1282, 0
        %1303 = vst.msk [vmem:[#allocation3 + $0x4c] sm:$0x1] %vm1284, 0
        %1304 = vst.msk [vmem:[#allocation3 + $0x50] sm:$0xf] %vm1282, 0
        %1305 = vst.msk [vmem:[#allocation3 + $0x54] sm:$0x1] %vm1284, 0
        %1306 = vst.msk [vmem:[#allocation3 + $0x58] sm:$0xf] %vm1282, 0
        %1307 = vst.msk [vmem:[#allocation3 + $0x5c] sm:$0x1] %vm1284, 0
        %1308 = vst.msk [vmem:[#allocation3 + $0x60] sm:$0xf] %vm1282, 0
        %1309 = vst.msk [vmem:[#allocation3 + $0x64] sm:$0x1] %vm1284, 0
        %1310 = vst.msk [vmem:[#allocation3 + $0x68] sm:$0xf] %vm1282, 0
        %1311 = vst.msk [vmem:[#allocation3 + $0x6c] sm:$0x1] %vm1284, 0
        %1312 = vst.msk [vmem:[#allocation3 + $0x70] sm:$0xf] %vm1282, 0
        %1313 = vst.msk [vmem:[#allocation3 + $0x74] sm:$0x1] %vm1284, 0
        %1314 = vst.msk [vmem:[#allocation3 + $0x78] sm:$0xf] %vm1282, 0
        %1315 = vst.msk [vmem:[#allocation3 + $0x7c] sm:$0x1] %vm1284, 0
        %1316 = vst.msk [vmem:[#allocation3 + $0x80] sm:$0xf] %vm1282, 0
        %1317 = vst.msk [vmem:[#allocation3 + $0x84] sm:$0x1] %vm1284, 0
        %1318 = vst.msk [vmem:[#allocation3 + $0x88] sm:$0xf] %vm1282, 0
        %1319 = vst.msk [vmem:[#allocation3 + $0x8c] sm:$0x1] %vm1284, 0
        %1320 = vst.msk [vmem:[#allocation3 + $0x90] sm:$0xf] %vm1282, 0
        %1321 = vst.msk [vmem:[#allocation3 + $0x94] sm:$0x1] %vm1284, 0
        %1322 = vst.msk [vmem:[#allocation3 + $0x98] sm:$0xf] %vm1282, 0
        %1323 = vst.msk [vmem:[#allocation3 + $0x9c] sm:$0x1] %vm1284, 0
        %v1324 = vpack.c.bf16 %v1266, %v1266
        %v1325 = vpack.c.bf16 %v1267, %v1267
        %v1326 = vpack.c.bf16 %v1268, %v1268
        %v1327 = vpack.c.bf16 %v1269, %v1269
        %v1328 = vpack.c.bf16 %v1270, %v1270
        %v1329 = vpack.c.bf16 %v1271, %v1271
        %v1330 = vpack.c.bf16 %v1272, %v1272
        %v1331 = vpack.c.bf16 %v1273, %v1273
        %v1332 = vpack.c.bf16 %v1274, %v1274
        %v1333 = vpack.c.bf16 %v1275, %v1275
        %v1334 = vpack.c.bf16 %v1276, %v1276
        %v1335 = vpack.c.bf16 %v1277, %v1277
        %v1336 = vpack.c.bf16 %v1278, %v1278
        %v1337 = vpack.c.bf16 %v1279, %v1279
        %v1338 = vpack.c.bf16 %v1280, %v1280
        %v1339 = vpack.c.bf16 %v1281, %v1281
        %v1356 = vunpack.c.l.b16 %v1324
        %v1357 = vunpack.c.l.b16 %v1325
        %v1358 = vunpack.c.l.b16 %v1326
        %v1359 = vunpack.c.l.b16 %v1327
        %v1360 = vunpack.c.l.b16 %v1328
        %v1361 = vunpack.c.l.b16 %v1329
        %v1362 = vunpack.c.l.b16 %v1330
        %v1363 = vunpack.c.l.b16 %v1331
        %v1364 = vunpack.c.l.b16 %v1332
        %v1365 = vunpack.c.l.b16 %v1333
        %v1366 = vunpack.c.l.b16 %v1334
        %v1367 = vunpack.c.l.b16 %v1335
        %v1368 = vunpack.c.l.b16 %v1336
        %v1369 = vunpack.c.l.b16 %v1337
        %v1370 = vunpack.c.l.b16 %v1338
        %v1371 = vunpack.c.l.b16 %v1339
        %v1372 = vpack.c.b16 %v1356, %v1356
        %v1373 = vpack.c.b16 %v1357, %v1357
        %v1374 = vpack.c.b16 %v1358, %v1358
        %v1375 = vpack.c.b16 %v1359, %v1359
        %v1376 = vpack.c.b16 %v1360, %v1360
        %v1377 = vpack.c.b16 %v1361, %v1361
        %v1378 = vpack.c.b16 %v1362, %v1362
        %v1379 = vpack.c.b16 %v1363, %v1363
        %v1380 = vpack.c.b16 %v1364, %v1364
        %v1381 = vpack.c.b16 %v1365, %v1365
        %v1382 = vpack.c.b16 %v1366, %v1366
        %v1383 = vpack.c.b16 %v1367, %v1367
        %v1384 = vpack.c.b16 %v1368, %v1368
        %v1385 = vpack.c.b16 %v1369, %v1369
        %v1386 = vpack.c.b16 %v1370, %v1370
        %v1387 = vpack.c.b16 %v1371, %v1371
        %v1389 = vshrl.u32 %v1372, 16
        %v1391 = vrot.slane %v1389, 7
        %v1392 = vshll.u32 %v1372, 16
        %v1394 = vor.u32 %v1391, %v1392
        %v1395 = vrot.slane %v1391, 4
        %v1397 = vshrl.u32 %v1373, 16
        %v1399 = vrot.slane %v1397, 7
        %v1400 = vshll.u32 %v1373, 16
        %v1402 = vor.u32 %v1399, %v1400
        %v1403 = vrot.slane %v1399, 4
        %v1405 = vshrl.u32 %v1374, 16
        %v1407 = vrot.slane %v1405, 7
        %v1408 = vshll.u32 %v1374, 16
        %v1410 = vor.u32 %v1407, %v1408
        %v1411 = vrot.slane %v1407, 4
        %v1413 = vshrl.u32 %v1375, 16
        %v1415 = vrot.slane %v1413, 7
        %v1416 = vshll.u32 %v1375, 16
        %v1418 = vor.u32 %v1415, %v1416
        %v1419 = vrot.slane %v1415, 4
        %v1421 = vshrl.u32 %v1376, 16
        %v1423 = vrot.slane %v1421, 7
        %v1424 = vshll.u32 %v1376, 16
        %v1426 = vor.u32 %v1423, %v1424
        %v1427 = vrot.slane %v1423, 4
        %v1429 = vshrl.u32 %v1377, 16
        %v1431 = vrot.slane %v1429, 7
        %v1432 = vshll.u32 %v1377, 16
        %v1434 = vor.u32 %v1431, %v1432
        %v1435 = vrot.slane %v1431, 4
        %v1437 = vshrl.u32 %v1378, 16
        %v1439 = vrot.slane %v1437, 7
        %v1440 = vshll.u32 %v1378, 16
        %v1442 = vor.u32 %v1439, %v1440
        %v1443 = vrot.slane %v1439, 4
        %v1445 = vshrl.u32 %v1379, 16
        %v1447 = vrot.slane %v1445, 7
        %v1448 = vshll.u32 %v1379, 16
        %v1450 = vor.u32 %v1447, %v1448
        %v1451 = vrot.slane %v1447, 4
        %v1453 = vshrl.u32 %v1380, 16
        %v1455 = vrot.slane %v1453, 7
        %v1456 = vshll.u32 %v1380, 16
        %v1458 = vor.u32 %v1455, %v1456
        %v1459 = vrot.slane %v1455, 4
        %v1461 = vshrl.u32 %v1381, 16
        %v1463 = vrot.slane %v1461, 7
        %v1464 = vshll.u32 %v1381, 16
        %v1466 = vor.u32 %v1463, %v1464
        %v1467 = vrot.slane %v1463, 4
        %v1469 = vshrl.u32 %v1382, 16
        %v1471 = vrot.slane %v1469, 7
        %v1472 = vshll.u32 %v1382, 16
        %v1474 = vor.u32 %v1471, %v1472
        %v1475 = vrot.slane %v1471, 4
        %v1477 = vshrl.u32 %v1383, 16
        %v1479 = vrot.slane %v1477, 7
        %v1480 = vshll.u32 %v1383, 16
        %v1482 = vor.u32 %v1479, %v1480
        %v1483 = vrot.slane %v1479, 4
        %v1485 = vshrl.u32 %v1384, 16
        %v1487 = vrot.slane %v1485, 7
        %v1488 = vshll.u32 %v1384, 16
        %v1490 = vor.u32 %v1487, %v1488
        %v1491 = vrot.slane %v1487, 4
        %v1493 = vshrl.u32 %v1385, 16
        %v1495 = vrot.slane %v1493, 7
        %v1496 = vshll.u32 %v1385, 16
        %v1498 = vor.u32 %v1495, %v1496
        %v1499 = vrot.slane %v1495, 4
        %v1501 = vshrl.u32 %v1386, 16
        %v1503 = vrot.slane %v1501, 7
        %v1504 = vshll.u32 %v1386, 16
        %v1506 = vor.u32 %v1503, %v1504
        %v1507 = vrot.slane %v1503, 4
        %v1509 = vshrl.u32 %v1387, 16
        %v1511 = vrot.slane %v1509, 7
        %v1512 = vshll.u32 %v1387, 16
        %v1514 = vor.u32 %v1511, %v1512
        %v1515 = vrot.slane %v1511, 4
        %s1548 = scalar_lea.vmem [#allocation3], 8
        %vm1549 = vcmask 257024
        %vm1550 = vsmask.f32 7938
        %vm1551 = vmand %vm1549, %vm1550
        %v1552 = vld [vmem:[%s1548] sm:$0xf]
        %v1553 = vsel %vm1551, %v1394, %v1552
        %1554 = vst [vmem:[%s1548] sm:$0xf] %v1553
        %vm1555 = vcmask 253952
        %vm1556 = vsmask.f32 256
        %vm1557 = vmand %vm1555, %vm1556
        %v1558 = vld [vmem:[%s1548 + $0x4] sm:$0x1]
        %v1559 = vsel %vm1557, %v1395, %v1558
        %1560 = vst [vmem:[%s1548 + $0x4] sm:$0x1] %v1559
        %v1561 = vld [vmem:[%s1548 + $0x8] sm:$0xf]
        %v1562 = vsel %vm1551, %v1402, %v1561
        %1563 = vst [vmem:[%s1548 + $0x8] sm:$0xf] %v1562
        %v1564 = vld [vmem:[%s1548 + $0xc] sm:$0x1]
        %v1565 = vsel %vm1557, %v1403, %v1564
        %1566 = vst [vmem:[%s1548 + $0xc] sm:$0x1] %v1565
        %v1567 = vld [vmem:[%s1548 + $0x10] sm:$0xf]
        %v1568 = vsel %vm1551, %v1410, %v1567
        %1569 = vst [vmem:[%s1548 + $0x10] sm:$0xf] %v1568
        %v1570 = vld [vmem:[%s1548 + $0x14] sm:$0x1]
        %v1571 = vsel %vm1557, %v1411, %v1570
        %1572 = vst [vmem:[%s1548 + $0x14] sm:$0x1] %v1571
        %v1573 = vld [vmem:[%s1548 + $0x18] sm:$0xf]
        %v1574 = vsel %vm1551, %v1418, %v1573
        %1575 = vst [vmem:[%s1548 + $0x18] sm:$0xf] %v1574
        %v1576 = vld [vmem:[%s1548 + $0x1c] sm:$0x1]
        %v1577 = vsel %vm1557, %v1419, %v1576
        %1578 = vst [vmem:[%s1548 + $0x1c] sm:$0x1] %v1577
        %v1579 = vld [vmem:[%s1548 + $0x20] sm:$0xf]
        %v1580 = vsel %vm1551, %v1426, %v1579
        %1581 = vst [vmem:[%s1548 + $0x20] sm:$0xf] %v1580
        %v1582 = vld [vmem:[%s1548 + $0x24] sm:$0x1]
        %v1583 = vsel %vm1557, %v1427, %v1582
        %1584 = vst [vmem:[%s1548 + $0x24] sm:$0x1] %v1583
        %v1585 = vld [vmem:[%s1548 + $0x28] sm:$0xf]
        %v1586 = vsel %vm1551, %v1434, %v1585
        %1587 = vst [vmem:[%s1548 + $0x28] sm:$0xf] %v1586
        %v1588 = vld [vmem:[%s1548 + $0x2c] sm:$0x1]
        %v1589 = vsel %vm1557, %v1435, %v1588
        %1590 = vst [vmem:[%s1548 + $0x2c] sm:$0x1] %v1589
        %v1591 = vld [vmem:[%s1548 + $0x30] sm:$0xf]
        %v1592 = vsel %vm1551, %v1442, %v1591
        %1593 = vst [vmem:[%s1548 + $0x30] sm:$0xf] %v1592
        %v1594 = vld [vmem:[%s1548 + $0x34] sm:$0x1]
        %v1595 = vsel %vm1557, %v1443, %v1594
        %1596 = vst [vmem:[%s1548 + $0x34] sm:$0x1] %v1595
        %v1597 = vld [vmem:[%s1548 + $0x38] sm:$0xf]
        %v1598 = vsel %vm1551, %v1450, %v1597
        %1599 = vst [vmem:[%s1548 + $0x38] sm:$0xf] %v1598
        %v1600 = vld [vmem:[%s1548 + $0x3c] sm:$0x1]
        %v1601 = vsel %vm1557, %v1451, %v1600
        %1602 = vst [vmem:[%s1548 + $0x3c] sm:$0x1] %v1601
        %v1603 = vld [vmem:[%s1548 + $0x50] sm:$0xf]
        %v1604 = vsel %vm1551, %v1458, %v1603
        %1605 = vst [vmem:[%s1548 + $0x50] sm:$0xf] %v1604
        %v1606 = vld [vmem:[%s1548 + $0x54] sm:$0x1]
        %v1607 = vsel %vm1557, %v1459, %v1606
        %1608 = vst [vmem:[%s1548 + $0x54] sm:$0x1] %v1607
        %v1609 = vld [vmem:[%s1548 + $0x58] sm:$0xf]
        %v1610 = vsel %vm1551, %v1466, %v1609
        %1611 = vst [vmem:[%s1548 + $0x58] sm:$0xf] %v1610
        %v1612 = vld [vmem:[%s1548 + $0x5c] sm:$0x1]
        %v1613 = vsel %vm1557, %v1467, %v1612
        %1614 = vst [vmem:[%s1548 + $0x5c] sm:$0x1] %v1613
        %v1615 = vld [vmem:[%s1548 + $0x60] sm:$0xf]
        %v1616 = vsel %vm1551, %v1474, %v1615
        %1617 = vst [vmem:[%s1548 + $0x60] sm:$0xf] %v1616
        %v1618 = vld [vmem:[%s1548 + $0x64] sm:$0x1]
        %v1619 = vsel %vm1557, %v1475, %v1618
        %1620 = vst [vmem:[%s1548 + $0x64] sm:$0x1] %v1619
        %v1621 = vld [vmem:[%s1548 + $0x68] sm:$0xf]
        %v1622 = vsel %vm1551, %v1482, %v1621
        %1623 = vst [vmem:[%s1548 + $0x68] sm:$0xf] %v1622
        %v1624 = vld [vmem:[%s1548 + $0x6c] sm:$0x1]
        %v1625 = vsel %vm1557, %v1483, %v1624
        %1626 = vst [vmem:[%s1548 + $0x6c] sm:$0x1] %v1625
        %v1627 = vld [vmem:[%s1548 + $0x70] sm:$0xf]
        %v1628 = vsel %vm1551, %v1490, %v1627
        %1629 = vst [vmem:[%s1548 + $0x70] sm:$0xf] %v1628
        %v1630 = vld [vmem:[%s1548 + $0x74] sm:$0x1]
        %v1631 = vsel %vm1557, %v1491, %v1630
        %1632 = vst [vmem:[%s1548 + $0x74] sm:$0x1] %v1631
        %v1633 = vld [vmem:[%s1548 + $0x78] sm:$0xf]
        %v1634 = vsel %vm1551, %v1498, %v1633
        %1635 = vst [vmem:[%s1548 + $0x78] sm:$0xf] %v1634
        %v1636 = vld [vmem:[%s1548 + $0x7c] sm:$0x1]
        %v1637 = vsel %vm1557, %v1499, %v1636
        %1638 = vst [vmem:[%s1548 + $0x7c] sm:$0x1] %v1637
        %v1639 = vld [vmem:[%s1548 + $0x80] sm:$0xf]
        %v1640 = vsel %vm1551, %v1506, %v1639
        %1641 = vst [vmem:[%s1548 + $0x80] sm:$0xf] %v1640
        %v1642 = vld [vmem:[%s1548 + $0x84] sm:$0x1]
        %v1643 = vsel %vm1557, %v1507, %v1642
        %1644 = vst [vmem:[%s1548 + $0x84] sm:$0x1] %v1643
        %v1645 = vld [vmem:[%s1548 + $0x88] sm:$0xf]
        %v1646 = vsel %vm1551, %v1514, %v1645
        %1647 = vst [vmem:[%s1548 + $0x88] sm:$0xf] %v1646
        %v1648 = vld [vmem:[%s1548 + $0x8c] sm:$0x1]
        %v1649 = vsel %vm1557, %v1515, %v1648
        %1650 = vst [vmem:[%s1548 + $0x8c] sm:$0x1] %v1649
        %v1651 = vld [vmem:[#allocation3] sm:$0xf]
        %v1652 = vld [vmem:[#allocation3 + $0x8] sm:$0xf]
        %v1653 = vld [vmem:[#allocation3 + $0x10] sm:$0xf]
        %v1654 = vld [vmem:[#allocation3 + $0x18] sm:$0xf]
        %v1655 = vld [vmem:[#allocation3 + $0x20] sm:$0xf]
        %v1656 = vld [vmem:[#allocation3 + $0x28] sm:$0xf]
        %v1657 = vld [vmem:[#allocation3 + $0x30] sm:$0xf]
        %v1658 = vld [vmem:[#allocation3 + $0x38] sm:$0xf]
        %v1659 = vld [vmem:[#allocation3 + $0x50] sm:$0xf]
        %v1660 = vld [vmem:[#allocation3 + $0x58] sm:$0xf]
        %v1661 = vld [vmem:[#allocation3 + $0x60] sm:$0xf]
        %v1662 = vld [vmem:[#allocation3 + $0x68] sm:$0xf]
        %v1663 = vld [vmem:[#allocation3 + $0x70] sm:$0xf]
        %v1664 = vld [vmem:[#allocation3 + $0x78] sm:$0xf]
        %v1665 = vld [vmem:[#allocation3 + $0x80] sm:$0xf]
        %v1666 = vld [vmem:[#allocation3 + $0x88] sm:$0xf]
        %v1667 = vld [vmem:[#allocation3 + $0x4] sm:$0x1]
        %v1668 = vld [vmem:[#allocation3 + $0xc] sm:$0x1]
        %v1669 = vld [vmem:[#allocation3 + $0x14] sm:$0x1]
        %v1670 = vld [vmem:[#allocation3 + $0x1c] sm:$0x1]
        %v1671 = vld [vmem:[#allocation3 + $0x24] sm:$0x1]
        %v1672 = vld [vmem:[#allocation3 + $0x2c] sm:$0x1]
        %v1673 = vld [vmem:[#allocation3 + $0x34] sm:$0x1]
        %v1674 = vld [vmem:[#allocation3 + $0x3c] sm:$0x1]
        %v1675 = vld [vmem:[#allocation3 + $0x54] sm:$0x1]
        %v1676 = vld [vmem:[#allocation3 + $0x5c] sm:$0x1]
        %v1677 = vld [vmem:[#allocation3 + $0x64] sm:$0x1]
        %v1678 = vld [vmem:[#allocation3 + $0x6c] sm:$0x1]
        %v1679 = vld [vmem:[#allocation3 + $0x74] sm:$0x1]
        %v1680 = vld [vmem:[#allocation3 + $0x7c] sm:$0x1]
        %v1681 = vld [vmem:[#allocation3 + $0x84] sm:$0x1]
        %v1682 = vld [vmem:[#allocation3 + $0x8c] sm:$0x1]
        %v1683 = vld [vmem:[#allocation3] sm:$0xe]
        %v1684 = vld [vmem:[#allocation3 + $0x8] sm:$0xe]
        %v1685 = vld [vmem:[#allocation3 + $0x10] sm:$0xe]
        %v1686 = vld [vmem:[#allocation3 + $0x18] sm:$0xe]
        %v1687 = vld [vmem:[#allocation3 + $0x20] sm:$0xe]
        %v1688 = vld [vmem:[#allocation3 + $0x28] sm:$0xe]
        %v1689 = vld [vmem:[#allocation3 + $0x30] sm:$0xe]
        %v1690 = vld [vmem:[#allocation3 + $0x38] sm:$0xe]
        %v1691 = vld [vmem:[#allocation3 + $0x50] sm:$0xe]
        %v1692 = vld [vmem:[#allocation3 + $0x58] sm:$0xe]
        %v1693 = vld [vmem:[#allocation3 + $0x60] sm:$0xe]
        %v1694 = vld [vmem:[#allocation3 + $0x68] sm:$0xe]
        %v1695 = vld [vmem:[#allocation3 + $0x70] sm:$0xe]
        %v1696 = vld [vmem:[#allocation3 + $0x78] sm:$0xe]
        %v1697 = vld [vmem:[#allocation3 + $0x80] sm:$0xe]
        %v1698 = vld [vmem:[#allocation3 + $0x88] sm:$0xe]
        %v1699 = vld [vmem:[%s1548] sm:$0xf]
        %v1700 = vld [vmem:[%s1548 + $0x8] sm:$0xf]
        %v1701 = vld [vmem:[%s1548 + $0x10] sm:$0xf]
        %v1702 = vld [vmem:[%s1548 + $0x18] sm:$0xf]
        %v1703 = vld [vmem:[%s1548 + $0x20] sm:$0xf]
        %v1704 = vld [vmem:[%s1548 + $0x28] sm:$0xf]
        %v1705 = vld [vmem:[%s1548 + $0x30] sm:$0xf]
        %v1706 = vld [vmem:[%s1548 + $0x38] sm:$0xf]
        %v1707 = vld [vmem:[%s1548 + $0x50] sm:$0xf]
        %v1708 = vld [vmem:[%s1548 + $0x58] sm:$0xf]
        %v1709 = vld [vmem:[%s1548 + $0x60] sm:$0xf]
        %v1710 = vld [vmem:[%s1548 + $0x68] sm:$0xf]
        %v1711 = vld [vmem:[%s1548 + $0x70] sm:$0xf]
        %v1712 = vld [vmem:[%s1548 + $0x78] sm:$0xf]
        %v1713 = vld [vmem:[%s1548 + $0x80] sm:$0xf]
        %v1714 = vld [vmem:[%s1548 + $0x88] sm:$0xf]
        %v1715 = vld [vmem:[%s1548 + $0x4] sm:$0x1]
        %v1716 = vld [vmem:[%s1548 + $0xc] sm:$0x1]
        %v1717 = vld [vmem:[%s1548 + $0x14] sm:$0x1]
        %v1718 = vld [vmem:[%s1548 + $0x1c] sm:$0x1]
        %v1719 = vld [vmem:[%s1548 + $0x24] sm:$0x1]
        %v1720 = vld [vmem:[%s1548 + $0x2c] sm:$0x1]
        %v1721 = vld [vmem:[%s1548 + $0x34] sm:$0x1]
        %v1722 = vld [vmem:[%s1548 + $0x3c] sm:$0x1]
        %v1723 = vld [vmem:[%s1548 + $0x54] sm:$0x1]
        %v1724 = vld [vmem:[%s1548 + $0x5c] sm:$0x1]
        %v1725 = vld [vmem:[%s1548 + $0x64] sm:$0x1]
        %v1726 = vld [vmem:[%s1548 + $0x6c] sm:$0x1]
        %v1727 = vld [vmem:[%s1548 + $0x74] sm:$0x1]
        %v1728 = vld [vmem:[%s1548 + $0x7c] sm:$0x1]
        %v1729 = vld [vmem:[%s1548 + $0x84] sm:$0x1]
        %v1730 = vld [vmem:[%s1548 + $0x8c] sm:$0x1]
        %v1731 = vld [vmem:[%s1548] sm:$0xe]
        %v1732 = vld [vmem:[%s1548 + $0x8] sm:$0xe]
        %v1733 = vld [vmem:[%s1548 + $0x10] sm:$0xe]
        %v1734 = vld [vmem:[%s1548 + $0x18] sm:$0xe]
        %v1735 = vld [vmem:[%s1548 + $0x20] sm:$0xe]
        %v1736 = vld [vmem:[%s1548 + $0x28] sm:$0xe]
        %v1737 = vld [vmem:[%s1548 + $0x30] sm:$0xe]
        %v1738 = vld [vmem:[%s1548 + $0x38] sm:$0xe]
        %v1739 = vld [vmem:[%s1548 + $0x50] sm:$0xe]
        %v1740 = vld [vmem:[%s1548 + $0x58] sm:$0xe]
        %v1741 = vld [vmem:[%s1548 + $0x60] sm:$0xe]
        %v1742 = vld [vmem:[%s1548 + $0x68] sm:$0xe]
        %v1743 = vld [vmem:[%s1548 + $0x70] sm:$0xe]
        %v1744 = vld [vmem:[%s1548 + $0x78] sm:$0xe]
        %v1745 = vld [vmem:[%s1548 + $0x80] sm:$0xe]
        %v1746 = vld [vmem:[%s1548 + $0x88] sm:$0xe]
        %s1747 = scalar_lea.vmem [#allocation3], 16
        %v1748 = vld [vmem:[%s1747] sm:$0xf]
        %v1749 = vld [vmem:[%s1747 + $0x8] sm:$0xf]
        %v1750 = vld [vmem:[%s1747 + $0x10] sm:$0xf]
        %v1751 = vld [vmem:[%s1747 + $0x18] sm:$0xf]
        %v1752 = vld [vmem:[%s1747 + $0x20] sm:$0xf]
        %v1753 = vld [vmem:[%s1747 + $0x28] sm:$0xf]
        %v1754 = vld [vmem:[%s1747 + $0x30] sm:$0xf]
        %v1755 = vld [vmem:[%s1747 + $0x38] sm:$0xf]
        %v1756 = vld [vmem:[%s1747 + $0x50] sm:$0xf]
        %v1757 = vld [vmem:[%s1747 + $0x58] sm:$0xf]
        %v1758 = vld [vmem:[%s1747 + $0x60] sm:$0xf]
        %v1759 = vld [vmem:[%s1747 + $0x68] sm:$0xf]
        %v1760 = vld [vmem:[%s1747 + $0x70] sm:$0xf]
        %v1761 = vld [vmem:[%s1747 + $0x78] sm:$0xf]
        %v1762 = vld [vmem:[%s1747 + $0x80] sm:$0xf]
        %v1763 = vld [vmem:[%s1747 + $0x88] sm:$0xf]
        %v1764 = vld [vmem:[%s1747 + $0x4] sm:$0x1]
        %v1765 = vld [vmem:[%s1747 + $0xc] sm:$0x1]
        %v1766 = vld [vmem:[%s1747 + $0x14] sm:$0x1]
        %v1767 = vld [vmem:[%s1747 + $0x1c] sm:$0x1]
        %v1768 = vld [vmem:[%s1747 + $0x24] sm:$0x1]
        %v1769 = vld [vmem:[%s1747 + $0x2c] sm:$0x1]
        %v1770 = vld [vmem:[%s1747 + $0x34] sm:$0x1]
        %v1771 = vld [vmem:[%s1747 + $0x3c] sm:$0x1]
        %v1772 = vld [vmem:[%s1747 + $0x54] sm:$0x1]
        %v1773 = vld [vmem:[%s1747 + $0x5c] sm:$0x1]
        %v1774 = vld [vmem:[%s1747 + $0x64] sm:$0x1]
        %v1775 = vld [vmem:[%s1747 + $0x6c] sm:$0x1]
        %v1776 = vld [vmem:[%s1747 + $0x74] sm:$0x1]
        %v1777 = vld [vmem:[%s1747 + $0x7c] sm:$0x1]
        %v1778 = vld [vmem:[%s1747 + $0x84] sm:$0x1]
        %v1779 = vld [vmem:[%s1747 + $0x8c] sm:$0x1]
        %v1780 = vld [vmem:[%s1747] sm:$0xe]
        %v1781 = vld [vmem:[%s1747 + $0x8] sm:$0xe]
        %v1782 = vld [vmem:[%s1747 + $0x10] sm:$0xe]
        %v1783 = vld [vmem:[%s1747 + $0x18] sm:$0xe]
        %v1784 = vld [vmem:[%s1747 + $0x20] sm:$0xe]
        %v1785 = vld [vmem:[%s1747 + $0x28] sm:$0xe]
        %v1786 = vld [vmem:[%s1747 + $0x30] sm:$0xe]
        %v1787 = vld [vmem:[%s1747 + $0x38] sm:$0xe]
        %v1788 = vld [vmem:[%s1747 + $0x50] sm:$0xe]
        %v1789 = vld [vmem:[%s1747 + $0x58] sm:$0xe]
        %v1790 = vld [vmem:[%s1747 + $0x60] sm:$0xe]
        %v1791 = vld [vmem:[%s1747 + $0x68] sm:$0xe]
        %v1792 = vld [vmem:[%s1747 + $0x70] sm:$0xe]
        %v1793 = vld [vmem:[%s1747 + $0x78] sm:$0xe]
        %v1794 = vld [vmem:[%s1747 + $0x80] sm:$0xe]
        %v1795 = vld [vmem:[%s1747 + $0x88] sm:$0xe]
        %v1828 = vunpack.c.l.b16 %v1651
        %v1829 = vunpack.c.l.b16 %v1667
        %v1830 = vunpack.c.l.b16 %v1652
        %v1831 = vunpack.c.l.b16 %v1668
        %v1832 = vunpack.c.l.b16 %v1653
        %v1833 = vunpack.c.l.b16 %v1669
        %v1834 = vunpack.c.l.b16 %v1654
        %v1835 = vunpack.c.l.b16 %v1670
        %v1836 = vunpack.c.l.b16 %v1655
        %v1837 = vunpack.c.l.b16 %v1671
        %v1838 = vunpack.c.l.b16 %v1656
        %v1839 = vunpack.c.l.b16 %v1672
        %v1840 = vunpack.c.l.b16 %v1657
        %v1841 = vunpack.c.l.b16 %v1673
        %v1842 = vunpack.c.l.b16 %v1658
        %v1843 = vunpack.c.l.b16 %v1674
        %v1844 = vunpack.c.l.b16 %v1659
        %v1845 = vunpack.c.l.b16 %v1675
        %v1846 = vunpack.c.l.b16 %v1660
        %v1847 = vunpack.c.l.b16 %v1676
        %v1848 = vunpack.c.l.b16 %v1661
        %v1849 = vunpack.c.l.b16 %v1677
        %v1850 = vunpack.c.l.b16 %v1662
        %v1851 = vunpack.c.l.b16 %v1678
        %v1852 = vunpack.c.l.b16 %v1663
        %v1853 = vunpack.c.l.b16 %v1679
        %v1854 = vunpack.c.l.b16 %v1664
        %v1855 = vunpack.c.l.b16 %v1680
        %v1856 = vunpack.c.l.b16 %v1665
        %v1857 = vunpack.c.l.b16 %v1681
        %v1858 = vunpack.c.l.b16 %v1666
        %v1859 = vunpack.c.l.b16 %v1682
        %v1860 = vpack.c.b16 %v1829, %v1828
        %v1861 = vpack.c.b16 %v1831, %v1830
        %v1862 = vpack.c.b16 %v1833, %v1832
        %v1863 = vpack.c.b16 %v1835, %v1834
        %v1864 = vpack.c.b16 %v1837, %v1836
        %v1865 = vpack.c.b16 %v1839, %v1838
        %v1866 = vpack.c.b16 %v1841, %v1840
        %v1867 = vpack.c.b16 %v1843, %v1842
        %v1868 = vpack.c.b16 %v1845, %v1844
        %v1869 = vpack.c.b16 %v1847, %v1846
        %v1870 = vpack.c.b16 %v1849, %v1848
        %v1871 = vpack.c.b16 %v1851, %v1850
        %v1872 = vpack.c.b16 %v1853, %v1852
        %v1873 = vpack.c.b16 %v1855, %v1854
        %v1874 = vpack.c.b16 %v1857, %v1856
        %v1875 = vpack.c.b16 %v1859, %v1858
        %v1877 = vshrl.u32 %v1860, 16
        %v1879 = vshll.u32 %v1860, 16
        %v1881 = vrot.slane %v1879, 1
        %v1882 = vor.u32 %v1877, %v1881
        %v1884 = vshrl.u32 %v1861, 16
        %v1886 = vshll.u32 %v1861, 16
        %v1888 = vrot.slane %v1886, 1
        %v1889 = vor.u32 %v1884, %v1888
        %v1891 = vshrl.u32 %v1862, 16
        %v1893 = vshll.u32 %v1862, 16
        %v1895 = vrot.slane %v1893, 1
        %v1896 = vor.u32 %v1891, %v1895
        %v1898 = vshrl.u32 %v1863, 16
        %v1900 = vshll.u32 %v1863, 16
        %v1902 = vrot.slane %v1900, 1
        %v1903 = vor.u32 %v1898, %v1902
        %v1905 = vshrl.u32 %v1864, 16
        %v1907 = vshll.u32 %v1864, 16
        %v1909 = vrot.slane %v1907, 1
        %v1910 = vor.u32 %v1905, %v1909
        %v1912 = vshrl.u32 %v1865, 16
        %v1914 = vshll.u32 %v1865, 16
        %v1916 = vrot.slane %v1914, 1
        %v1917 = vor.u32 %v1912, %v1916
        %v1919 = vshrl.u32 %v1866, 16
        %v1921 = vshll.u32 %v1866, 16
        %v1923 = vrot.slane %v1921, 1
        %v1924 = vor.u32 %v1919, %v1923
        %v1926 = vshrl.u32 %v1867, 16
        %v1928 = vshll.u32 %v1867, 16
        %v1930 = vrot.slane %v1928, 1
        %v1931 = vor.u32 %v1926, %v1930
        %v1933 = vshrl.u32 %v1868, 16
        %v1935 = vshll.u32 %v1868, 16
        %v1937 = vrot.slane %v1935, 1
        %v1938 = vor.u32 %v1933, %v1937
        %v1940 = vshrl.u32 %v1869, 16
        %v1942 = vshll.u32 %v1869, 16
        %v1944 = vrot.slane %v1942, 1
        %v1945 = vor.u32 %v1940, %v1944
        %v1947 = vshrl.u32 %v1870, 16
        %v1949 = vshll.u32 %v1870, 16
        %v1951 = vrot.slane %v1949, 1
        %v1952 = vor.u32 %v1947, %v1951
        %v1954 = vshrl.u32 %v1871, 16
        %v1956 = vshll.u32 %v1871, 16
        %v1958 = vrot.slane %v1956, 1
        %v1959 = vor.u32 %v1954, %v1958
        %v1961 = vshrl.u32 %v1872, 16
        %v1963 = vshll.u32 %v1872, 16
        %v1965 = vrot.slane %v1963, 1
        %v1966 = vor.u32 %v1961, %v1965
        %v1968 = vshrl.u32 %v1873, 16
        %v1970 = vshll.u32 %v1873, 16
        %v1972 = vrot.slane %v1970, 1
        %v1973 = vor.u32 %v1968, %v1972
        %v1975 = vshrl.u32 %v1874, 16
        %v1977 = vshll.u32 %v1874, 16
        %v1979 = vrot.slane %v1977, 1
        %v1980 = vor.u32 %v1975, %v1979
        %v1982 = vshrl.u32 %v1875, 16
        %v1984 = vshll.u32 %v1875, 16
        %v1986 = vrot.slane %v1984, 1
        %v1987 = vor.u32 %v1982, %v1986
        %1988 = vrot.lane.b32.xlu0 %v1882, 32
        %v1989 = vpop.permute.xlu0 %1988
        %1990 = vrot.lane.b32.xlu0 %v1889, 32
        %v1991 = vpop.permute.xlu0 %1990
        %1992 = vrot.lane.b32.xlu0 %v1896, 32
        %v1993 = vpop.permute.xlu0 %1992
        %1994 = vrot.lane.b32.xlu0 %v1903, 32
        %v1995 = vpop.permute.xlu0 %1994
        %1996 = vrot.lane.b32.xlu0 %v1910, 32
        %v1997 = vpop.permute.xlu0 %1996
        %1998 = vrot.lane.b32.xlu0 %v1917, 32
        %v1999 = vpop.permute.xlu0 %1998
        %2000 = vrot.lane.b32.xlu0 %v1924, 32
        %v2001 = vpop.permute.xlu0 %2000
        %2002 = vrot.lane.b32.xlu0 %v1931, 32
        %v2003 = vpop.permute.xlu0 %2002
        %2004 = vrot.lane.b32.xlu0 %v1938, 32
        %v2005 = vpop.permute.xlu0 %2004
        %2006 = vrot.lane.b32.xlu0 %v1945, 32
        %v2007 = vpop.permute.xlu0 %2006
        %2008 = vrot.lane.b32.xlu0 %v1952, 32
        %v2009 = vpop.permute.xlu0 %2008
        %2010 = vrot.lane.b32.xlu0 %v1959, 32
        %v2011 = vpop.permute.xlu0 %2010
        %2012 = vrot.lane.b32.xlu0 %v1966, 32
        %v2013 = vpop.permute.xlu0 %2012
        %2014 = vrot.lane.b32.xlu0 %v1973, 32
        %v2015 = vpop.permute.xlu0 %2014
        %2016 = vrot.lane.b32.xlu0 %v1980, 32
        %v2017 = vpop.permute.xlu0 %2016
        %2018 = vrot.lane.b32.xlu0 %v1987, 32
        %v2019 = vpop.permute.xlu0 %2018
        %v2036 = vunpack.c.l.b16 %v1683
        %v2037 = vunpack.c.l.b16 %v1684
        %v2038 = vunpack.c.l.b16 %v1685
        %v2039 = vunpack.c.l.b16 %v1686
        %v2040 = vunpack.c.l.b16 %v1687
        %v2041 = vunpack.c.l.b16 %v1688
        %v2042 = vunpack.c.l.b16 %v1689
        %v2043 = vunpack.c.l.b16 %v1690
        %v2044 = vunpack.c.l.b16 %v1691
        %v2045 = vunpack.c.l.b16 %v1692
        %v2046 = vunpack.c.l.b16 %v1693
        %v2047 = vunpack.c.l.b16 %v1694
        %v2048 = vunpack.c.l.b16 %v1695
        %v2049 = vunpack.c.l.b16 %v1696
        %v2050 = vunpack.c.l.b16 %v1697
        %v2051 = vunpack.c.l.b16 %v1698
        %v2052 = vpack.c.b16 %v1829, %v2036
        %v2053 = vpack.c.b16 %v1831, %v2037
        %v2054 = vpack.c.b16 %v1833, %v2038
        %v2055 = vpack.c.b16 %v1835, %v2039
        %v2056 = vpack.c.b16 %v1837, %v2040
        %v2057 = vpack.c.b16 %v1839, %v2041
        %v2058 = vpack.c.b16 %v1841, %v2042
        %v2059 = vpack.c.b16 %v1843, %v2043
        %v2060 = vpack.c.b16 %v1845, %v2044
        %v2061 = vpack.c.b16 %v1847, %v2045
        %v2062 = vpack.c.b16 %v1849, %v2046
        %v2063 = vpack.c.b16 %v1851, %v2047
        %v2064 = vpack.c.b16 %v1853, %v2048
        %v2065 = vpack.c.b16 %v1855, %v2049
        %v2066 = vpack.c.b16 %v1857, %v2050
        %v2067 = vpack.c.b16 %v1859, %v2051
        %v2068 = vrot.slane %v2052, 1
        %v2069 = vrot.slane %v2053, 1
        %v2070 = vrot.slane %v2054, 1
        %v2071 = vrot.slane %v2055, 1
        %v2072 = vrot.slane %v2056, 1
        %v2073 = vrot.slane %v2057, 1
        %v2074 = vrot.slane %v2058, 1
        %v2075 = vrot.slane %v2059, 1
        %v2076 = vrot.slane %v2060, 1
        %v2077 = vrot.slane %v2061, 1
        %v2078 = vrot.slane %v2062, 1
        %v2079 = vrot.slane %v2063, 1
        %v2080 = vrot.slane %v2064, 1
        %v2081 = vrot.slane %v2065, 1
        %v2082 = vrot.slane %v2066, 1
        %v2083 = vrot.slane %v2067, 1
        %2084 = vrot.lane.b32.xlu0 %v2068, 64
        %v2085 = vpop.permute.xlu0 %2084
        %2086 = vrot.lane.b32.xlu0 %v2069, 64
        %v2087 = vpop.permute.xlu0 %2086
        %2088 = vrot.lane.b32.xlu0 %v2070, 64
        %v2089 = vpop.permute.xlu0 %2088
        %2090 = vrot.lane.b32.xlu0 %v2071, 64
        %v2091 = vpop.permute.xlu0 %2090
        %2092 = vrot.lane.b32.xlu0 %v2072, 64
        %v2093 = vpop.permute.xlu0 %2092
        %2094 = vrot.lane.b32.xlu0 %v2073, 64
        %v2095 = vpop.permute.xlu0 %2094
        %2096 = vrot.lane.b32.xlu0 %v2074, 64
        %v2097 = vpop.permute.xlu0 %2096
        %2098 = vrot.lane.b32.xlu0 %v2075, 64
        %v2099 = vpop.permute.xlu0 %2098
        %2100 = vrot.lane.b32.xlu0 %v2076, 64
        %v2101 = vpop.permute.xlu0 %2100
        %2102 = vrot.lane.b32.xlu0 %v2077, 64
        %v2103 = vpop.permute.xlu0 %2102
        %2104 = vrot.lane.b32.xlu0 %v2078, 64
        %v2105 = vpop.permute.xlu0 %2104
        %2106 = vrot.lane.b32.xlu0 %v2079, 64
        %v2107 = vpop.permute.xlu0 %2106
        %2108 = vrot.lane.b32.xlu0 %v2080, 64
        %v2109 = vpop.permute.xlu0 %2108
        %2110 = vrot.lane.b32.xlu0 %v2081, 64
        %v2111 = vpop.permute.xlu0 %2110
        %2112 = vrot.lane.b32.xlu0 %v2082, 64
        %v2113 = vpop.permute.xlu0 %2112
        %2114 = vrot.lane.b32.xlu0 %v2083, 64
        %v2115 = vpop.permute.xlu0 %2114
        %v2132 = vunpack.c.l.b16 %v1699
        %v2133 = vunpack.c.l.b16 %v1700
        %v2134 = vunpack.c.l.b16 %v1701
        %v2135 = vunpack.c.l.b16 %v1702
        %v2136 = vunpack.c.l.b16 %v1703
        %v2137 = vunpack.c.l.b16 %v1704
        %v2138 = vunpack.c.l.b16 %v1705
        %v2139 = vunpack.c.l.b16 %v1706
        %v2140 = vunpack.c.l.b16 %v1707
        %v2141 = vunpack.c.l.b16 %v1708
        %v2142 = vunpack.c.l.b16 %v1709
        %v2143 = vunpack.c.l.b16 %v1710
        %v2144 = vunpack.c.l.b16 %v1711
        %v2145 = vunpack.c.l.b16 %v1712
        %v2146 = vunpack.c.l.b16 %v1713
        %v2147 = vunpack.c.l.b16 %v1714
        %v2148 = vpack.c.b16 %v2132, %v2132
        %v2149 = vpack.c.b16 %v2133, %v2133
        %v2150 = vpack.c.b16 %v2134, %v2134
        %v2151 = vpack.c.b16 %v2135, %v2135
        %v2152 = vpack.c.b16 %v2136, %v2136
        %v2153 = vpack.c.b16 %v2137, %v2137
        %v2154 = vpack.c.b16 %v2138, %v2138
        %v2155 = vpack.c.b16 %v2139, %v2139
        %v2156 = vpack.c.b16 %v2140, %v2140
        %v2157 = vpack.c.b16 %v2141, %v2141
        %v2158 = vpack.c.b16 %v2142, %v2142
        %v2159 = vpack.c.b16 %v2143, %v2143
        %v2160 = vpack.c.b16 %v2144, %v2144
        %v2161 = vpack.c.b16 %v2145, %v2145
        %v2162 = vpack.c.b16 %v2146, %v2146
        %v2163 = vpack.c.b16 %v2147, %v2147
        %2164 = vrot.lane.b32.xlu0 %v2148, 96
        %v2165 = vpop.permute.xlu0 %2164
        %2166 = vrot.lane.b32.xlu0 %v2149, 96
        %v2167 = vpop.permute.xlu0 %2166
        %2168 = vrot.lane.b32.xlu0 %v2150, 96
        %v2169 = vpop.permute.xlu0 %2168
        %2170 = vrot.lane.b32.xlu0 %v2151, 96
        %v2171 = vpop.permute.xlu0 %2170
        %2172 = vrot.lane.b32.xlu0 %v2152, 96
        %v2173 = vpop.permute.xlu0 %2172
        %2174 = vrot.lane.b32.xlu0 %v2153, 96
        %v2175 = vpop.permute.xlu0 %2174
        %2176 = vrot.lane.b32.xlu0 %v2154, 96
        %v2177 = vpop.permute.xlu0 %2176
        %2178 = vrot.lane.b32.xlu0 %v2155, 96
        %v2179 = vpop.permute.xlu0 %2178
        %2180 = vrot.lane.b32.xlu0 %v2156, 96
        %v2181 = vpop.permute.xlu0 %2180
        %2182 = vrot.lane.b32.xlu0 %v2157, 96
        %v2183 = vpop.permute.xlu0 %2182
        %2184 = vrot.lane.b32.xlu0 %v2158, 96
        %v2185 = vpop.permute.xlu0 %2184
        %2186 = vrot.lane.b32.xlu0 %v2159, 96
        %v2187 = vpop.permute.xlu0 %2186
        %2188 = vrot.lane.b32.xlu0 %v2160, 96
        %v2189 = vpop.permute.xlu0 %2188
        %2190 = vrot.lane.b32.xlu0 %v2161, 96
        %v2191 = vpop.permute.xlu0 %2190
        %2192 = vrot.lane.b32.xlu0 %v2162, 96
        %v2193 = vpop.permute.xlu0 %2192
        %2194 = vrot.lane.b32.xlu0 %v2163, 96
        %v2195 = vpop.permute.xlu0 %2194
        %v2212 = vunpack.c.l.b16 %v1715
        %v2213 = vunpack.c.l.b16 %v1716
        %v2214 = vunpack.c.l.b16 %v1717
        %v2215 = vunpack.c.l.b16 %v1718
        %v2216 = vunpack.c.l.b16 %v1719
        %v2217 = vunpack.c.l.b16 %v1720
        %v2218 = vunpack.c.l.b16 %v1721
        %v2219 = vunpack.c.l.b16 %v1722
        %v2220 = vunpack.c.l.b16 %v1723
        %v2221 = vunpack.c.l.b16 %v1724
        %v2222 = vunpack.c.l.b16 %v1725
        %v2223 = vunpack.c.l.b16 %v1726
        %v2224 = vunpack.c.l.b16 %v1727
        %v2225 = vunpack.c.l.b16 %v1728
        %v2226 = vunpack.c.l.b16 %v1729
        %v2227 = vunpack.c.l.b16 %v1730
        %v2228 = vpack.c.b16 %v2212, %v2132
        %v2229 = vpack.c.b16 %v2213, %v2133
        %v2230 = vpack.c.b16 %v2214, %v2134
        %v2231 = vpack.c.b16 %v2215, %v2135
        %v2232 = vpack.c.b16 %v2216, %v2136
        %v2233 = vpack.c.b16 %v2217, %v2137
        %v2234 = vpack.c.b16 %v2218, %v2138
        %v2235 = vpack.c.b16 %v2219, %v2139
        %v2236 = vpack.c.b16 %v2220, %v2140
        %v2237 = vpack.c.b16 %v2221, %v2141
        %v2238 = vpack.c.b16 %v2222, %v2142
        %v2239 = vpack.c.b16 %v2223, %v2143
        %v2240 = vpack.c.b16 %v2224, %v2144
        %v2241 = vpack.c.b16 %v2225, %v2145
        %v2242 = vpack.c.b16 %v2226, %v2146
        %v2243 = vpack.c.b16 %v2227, %v2147
        %v2245 = vshrl.u32 %v2228, 16
        %v2247 = vshll.u32 %v2228, 16
        %v2249 = vrot.slane %v2247, 1
        %v2250 = vor.u32 %v2245, %v2249
        %v2252 = vshrl.u32 %v2229, 16
        %v2254 = vshll.u32 %v2229, 16
        %v2256 = vrot.slane %v2254, 1
        %v2257 = vor.u32 %v2252, %v2256
        %v2259 = vshrl.u32 %v2230, 16
        %v2261 = vshll.u32 %v2230, 16
        %v2263 = vrot.slane %v2261, 1
        %v2264 = vor.u32 %v2259, %v2263
        %v2266 = vshrl.u32 %v2231, 16
        %v2268 = vshll.u32 %v2231, 16
        %v2270 = vrot.slane %v2268, 1
        %v2271 = vor.u32 %v2266, %v2270
        %v2273 = vshrl.u32 %v2232, 16
        %v2275 = vshll.u32 %v2232, 16
        %v2277 = vrot.slane %v2275, 1
        %v2278 = vor.u32 %v2273, %v2277
        %v2280 = vshrl.u32 %v2233, 16
        %v2282 = vshll.u32 %v2233, 16
        %v2284 = vrot.slane %v2282, 1
        %v2285 = vor.u32 %v2280, %v2284
        %v2287 = vshrl.u32 %v2234, 16
        %v2289 = vshll.u32 %v2234, 16
        %v2291 = vrot.slane %v2289, 1
        %v2292 = vor.u32 %v2287, %v2291
        %v2294 = vshrl.u32 %v2235, 16
        %v2296 = vshll.u32 %v2235, 16
        %v2298 = vrot.slane %v2296, 1
        %v2299 = vor.u32 %v2294, %v2298
        %v2301 = vshrl.u32 %v2236, 16
        %v2303 = vshll.u32 %v2236, 16
        %v2305 = vrot.slane %v2303, 1
        %v2306 = vor.u32 %v2301, %v2305
        %v2308 = vshrl.u32 %v2237, 16
        %v2310 = vshll.u32 %v2237, 16
        %v2312 = vrot.slane %v2310, 1
        %v2313 = vor.u32 %v2308, %v2312
        %v2315 = vshrl.u32 %v2238, 16
        %v2317 = vshll.u32 %v2238, 16
        %v2319 = vrot.slane %v2317, 1
        %v2320 = vor.u32 %v2315, %v2319
        %v2322 = vshrl.u32 %v2239, 16
        %v2324 = vshll.u32 %v2239, 16
        %v2326 = vrot.slane %v2324, 1
        %v2327 = vor.u32 %v2322, %v2326
        %v2329 = vshrl.u32 %v2240, 16
        %v2331 = vshll.u32 %v2240, 16
        %v2333 = vrot.slane %v2331, 1
        %v2334 = vor.u32 %v2329, %v2333
        %v2336 = vshrl.u32 %v2241, 16
        %v2338 = vshll.u32 %v2241, 16
        %v2340 = vrot.slane %v2338, 1
        %v2341 = vor.u32 %v2336, %v2340
        %v2343 = vshrl.u32 %v2242, 16
        %v2345 = vshll.u32 %v2242, 16
        %v2347 = vrot.slane %v2345, 1
        %v2348 = vor.u32 %v2343, %v2347
        %v2350 = vshrl.u32 %v2243, 16
        %v2352 = vshll.u32 %v2243, 16
        %v2354 = vrot.slane %v2352, 1
        %v2355 = vor.u32 %v2350, %v2354
        %v2372 = vunpack.c.l.b16 %v1731
        %v2373 = vunpack.c.l.b16 %v1732
        %v2374 = vunpack.c.l.b16 %v1733
        %v2375 = vunpack.c.l.b16 %v1734
        %v2376 = vunpack.c.l.b16 %v1735
        %v2377 = vunpack.c.l.b16 %v1736
        %v2378 = vunpack.c.l.b16 %v1737
        %v2379 = vunpack.c.l.b16 %v1738
        %v2380 = vunpack.c.l.b16 %v1739
        %v2381 = vunpack.c.l.b16 %v1740
        %v2382 = vunpack.c.l.b16 %v1741
        %v2383 = vunpack.c.l.b16 %v1742
        %v2384 = vunpack.c.l.b16 %v1743
        %v2385 = vunpack.c.l.b16 %v1744
        %v2386 = vunpack.c.l.b16 %v1745
        %v2387 = vunpack.c.l.b16 %v1746
        %v2388 = vpack.c.b16 %v2212, %v2372
        %v2389 = vpack.c.b16 %v2213, %v2373
        %v2390 = vpack.c.b16 %v2214, %v2374
        %v2391 = vpack.c.b16 %v2215, %v2375
        %v2392 = vpack.c.b16 %v2216, %v2376
        %v2393 = vpack.c.b16 %v2217, %v2377
        %v2394 = vpack.c.b16 %v2218, %v2378
        %v2395 = vpack.c.b16 %v2219, %v2379
        %v2396 = vpack.c.b16 %v2220, %v2380
        %v2397 = vpack.c.b16 %v2221, %v2381
        %v2398 = vpack.c.b16 %v2222, %v2382
        %v2399 = vpack.c.b16 %v2223, %v2383
        %v2400 = vpack.c.b16 %v2224, %v2384
        %v2401 = vpack.c.b16 %v2225, %v2385
        %v2402 = vpack.c.b16 %v2226, %v2386
        %v2403 = vpack.c.b16 %v2227, %v2387
        %v2404 = vrot.slane %v2388, 1
        %v2405 = vrot.slane %v2389, 1
        %v2406 = vrot.slane %v2390, 1
        %v2407 = vrot.slane %v2391, 1
        %v2408 = vrot.slane %v2392, 1
        %v2409 = vrot.slane %v2393, 1
        %v2410 = vrot.slane %v2394, 1
        %v2411 = vrot.slane %v2395, 1
        %v2412 = vrot.slane %v2396, 1
        %v2413 = vrot.slane %v2397, 1
        %v2414 = vrot.slane %v2398, 1
        %v2415 = vrot.slane %v2399, 1
        %v2416 = vrot.slane %v2400, 1
        %v2417 = vrot.slane %v2401, 1
        %v2418 = vrot.slane %v2402, 1
        %v2419 = vrot.slane %v2403, 1
        %2420 = vrot.lane.b32.xlu0 %v2404, 32
        %v2421 = vpop.permute.xlu0 %2420
        %2422 = vrot.lane.b32.xlu0 %v2405, 32
        %v2423 = vpop.permute.xlu0 %2422
        %2424 = vrot.lane.b32.xlu0 %v2406, 32
        %v2425 = vpop.permute.xlu0 %2424
        %2426 = vrot.lane.b32.xlu0 %v2407, 32
        %v2427 = vpop.permute.xlu0 %2426
        %2428 = vrot.lane.b32.xlu0 %v2408, 32
        %v2429 = vpop.permute.xlu0 %2428
        %2430 = vrot.lane.b32.xlu0 %v2409, 32
        %v2431 = vpop.permute.xlu0 %2430
        %2432 = vrot.lane.b32.xlu0 %v2410, 32
        %v2433 = vpop.permute.xlu0 %2432
        %2434 = vrot.lane.b32.xlu0 %v2411, 32
        %v2435 = vpop.permute.xlu0 %2434
        %2436 = vrot.lane.b32.xlu0 %v2412, 32
        %v2437 = vpop.permute.xlu0 %2436
        %2438 = vrot.lane.b32.xlu0 %v2413, 32
        %v2439 = vpop.permute.xlu0 %2438
        %2440 = vrot.lane.b32.xlu0 %v2414, 32
        %v2441 = vpop.permute.xlu0 %2440
        %2442 = vrot.lane.b32.xlu0 %v2415, 32
        %v2443 = vpop.permute.xlu0 %2442
        %2444 = vrot.lane.b32.xlu0 %v2416, 32
        %v2445 = vpop.permute.xlu0 %2444
        %2446 = vrot.lane.b32.xlu0 %v2417, 32
        %v2447 = vpop.permute.xlu0 %2446
        %2448 = vrot.lane.b32.xlu0 %v2418, 32
        %v2449 = vpop.permute.xlu0 %2448
        %2450 = vrot.lane.b32.xlu0 %v2419, 32
        %v2451 = vpop.permute.xlu0 %2450
        %v2468 = vunpack.c.l.b16 %v1748
        %v2469 = vunpack.c.l.b16 %v1749
        %v2470 = vunpack.c.l.b16 %v1750
        %v2471 = vunpack.c.l.b16 %v1751
        %v2472 = vunpack.c.l.b16 %v1752
        %v2473 = vunpack.c.l.b16 %v1753
        %v2474 = vunpack.c.l.b16 %v1754
        %v2475 = vunpack.c.l.b16 %v1755
        %v2476 = vunpack.c.l.b16 %v1756
        %v2477 = vunpack.c.l.b16 %v1757
        %v2478 = vunpack.c.l.b16 %v1758
        %v2479 = vunpack.c.l.b16 %v1759
        %v2480 = vunpack.c.l.b16 %v1760
        %v2481 = vunpack.c.l.b16 %v1761
        %v2482 = vunpack.c.l.b16 %v1762
        %v2483 = vunpack.c.l.b16 %v1763
        %v2484 = vpack.c.b16 %v2468, %v2468
        %v2485 = vpack.c.b16 %v2469, %v2469
        %v2486 = vpack.c.b16 %v2470, %v2470
        %v2487 = vpack.c.b16 %v2471, %v2471
        %v2488 = vpack.c.b16 %v2472, %v2472
        %v2489 = vpack.c.b16 %v2473, %v2473
        %v2490 = vpack.c.b16 %v2474, %v2474
        %v2491 = vpack.c.b16 %v2475, %v2475
        %v2492 = vpack.c.b16 %v2476, %v2476
        %v2493 = vpack.c.b16 %v2477, %v2477
        %v2494 = vpack.c.b16 %v2478, %v2478
        %v2495 = vpack.c.b16 %v2479, %v2479
        %v2496 = vpack.c.b16 %v2480, %v2480
        %v2497 = vpack.c.b16 %v2481, %v2481
        %v2498 = vpack.c.b16 %v2482, %v2482
        %v2499 = vpack.c.b16 %v2483, %v2483
        %2500 = vrot.lane.b32.xlu0 %v2484, 64
        %v2501 = vpop.permute.xlu0 %2500
        %2502 = vrot.lane.b32.xlu0 %v2485, 64
        %v2503 = vpop.permute.xlu0 %2502
        %2504 = vrot.lane.b32.xlu0 %v2486, 64
        %v2505 = vpop.permute.xlu0 %2504
        %2506 = vrot.lane.b32.xlu0 %v2487, 64
        %v2507 = vpop.permute.xlu0 %2506
        %2508 = vrot.lane.b32.xlu0 %v2488, 64
        %v2509 = vpop.permute.xlu0 %2508
        %2510 = vrot.lane.b32.xlu0 %v2489, 64
        %v2511 = vpop.permute.xlu0 %2510
        %2512 = vrot.lane.b32.xlu0 %v2490, 64
        %v2513 = vpop.permute.xlu0 %2512
        %2514 = vrot.lane.b32.xlu0 %v2491, 64
        %v2515 = vpop.permute.xlu0 %2514
        %2516 = vrot.lane.b32.xlu0 %v2492, 64
        %v2517 = vpop.permute.xlu0 %2516
        %2518 = vrot.lane.b32.xlu0 %v2493, 64
        %v2519 = vpop.permute.xlu0 %2518
        %2520 = vrot.lane.b32.xlu0 %v2494, 64
        %v2521 = vpop.permute.xlu0 %2520
        %2522 = vrot.lane.b32.xlu0 %v2495, 64
        %v2523 = vpop.permute.xlu0 %2522
        %2524 = vrot.lane.b32.xlu0 %v2496, 64
        %v2525 = vpop.permute.xlu0 %2524
        %2526 = vrot.lane.b32.xlu0 %v2497, 64
        %v2527 = vpop.permute.xlu0 %2526
        %2528 = vrot.lane.b32.xlu0 %v2498, 64
        %v2529 = vpop.permute.xlu0 %2528
        %2530 = vrot.lane.b32.xlu0 %v2499, 64
        %v2531 = vpop.permute.xlu0 %2530
        %v2548 = vunpack.c.l.b16 %v1764
        %v2549 = vunpack.c.l.b16 %v1765
        %v2550 = vunpack.c.l.b16 %v1766
        %v2551 = vunpack.c.l.b16 %v1767
        %v2552 = vunpack.c.l.b16 %v1768
        %v2553 = vunpack.c.l.b16 %v1769
        %v2554 = vunpack.c.l.b16 %v1770
        %v2555 = vunpack.c.l.b16 %v1771
        %v2556 = vunpack.c.l.b16 %v1772
        %v2557 = vunpack.c.l.b16 %v1773
        %v2558 = vunpack.c.l.b16 %v1774
        %v2559 = vunpack.c.l.b16 %v1775
        %v2560 = vunpack.c.l.b16 %v1776
        %v2561 = vunpack.c.l.b16 %v1777
        %v2562 = vunpack.c.l.b16 %v1778
        %v2563 = vunpack.c.l.b16 %v1779
        %v2564 = vpack.c.b16 %v2548, %v2468
        %v2565 = vpack.c.b16 %v2549, %v2469
        %v2566 = vpack.c.b16 %v2550, %v2470
        %v2567 = vpack.c.b16 %v2551, %v2471
        %v2568 = vpack.c.b16 %v2552, %v2472
        %v2569 = vpack.c.b16 %v2553, %v2473
        %v2570 = vpack.c.b16 %v2554, %v2474
        %v2571 = vpack.c.b16 %v2555, %v2475
        %v2572 = vpack.c.b16 %v2556, %v2476
        %v2573 = vpack.c.b16 %v2557, %v2477
        %v2574 = vpack.c.b16 %v2558, %v2478
        %v2575 = vpack.c.b16 %v2559, %v2479
        %v2576 = vpack.c.b16 %v2560, %v2480
        %v2577 = vpack.c.b16 %v2561, %v2481
        %v2578 = vpack.c.b16 %v2562, %v2482
        %v2579 = vpack.c.b16 %v2563, %v2483
        %v2581 = vshrl.u32 %v2564, 16
        %v2583 = vshll.u32 %v2564, 16
        %v2585 = vrot.slane %v2583, 1
        %v2586 = vor.u32 %v2581, %v2585
        %v2588 = vshrl.u32 %v2565, 16
        %v2590 = vshll.u32 %v2565, 16
        %v2592 = vrot.slane %v2590, 1
        %v2593 = vor.u32 %v2588, %v2592
        %v2595 = vshrl.u32 %v2566, 16
        %v2597 = vshll.u32 %v2566, 16
        %v2599 = vrot.slane %v2597, 1
        %v2600 = vor.u32 %v2595, %v2599
        %v2602 = vshrl.u32 %v2567, 16
        %v2604 = vshll.u32 %v2567, 16
        %v2606 = vrot.slane %v2604, 1
        %v2607 = vor.u32 %v2602, %v2606
        %v2609 = vshrl.u32 %v2568, 16
        %v2611 = vshll.u32 %v2568, 16
        %v2613 = vrot.slane %v2611, 1
        %v2614 = vor.u32 %v2609, %v2613
        %v2616 = vshrl.u32 %v2569, 16
        %v2618 = vshll.u32 %v2569, 16
        %v2620 = vrot.slane %v2618, 1
        %v2621 = vor.u32 %v2616, %v2620
        %v2623 = vshrl.u32 %v2570, 16
        %v2625 = vshll.u32 %v2570, 16
        %v2627 = vrot.slane %v2625, 1
        %v2628 = vor.u32 %v2623, %v2627
        %v2630 = vshrl.u32 %v2571, 16
        %v2632 = vshll.u32 %v2571, 16
        %v2634 = vrot.slane %v2632, 1
        %v2635 = vor.u32 %v2630, %v2634
        %v2637 = vshrl.u32 %v2572, 16
        %v2639 = vshll.u32 %v2572, 16
        %v2641 = vrot.slane %v2639, 1
        %v2642 = vor.u32 %v2637, %v2641
        %v2644 = vshrl.u32 %v2573, 16
        %v2646 = vshll.u32 %v2573, 16
        %v2648 = vrot.slane %v2646, 1
        %v2649 = vor.u32 %v2644, %v2648
        %v2651 = vshrl.u32 %v2574, 16
        %v2653 = vshll.u32 %v2574, 16
        %v2655 = vrot.slane %v2653, 1
        %v2656 = vor.u32 %v2651, %v2655
        %v2658 = vshrl.u32 %v2575, 16
        %v2660 = vshll.u32 %v2575, 16
        %v2662 = vrot.slane %v2660, 1
        %v2663 = vor.u32 %v2658, %v2662
        %v2665 = vshrl.u32 %v2576, 16
        %v2667 = vshll.u32 %v2576, 16
        %v2669 = vrot.slane %v2667, 1
        %v2670 = vor.u32 %v2665, %v2669
        %v2672 = vshrl.u32 %v2577, 16
        %v2674 = vshll.u32 %v2577, 16
        %v2676 = vrot.slane %v2674, 1
        %v2677 = vor.u32 %v2672, %v2676
        %v2679 = vshrl.u32 %v2578, 16
        %v2681 = vshll.u32 %v2578, 16
        %v2683 = vrot.slane %v2681, 1
        %v2684 = vor.u32 %v2679, %v2683
        %v2686 = vshrl.u32 %v2579, 16
        %v2688 = vshll.u32 %v2579, 16
        %v2690 = vrot.slane %v2688, 1
        %v2691 = vor.u32 %v2686, %v2690
        %2692 = vrot.lane.b32.xlu0 %v2586, 96
        %v2693 = vpop.permute.xlu0 %2692
        %2694 = vrot.lane.b32.xlu0 %v2593, 96
        %v2695 = vpop.permute.xlu0 %2694
        %2696 = vrot.lane.b32.xlu0 %v2600, 96
        %v2697 = vpop.permute.xlu0 %2696
        %2698 = vrot.lane.b32.xlu0 %v2607, 96
        %v2699 = vpop.permute.xlu0 %2698
        %2700 = vrot.lane.b32.xlu0 %v2614, 96
        %v2701 = vpop.permute.xlu0 %2700
        %2702 = vrot.lane.b32.xlu0 %v2621, 96
        %v2703 = vpop.permute.xlu0 %2702
        %2704 = vrot.lane.b32.xlu0 %v2628, 96
        %v2705 = vpop.permute.xlu0 %2704
        %2706 = vrot.lane.b32.xlu0 %v2635, 96
        %v2707 = vpop.permute.xlu0 %2706
        %2708 = vrot.lane.b32.xlu0 %v2642, 96
        %v2709 = vpop.permute.xlu0 %2708
        %2710 = vrot.lane.b32.xlu0 %v2649, 96
        %v2711 = vpop.permute.xlu0 %2710
        %2712 = vrot.lane.b32.xlu0 %v2656, 96
        %v2713 = vpop.permute.xlu0 %2712
        %2714 = vrot.lane.b32.xlu0 %v2663, 96
        %v2715 = vpop.permute.xlu0 %2714
        %2716 = vrot.lane.b32.xlu0 %v2670, 96
        %v2717 = vpop.permute.xlu0 %2716
        %2718 = vrot.lane.b32.xlu0 %v2677, 96
        %v2719 = vpop.permute.xlu0 %2718
        %2720 = vrot.lane.b32.xlu0 %v2684, 96
        %v2721 = vpop.permute.xlu0 %2720
        %2722 = vrot.lane.b32.xlu0 %v2691, 96
        %v2723 = vpop.permute.xlu0 %2722
        %v2740 = vunpack.c.l.b16 %v1780
        %v2741 = vunpack.c.l.b16 %v1781
        %v2742 = vunpack.c.l.b16 %v1782
        %v2743 = vunpack.c.l.b16 %v1783
        %v2744 = vunpack.c.l.b16 %v1784
        %v2745 = vunpack.c.l.b16 %v1785
        %v2746 = vunpack.c.l.b16 %v1786
        %v2747 = vunpack.c.l.b16 %v1787
        %v2748 = vunpack.c.l.b16 %v1788
        %v2749 = vunpack.c.l.b16 %v1789
        %v2750 = vunpack.c.l.b16 %v1790
        %v2751 = vunpack.c.l.b16 %v1791
        %v2752 = vunpack.c.l.b16 %v1792
        %v2753 = vunpack.c.l.b16 %v1793
        %v2754 = vunpack.c.l.b16 %v1794
        %v2755 = vunpack.c.l.b16 %v1795
        %v2756 = vpack.c.b16 %v2548, %v2740
        %v2757 = vpack.c.b16 %v2549, %v2741
        %v2758 = vpack.c.b16 %v2550, %v2742
        %v2759 = vpack.c.b16 %v2551, %v2743
        %v2760 = vpack.c.b16 %v2552, %v2744
        %v2761 = vpack.c.b16 %v2553, %v2745
        %v2762 = vpack.c.b16 %v2554, %v2746
        %v2763 = vpack.c.b16 %v2555, %v2747
        %v2764 = vpack.c.b16 %v2556, %v2748
        %v2765 = vpack.c.b16 %v2557, %v2749
        %v2766 = vpack.c.b16 %v2558, %v2750
        %v2767 = vpack.c.b16 %v2559, %v2751
        %v2768 = vpack.c.b16 %v2560, %v2752
        %v2769 = vpack.c.b16 %v2561, %v2753
        %v2770 = vpack.c.b16 %v2562, %v2754
        %v2771 = vpack.c.b16 %v2563, %v2755
        %v2772 = vrot.slane %v2756, 1
        %v2773 = vrot.slane %v2757, 1
        %v2774 = vrot.slane %v2758, 1
        %v2775 = vrot.slane %v2759, 1
        %v2776 = vrot.slane %v2760, 1
        %v2777 = vrot.slane %v2761, 1
        %v2778 = vrot.slane %v2762, 1
        %v2779 = vrot.slane %v2763, 1
        %v2780 = vrot.slane %v2764, 1
        %v2781 = vrot.slane %v2765, 1
        %v2782 = vrot.slane %v2766, 1
        %v2783 = vrot.slane %v2767, 1
        %v2784 = vrot.slane %v2768, 1
        %v2785 = vrot.slane %v2769, 1
        %v2786 = vrot.slane %v2770, 1
        %v2787 = vrot.slane %v2771, 1
        %v2790 = vsel %vm1042, %v1651, %v1989
        %v2793 = vsel %vm1042, %v1652, %v1991
        %v2796 = vsel %vm1042, %v1653, %v1993
        %v2799 = vsel %vm1042, %v1654, %v1995
        %v2802 = vsel %vm1042, %v1655, %v1997
        %v2805 = vsel %vm1042, %v1656, %v1999
        %v2808 = vsel %vm1042, %v1657, %v2001
        %v2811 = vsel %vm1042, %v1658, %v2003
        %v2814 = vsel %vm1042, %v1659, %v2005
        %v2817 = vsel %vm1042, %v1660, %v2007
        %v2820 = vsel %vm1042, %v1661, %v2009
        %v2823 = vsel %vm1042, %v1662, %v2011
        %v2826 = vsel %vm1042, %v1663, %v2013
        %v2829 = vsel %vm1042, %v1664, %v2015
        %v2832 = vsel %vm1042, %v1665, %v2017
        %v2835 = vsel %vm1042, %v1666, %v2019
        %vm2836 = vcmask 523264
        %v2838 = vsel %vm2836, %v2790, %v2085
        %v2840 = vsel %vm2836, %v2793, %v2087
        %v2842 = vsel %vm2836, %v2796, %v2089
        %v2844 = vsel %vm2836, %v2799, %v2091
        %v2846 = vsel %vm2836, %v2802, %v2093
        %v2848 = vsel %vm2836, %v2805, %v2095
        %v2850 = vsel %vm2836, %v2808, %v2097
        %v2852 = vsel %vm2836, %v2811, %v2099
        %v2854 = vsel %vm2836, %v2814, %v2101
        %v2856 = vsel %vm2836, %v2817, %v2103
        %v2858 = vsel %vm2836, %v2820, %v2105
        %v2860 = vsel %vm2836, %v2823, %v2107
        %v2862 = vsel %vm2836, %v2826, %v2109
        %v2864 = vsel %vm2836, %v2829, %v2111
        %v2866 = vsel %vm2836, %v2832, %v2113
        %v2868 = vsel %vm2836, %v2835, %v2115
        %vm2869 = vcmask 785408
        %v2871 = vsel %vm2869, %v2838, %v2165
        %v2873 = vsel %vm2869, %v2840, %v2167
        %v2875 = vsel %vm2869, %v2842, %v2169
        %v2877 = vsel %vm2869, %v2844, %v2171
        %v2879 = vsel %vm2869, %v2846, %v2173
        %v2881 = vsel %vm2869, %v2848, %v2175
        %v2883 = vsel %vm2869, %v2850, %v2177
        %v2885 = vsel %vm2869, %v2852, %v2179
        %v2887 = vsel %vm2869, %v2854, %v2181
        %v2889 = vsel %vm2869, %v2856, %v2183
        %v2891 = vsel %vm2869, %v2858, %v2185
        %v2893 = vsel %vm2869, %v2860, %v2187
        %v2895 = vsel %vm2869, %v2862, %v2189
        %v2897 = vsel %vm2869, %v2864, %v2191
        %v2899 = vsel %vm2869, %v2866, %v2193
        %v2901 = vsel %vm2869, %v2868, %v2195
        %v2904 = vsel %vm1042, %v2250, %v2421
        %v2907 = vsel %vm1042, %v2257, %v2423
        %v2910 = vsel %vm1042, %v2264, %v2425
        %v2913 = vsel %vm1042, %v2271, %v2427
        %v2916 = vsel %vm1042, %v2278, %v2429
        %v2919 = vsel %vm1042, %v2285, %v2431
        %v2922 = vsel %vm1042, %v2292, %v2433
        %v2925 = vsel %vm1042, %v2299, %v2435
        %v2928 = vsel %vm1042, %v2306, %v2437
        %v2931 = vsel %vm1042, %v2313, %v2439
        %v2934 = vsel %vm1042, %v2320, %v2441
        %v2937 = vsel %vm1042, %v2327, %v2443
        %v2940 = vsel %vm1042, %v2334, %v2445
        %v2943 = vsel %vm1042, %v2341, %v2447
        %v2946 = vsel %vm1042, %v2348, %v2449
        %v2949 = vsel %vm1042, %v2355, %v2451
        %v2951 = vsel %vm2836, %v2904, %v2501
        %v2953 = vsel %vm2836, %v2907, %v2503
        %v2955 = vsel %vm2836, %v2910, %v2505
        %v2957 = vsel %vm2836, %v2913, %v2507
        %v2959 = vsel %vm2836, %v2916, %v2509
        %v2961 = vsel %vm2836, %v2919, %v2511
        %v2963 = vsel %vm2836, %v2922, %v2513
        %v2965 = vsel %vm2836, %v2925, %v2515
        %v2967 = vsel %vm2836, %v2928, %v2517
        %v2969 = vsel %vm2836, %v2931, %v2519
        %v2971 = vsel %vm2836, %v2934, %v2521
        %v2973 = vsel %vm2836, %v2937, %v2523
        %v2975 = vsel %vm2836, %v2940, %v2525
        %v2977 = vsel %vm2836, %v2943, %v2527
        %v2979 = vsel %vm2836, %v2946, %v2529
        %v2981 = vsel %vm2836, %v2949, %v2531
        %v2983 = vsel %vm2869, %v2951, %v2693
        %v2985 = vsel %vm2869, %v2953, %v2695
        %v2987 = vsel %vm2869, %v2955, %v2697
        %v2989 = vsel %vm2869, %v2957, %v2699
        %v2991 = vsel %vm2869, %v2959, %v2701
        %v2993 = vsel %vm2869, %v2961, %v2703
        %v2995 = vsel %vm2869, %v2963, %v2705
        %v2997 = vsel %vm2869, %v2965, %v2707
        %v2999 = vsel %vm2869, %v2967, %v2709
        %v3001 = vsel %vm2869, %v2969, %v2711
        %v3003 = vsel %vm2869, %v2971, %v2713
        %v3005 = vsel %vm2869, %v2973, %v2715
        %v3007 = vsel %vm2869, %v2975, %v2717
        %v3009 = vsel %vm2869, %v2977, %v2719
        %v3011 = vsel %vm2869, %v2979, %v2721
        %v3013 = vsel %vm2869, %v2981, %v2723
        %v3046 = vunpack.c.l.b16 %v2871
        %v3047 = vunpack.c.l.b16 %v2983
        %v3048 = vunpack.c.l.b16 %v2772
        %v3049 = vunpack.c.l.b16 %v2873
        %v3050 = vunpack.c.l.b16 %v2985
        %v3051 = vunpack.c.l.b16 %v2773
        %v3052 = vunpack.c.l.b16 %v2875
        %v3053 = vunpack.c.l.b16 %v2987
        %v3054 = vunpack.c.l.b16 %v2774
        %v3055 = vunpack.c.l.b16 %v2877
        %v3056 = vunpack.c.l.b16 %v2989
        %v3057 = vunpack.c.l.b16 %v2775
        %v3058 = vunpack.c.l.b16 %v2879
        %v3059 = vunpack.c.l.b16 %v2991
        %v3060 = vunpack.c.l.b16 %v2776
        %v3061 = vunpack.c.l.b16 %v2881
        %v3062 = vunpack.c.l.b16 %v2993
        %v3063 = vunpack.c.l.b16 %v2777
        %v3064 = vunpack.c.l.b16 %v2883
        %v3065 = vunpack.c.l.b16 %v2995
        %v3066 = vunpack.c.l.b16 %v2778
        %v3067 = vunpack.c.l.b16 %v2885
        %v3068 = vunpack.c.l.b16 %v2997
        %v3069 = vunpack.c.l.b16 %v2779
        %v3070 = vunpack.c.l.b16 %v2887
        %v3071 = vunpack.c.l.b16 %v2999
        %v3072 = vunpack.c.l.b16 %v2780
        %v3073 = vunpack.c.l.b16 %v2889
        %v3074 = vunpack.c.l.b16 %v3001
        %v3075 = vunpack.c.l.b16 %v2781
        %v3076 = vunpack.c.l.b16 %v2891
        %v3077 = vunpack.c.l.b16 %v3003
        %v3078 = vunpack.c.l.b16 %v2782
        %v3079 = vunpack.c.l.b16 %v2893
        %v3080 = vunpack.c.l.b16 %v3005
        %v3081 = vunpack.c.l.b16 %v2783
        %v3082 = vunpack.c.l.b16 %v2895
        %v3083 = vunpack.c.l.b16 %v3007
        %v3084 = vunpack.c.l.b16 %v2784
        %v3085 = vunpack.c.l.b16 %v2897
        %v3086 = vunpack.c.l.b16 %v3009
        %v3087 = vunpack.c.l.b16 %v2785
        %v3088 = vunpack.c.l.b16 %v2899
        %v3089 = vunpack.c.l.b16 %v3011
        %v3090 = vunpack.c.l.b16 %v2786
        %v3091 = vunpack.c.l.b16 %v2901
        %v3092 = vunpack.c.l.b16 %v3013
        %v3093 = vunpack.c.l.b16 %v2787
        %v3094 = vld [vmem:[%s3] sm:$0xf]
        %v3095 = vld [vmem:[%s3 + $0x4] sm:$0xf]
        %v3096 = vld [vmem:[%s3 + $0x8] sm:$0xf]
        %v3097 = vld [vmem:[%s3 + $0xc] sm:$0xf]
        %v3098 = vld [vmem:[%s3 + $0x10] sm:$0xf]
        %v3099 = vld [vmem:[%s3 + $0x14] sm:$0xf]
        %v3100 = vld [vmem:[%s3 + $0x18] sm:$0xf]
        %v3101 = vld [vmem:[%s3 + $0x1c] sm:$0xf]
        %v3102 = vld [vmem:[%s3 + $0x20] sm:$0xf]
        %v3103 = vld [vmem:[%s3 + $0x24] sm:$0xf]
        %v3104 = vld [vmem:[%s3 + $0x28] sm:$0xf]
        %v3105 = vld [vmem:[%s3 + $0x2c] sm:$0xf]
        %v3106 = vld [vmem:[%s3 + $0x30] sm:$0xf]
        %v3107 = vld [vmem:[%s3 + $0x34] sm:$0xf]
        %v3108 = vld [vmem:[%s3 + $0x38] sm:$0xf]
        %v3109 = vld [vmem:[%s3 + $0x3c] sm:$0xf]
        %v3110 = vld [vmem:[%s3 + $0x40] sm:$0xf]
        %v3111 = vld [vmem:[%s3 + $0x44] sm:$0xf]
        %v3112 = vld [vmem:[%s3 + $0x48] sm:$0xf]
        %v3113 = vld [vmem:[%s3 + $0x4c] sm:$0xf]
        %v3114 = vld [vmem:[%s3 + $0x50] sm:$0xf]
        %v3115 = vld [vmem:[%s3 + $0x54] sm:$0xf]
        %v3116 = vld [vmem:[%s3 + $0x58] sm:$0xf]
        %v3117 = vld [vmem:[%s3 + $0x5c] sm:$0xf]
        %v3118 = vld [vmem:[%s3 + $0x60] sm:$0xf]
        %v3119 = vld [vmem:[%s3 + $0x64] sm:$0xf]
        %v3120 = vld [vmem:[%s3 + $0x68] sm:$0xf]
        %v3121 = vld [vmem:[%s3 + $0x6c] sm:$0xf]
        %v3122 = vld [vmem:[%s3 + $0x70] sm:$0xf]
        %v3123 = vld [vmem:[%s3 + $0x74] sm:$0xf]
        %v3124 = vld [vmem:[%s3 + $0x78] sm:$0xf]
        %v3125 = vld [vmem:[%s3 + $0x7c] sm:$0xf]
        %v3126 = vld [vmem:[%s3 + $0x80] sm:$0xf]
        %v3127 = vld [vmem:[%s3 + $0x84] sm:$0xf]
        %v3128 = vld [vmem:[%s3 + $0x88] sm:$0xf]
        %v3129 = vld [vmem:[%s3 + $0x8c] sm:$0xf]
        %v3130 = vld [vmem:[%s4] sm:$0x1]
        %v3132 = vlaneseq
        %v3133 = vshrl.u32 %v3132, 7
        %v3134 = vsub.s32 0, %v3133
        %v3135 = vrot.slane %v3130, %v3134
        %v3137 = vpack.c.b16 %v3049, %v3046
        %v3138 = vpack.c.b16 %v3050, %v3047
        %v3139 = vpack.c.b16 %v3051, %v3048
        %v3140 = vpack.c.b16 %v3055, %v3052
        %v3141 = vpack.c.b16 %v3056, %v3053
        %v3142 = vpack.c.b16 %v3057, %v3054
        %v3143 = vpack.c.b16 %v3061, %v3058
        %v3144 = vpack.c.b16 %v3062, %v3059
        %v3145 = vpack.c.b16 %v3063, %v3060
        %v3146 = vpack.c.b16 %v3067, %v3064
        %v3147 = vpack.c.b16 %v3068, %v3065
        %v3148 = vpack.c.b16 %v3069, %v3066
        %v3149 = vpack.c.b16 %v3073, %v3070
        %v3150 = vpack.c.b16 %v3074, %v3071
        %v3151 = vpack.c.b16 %v3075, %v3072
        %v3152 = vpack.c.b16 %v3079, %v3076
        %v3153 = vpack.c.b16 %v3080, %v3077
        %v3154 = vpack.c.b16 %v3081, %v3078
        %v3155 = vpack.c.b16 %v3085, %v3082
        %v3156 = vpack.c.b16 %v3086, %v3083
        %v3157 = vpack.c.b16 %v3087, %v3084
        %v3158 = vpack.c.b16 %v3091, %v3088
        %v3159 = vpack.c.b16 %v3092, %v3089
        %v3160 = vpack.c.b16 %v3093, %v3090
        %v3213 = vunpack.c.l.b16 %v3094
        %v3214 = vunpack.c.l.b16 %v3095
        %v3215 = vunpack.c.l.b16 %v3096
        %v3216 = vunpack.c.l.b16 %v3097
        %v3217 = vunpack.c.l.b16 %v3098
        %v3218 = vunpack.c.l.b16 %v3099
        %v3219 = vunpack.c.l.b16 %v3100
        %v3220 = vunpack.c.l.b16 %v3101
        %v3221 = vunpack.c.l.b16 %v3102
        %v3222 = vunpack.c.l.b16 %v3103
        %v3223 = vunpack.c.l.b16 %v3104
        %v3224 = vunpack.c.l.b16 %v3105
        %v3225 = vunpack.c.l.b16 %v3106
        %v3226 = vunpack.c.l.b16 %v3107
        %v3227 = vunpack.c.l.b16 %v3108
        %v3228 = vunpack.c.l.b16 %v3109
        %v3229 = vunpack.c.l.b16 %v3110
        %v3230 = vunpack.c.l.b16 %v3111
        %v3231 = vunpack.c.l.b16 %v3112
        %v3232 = vunpack.c.l.b16 %v3113
        %v3233 = vunpack.c.l.b16 %v3114
        %v3234 = vunpack.c.l.b16 %v3115
        %v3235 = vunpack.c.l.b16 %v3116
        %v3236 = vunpack.c.l.b16 %v3117
        %v3237 = vunpack.c.l.b16 %v3118
        %v3238 = vunpack.c.l.b16 %v3119
        %v3239 = vunpack.c.l.b16 %v3120
        %v3240 = vunpack.c.l.b16 %v3121
        %v3241 = vunpack.c.l.b16 %v3122
        %v3242 = vunpack.c.l.b16 %v3123
        %v3243 = vunpack.c.l.b16 %v3124
        %v3244 = vunpack.c.l.b16 %v3125
        %v3245 = vunpack.c.l.b16 %v3126
        %v3246 = vunpack.c.l.b16 %v3127
        %v3247 = vunpack.c.l.b16 %v3128
        %v3248 = vunpack.c.l.b16 %v3129
        %v3249 = vpack.c.b16 %v3214, %v3213
        %v3250 = vpack.c.b16 %v3216, %v3215
        %v3251 = vpack.c.b16 %v3218, %v3217
        %v3252 = vpack.c.b16 %v3220, %v3219
        %v3253 = vpack.c.b16 %v3222, %v3221
        %v3254 = vpack.c.b16 %v3224, %v3223
        %v3255 = vpack.c.b16 %v3226, %v3225
        %v3256 = vpack.c.b16 %v3228, %v3227
        %v3257 = vpack.c.b16 %v3230, %v3229
        %v3258 = vpack.c.b16 %v3232, %v3231
        %v3259 = vpack.c.b16 %v3234, %v3233
        %v3260 = vpack.c.b16 %v3236, %v3235
        %v3261 = vpack.c.b16 %v3238, %v3237
        %v3262 = vpack.c.b16 %v3240, %v3239
        %v3263 = vpack.c.b16 %v3242, %v3241
        %v3264 = vpack.c.b16 %v3244, %v3243
        %v3265 = vpack.c.b16 %v3246, %v3245
        %v3266 = vpack.c.b16 %v3248, %v3247
        %v3286 = vsel %vm1042, %v3139, 0
        %v3289 = vsel %vm1042, %v3142, 0
        %v3292 = vsel %vm1042, %v3145, 0
        %v3295 = vsel %vm1042, %v3148, 0
        %v3298 = vsel %vm1042, %v3151, 0
        %v3301 = vsel %vm1042, %v3154, 0
        %v3304 = vsel %vm1042, %v3157, 0
        %v3307 = vsel %vm1042, %v3160, 0
        %3309 = vmatprep.subr.bf16.mxu0 0
        %3310 = vmatpush1.bf16.msra.mxu0 %v3249
        %3311 = vmatprep.subr.bf16.mxu0 0
        %3312 = vmatpush1.bf16.msra.mxu0 %v3250
        %3313 = vmatprep.subr.bf16.mxu0 0
        %3314 = vmatpush1.bf16.msra.mxu0 %v3251
        %3315 = vmatprep.subr.bf16.mxu0 0
        %3316 = vmatpush1.bf16.msra.mxu0 %v3252
        %3317 = vmatprep.subr.bf16.mxu0 0
        %3318 = vmatpush1.bf16.msra.mxu0 %v3253
        %3319 = vmatprep.subr.bf16.mxu0 0
        %3320 = vmatpush1.bf16.msra.mxu0 %v3254
        %3321 = vmatprep.subr.bf16.mxu0 0
        %3322 = vmatpush1.bf16.msra.mxu0 %v3255
        %3323 = vmatprep.subr.bf16.mxu0 0
        %3324 = vmatpush1.bf16.msra.mxu0 %v3256
        %3325 = vmatprep.subr.bf16.mxu0 0
        %3326 = vmatpush1.bf16.msra.mxu0 %v3257
        %3327 = vmatprep.subr.bf16.mxu0 0
        %3328 = vmatpush1.bf16.msra.mxu0 %v3258
        %3329 = vmatprep.subr.bf16.mxu0 0
        %3330 = vmatpush1.bf16.msra.mxu0 %v3259
        %3331 = vmatprep.subr.bf16.mxu0 0
        %3332 = vmatpush1.bf16.msra.mxu0 %v3260
        %3333 = vmatprep.subr.bf16.mxu0 0
        %3334 = vmatpush1.bf16.msra.mxu0 %v3261
        %3335 = vmatprep.subr.bf16.mxu0 0
        %3336 = vmatpush1.bf16.msra.mxu0 %v3262
        %3337 = vmatprep.subr.bf16.mxu0 0
        %3338 = vmatpush1.bf16.msra.mxu0 %v3263
        %3339 = vmatprep.subr.bf16.mxu0 0
        %3340 = vmatpush1.bf16.msra.mxu0 %v3264
        %3341 = vmatprep.mubr.bf16.mxu0 %v3138
        %3342 = vmatmul.mubr.bf16.gmra.mrb[0].mxu0 %v3137
        %v3343 = vpop.f32.mrb[0].mxu0
        %v3344 = vadd.f32 %v3135, %v3343
        %v3345 = vpop.f32.mrb[0].mxu0
        %v3346 = vpop.f32.mrb[0].mxu0
        %v3347 = vadd.f32 %v3135, %v3346
        %v3348 = vpop.f32.mrb[0].mxu0
        %3349 = vmatprep.mubr.bf16.mxu0 %v3141
        %3350 = vmatmul.mubr.bf16.gmra.mrb[0].mxu0 %v3140
        %v3351 = vpop.f32.mrb[0].mxu0
        %v3352 = vadd.f32 %v3135, %v3351
        %v3353 = vpop.f32.mrb[0].mxu0
        %v3354 = vpop.f32.mrb[0].mxu0
        %v3355 = vadd.f32 %v3135, %v3354
        %v3356 = vpop.f32.mrb[0].mxu0
        %3357 = vmatprep.mubr.bf16.mxu0 %v3144
        %3358 = vmatmul.mubr.bf16.gmra.mrb[0].mxu0 %v3143
        %v3359 = vpop.f32.mrb[0].mxu0
        %v3360 = vadd.f32 %v3135, %v3359
        %v3361 = vpop.f32.mrb[0].mxu0
        %v3362 = vpop.f32.mrb[0].mxu0
        %v3363 = vadd.f32 %v3135, %v3362
        %v3364 = vpop.f32.mrb[0].mxu0
        %3365 = vmatprep.mubr.bf16.mxu0 %v3147
        %3366 = vmatmul.mubr.bf16.gmra.mrb[0].mxu0 %v3146
        %v3367 = vpop.f32.mrb[0].mxu0
        %v3368 = vadd.f32 %v3135, %v3367
        %v3369 = vpop.f32.mrb[0].mxu0
        %v3370 = vpop.f32.mrb[0].mxu0
        %v3371 = vadd.f32 %v3135, %v3370
        %v3372 = vpop.f32.mrb[0].mxu0
        %3373 = vmatprep.mubr.bf16.mxu0 %v3150
        %3374 = vmatmul.mubr.bf16.gmra.mrb[0].mxu0 %v3149
        %v3375 = vpop.f32.mrb[0].mxu0
        %v3376 = vadd.f32 %v3135, %v3375
        %v3377 = vpop.f32.mrb[0].mxu0
        %v3378 = vpop.f32.mrb[0].mxu0
        %v3379 = vadd.f32 %v3135, %v3378
        %v3380 = vpop.f32.mrb[0].mxu0
        %3381 = vmatprep.mubr.bf16.mxu0 %v3153
        %3382 = vmatmul.mubr.bf16.gmra.mrb[0].mxu0 %v3152
        %v3383 = vpop.f32.mrb[0].mxu0
        %v3384 = vadd.f32 %v3135, %v3383
        %v3385 = vpop.f32.mrb[0].mxu0
        %v3386 = vpop.f32.mrb[0].mxu0
        %v3387 = vadd.f32 %v3135, %v3386
        %v3388 = vpop.f32.mrb[0].mxu0
        %3389 = vmatprep.mubr.bf16.mxu0 %v3156
        %3390 = vmatmul.mubr.bf16.gmra.mrb[0].mxu0 %v3155
        %v3391 = vpop.f32.mrb[0].mxu0
        %v3392 = vadd.f32 %v3135, %v3391
        %v3393 = vpop.f32.mrb[0].mxu0
        %v3394 = vpop.f32.mrb[0].mxu0
        %v3395 = vadd.f32 %v3135, %v3394
        %v3396 = vpop.f32.mrb[0].mxu0
        %3397 = vmatprep.mubr.bf16.mxu0 %v3159
        %3398 = vmatmul.mubr.bf16.gmra.mrb[0].mxu0 %v3158
        %v3399 = vpop.f32.mrb[0].mxu0
        %v3400 = vadd.f32 %v3135, %v3399
        %v3401 = vpop.f32.mrb[0].mxu0
        %v3402 = vpop.f32.mrb[0].mxu0
        %v3403 = vadd.f32 %v3135, %v3402
        %v3404 = vpop.f32.mrb[0].mxu0
        %3405 = vdwg.mxu0
        %3406 = vmatprep.subr.bf16.mxu0 0
        %3407 = vmatpush1.bf16.msra.mxu0 %v3265
        %3408 = vmatprep.subr.bf16.mxu0 0
        %3409 = vmatpush1.bf16.msra.mxu0 %v3266
        %3410 = vmatprep.subr.bf16.mxu0 0
        %3411 = vmatpush1.bf16.msra.mxu0 0
        %3412 = vmatprep.subr.bf16.mxu0 0
        %3413 = vmatpush1.bf16.msra.mxu0 0
        %3414 = vmatprep.subr.bf16.mxu0 0
        %3415 = vmatpush1.bf16.msra.mxu0 0
        %3416 = vmatprep.subr.bf16.mxu0 0
        %3417 = vmatpush1.bf16.msra.mxu0 0
        %3418 = vmatprep.subr.bf16.mxu0 0
        %3419 = vmatpush1.bf16.msra.mxu0 0
        %3420 = vmatprep.subr.bf16.mxu0 0
        %3421 = vmatpush1.bf16.msra.mxu0 0
        %3422 = vmatprep.subr.bf16.mxu0 0
        %3423 = vmatpush1.bf16.msra.mxu0 0
        %3424 = vmatprep.subr.bf16.mxu0 0
        %3425 = vmatpush1.bf16.msra.mxu0 0
        %3426 = vmatprep.subr.bf16.mxu0 0
        %3427 = vmatpush1.bf16.msra.mxu0 0
        %3428 = vmatprep.subr.bf16.mxu0 0
        %3429 = vmatpush1.bf16.msra.mxu0 0
        %3430 = vmatprep.subr.bf16.mxu0 0
        %3431 = vmatpush1.bf16.msra.mxu0 0
        %3432 = vmatprep.subr.bf16.mxu0 0
        %3433 = vmatpush1.bf16.msra.mxu0 0
        %3434 = vmatprep.subr.bf16.mxu0 0
        %3435 = vmatpush1.bf16.msra.mxu0 0
        %3436 = vmatprep.subr.bf16.mxu0 0
        %3437 = vmatpush1.bf16.msra.mxu0 0
        %3438 = vmatprep.mubr.bf16.mxu0 0
        %3439 = vmatmul.mubr.bf16.gmra.mrb[0].mxu0 %v3286
        %v3440 = vpop.f32.mrb[0].mxu0
        %v3441 = vadd.f32 %v3344, %v3440
        %v3442 = vpop.f32.mrb[0].mxu0
        %v3443 = vpop.f32.mrb[0].mxu0
        %v3444 = vadd.f32 %v3347, %v3443
        %v3445 = vpop.f32.mrb[0].mxu0
        %3446 = vmatprep.mubr.bf16.mxu0 0
        %3447 = vmatmul.mubr.bf16.gmra.mrb[0].mxu0 %v3289
        %v3448 = vpop.f32.mrb[0].mxu0
        %v3449 = vadd.f32 %v3352, %v3448
        %v3450 = vpop.f32.mrb[0].mxu0
        %v3451 = vpop.f32.mrb[0].mxu0
        %v3452 = vadd.f32 %v3355, %v3451
        %v3453 = vpop.f32.mrb[0].mxu0
        %3454 = vmatprep.mubr.bf16.mxu0 0
        %3455 = vmatmul.mubr.bf16.gmra.mrb[0].mxu0 %v3292
        %v3456 = vpop.f32.mrb[0].mxu0
        %v3457 = vadd.f32 %v3360, %v3456
        %v3458 = vpop.f32.mrb[0].mxu0
        %v3459 = vpop.f32.mrb[0].mxu0
        %v3460 = vadd.f32 %v3363, %v3459
        %v3461 = vpop.f32.mrb[0].mxu0
        %3462 = vmatprep.mubr.bf16.mxu0 0
        %3463 = vmatmul.mubr.bf16.gmra.mrb[0].mxu0 %v3295
        %v3464 = vpop.f32.mrb[0].mxu0
        %v3465 = vadd.f32 %v3368, %v3464
        %v3466 = vpop.f32.mrb[0].mxu0
        %v3467 = vpop.f32.mrb[0].mxu0
        %v3468 = vadd.f32 %v3371, %v3467
        %v3469 = vpop.f32.mrb[0].mxu0
        %3470 = vmatprep.mubr.bf16.mxu0 0
        %3471 = vmatmul.mubr.bf16.gmra.mrb[0].mxu0 %v3298
        %v3472 = vpop.f32.mrb[0].mxu0
        %v3473 = vadd.f32 %v3376, %v3472
        %v3474 = vpop.f32.mrb[0].mxu0
        %v3475 = vpop.f32.mrb[0].mxu0
        %v3476 = vadd.f32 %v3379, %v3475
        %v3477 = vpop.f32.mrb[0].mxu0
        %3478 = vmatprep.mubr.bf16.mxu0 0
        %3479 = vmatmul.mubr.bf16.gmra.mrb[0].mxu0 %v3301
        %v3480 = vpop.f32.mrb[0].mxu0
        %v3481 = vadd.f32 %v3384, %v3480
        %v3482 = vpop.f32.mrb[0].mxu0
        %v3483 = vpop.f32.mrb[0].mxu0
        %v3484 = vadd.f32 %v3387, %v3483
        %v3485 = vpop.f32.mrb[0].mxu0
        %3486 = vmatprep.mubr.bf16.mxu0 0
        %3487 = vmatmul.mubr.bf16.gmra.mrb[0].mxu0 %v3304
        %v3488 = vpop.f32.mrb[0].mxu0
        %v3489 = vadd.f32 %v3392, %v3488
        %v3490 = vpop.f32.mrb[0].mxu0
        %v3491 = vpop.f32.mrb[0].mxu0
        %v3492 = vadd.f32 %v3395, %v3491
        %v3493 = vpop.f32.mrb[0].mxu0
        %3494 = vmatprep.mubr.bf16.mxu0 0
        %3495 = vmatmul.mubr.bf16.gmra.mrb[0].mxu0 %v3307
        %v3496 = vpop.f32.mrb[0].mxu0
        %v3497 = vadd.f32 %v3400, %v3496
        %v3498 = vpop.f32.mrb[0].mxu0
        %v3499 = vpop.f32.mrb[0].mxu0
        %v3500 = vadd.f32 %v3403, %v3499
        %v3501 = vpop.f32.mrb[0].mxu0
        %3502 = vdwg.mxu0
        %v3503 = vmax.f32 %v3441, 0.0
        %v3504 = vmax.f32 %v3444, 0.0
        %v3505 = vmax.f32 %v3449, 0.0
        %v3506 = vmax.f32 %v3452, 0.0
        %v3507 = vmax.f32 %v3457, 0.0
        %v3508 = vmax.f32 %v3460, 0.0
        %v3509 = vmax.f32 %v3465, 0.0
        %v3510 = vmax.f32 %v3468, 0.0
        %v3511 = vmax.f32 %v3473, 0.0
        %v3512 = vmax.f32 %v3476, 0.0
        %v3513 = vmax.f32 %v3481, 0.0
        %v3514 = vmax.f32 %v3484, 0.0
        %v3515 = vmax.f32 %v3489, 0.0
        %v3516 = vmax.f32 %v3492, 0.0
        %v3517 = vmax.f32 %v3497, 0.0
        %v3518 = vmax.f32 %v3500, 0.0
        %3519 = vst.msk [vmem:[#allocation4] sm:$0xff] %vm2836, %v3503
        %3520 = vst.msk [vmem:[#allocation4 + $0x8] sm:$0xff] %vm2836, %v3504
        %3521 = vst.msk [vmem:[#allocation4 + $0x10] sm:$0xff] %vm2836, %v3505
        %3522 = vst.msk [vmem:[#allocation4 + $0x18] sm:$0xff] %vm2836, %v3506
        %3523 = vst.msk [vmem:[#allocation4 + $0x20] sm:$0xff] %vm2836, %v3507
        %3524 = vst.msk [vmem:[#allocation4 + $0x28] sm:$0xff] %vm2836, %v3508
        %3525 = vst.msk [vmem:[#allocation4 + $0x30] sm:$0xff] %vm2836, %v3509
        %3526 = vst.msk [vmem:[#allocation4 + $0x38] sm:$0xff] %vm2836, %v3510
        %3527 = vst.msk [vmem:[#allocation4 + $0x40] sm:$0xff] %vm2836, %v3511
        %3528 = vst.msk [vmem:[#allocation4 + $0x48] sm:$0xff] %vm2836, %v3512
        %3529 = vst.msk [vmem:[#allocation4 + $0x50] sm:$0xff] %vm2836, %v3513
        %3530 = vst.msk [vmem:[#allocation4 + $0x58] sm:$0xff] %vm2836, %v3514
        %3531 = vst.msk [vmem:[#allocation4 + $0x60] sm:$0xff] %vm2836, %v3515
        %3532 = vst.msk [vmem:[#allocation4 + $0x68] sm:$0xff] %vm2836, %v3516
        %3533 = vst.msk [vmem:[#allocation4 + $0x70] sm:$0xff] %vm2836, %v3517
        %3534 = vst.msk [vmem:[#allocation4 + $0x78] sm:$0xff] %vm2836, %v3518
        %v3535 = vld [vmem:[#allocation4] ss:$2 sm:$0xf]
        %s3536 = scalar_lea.vmem [#allocation4], 8
        %v3537 = vld [vmem:[%s3536] ss:$2 sm:$0xf]
        %s3538 = scalar_lea.vmem [#allocation4], 16
        %v3539 = vld [vmem:[%s3538] ss:$2 sm:$0xf]
        %s3540 = scalar_lea.vmem [#allocation4], 24
        %v3541 = vld [vmem:[%s3540] ss:$2 sm:$0xf]
        %s3542 = scalar_lea.vmem [#allocation4], 32
        %v3543 = vld [vmem:[%s3542] ss:$2 sm:$0xf]
        %s3544 = scalar_lea.vmem [#allocation4], 40
        %v3545 = vld [vmem:[%s3544] ss:$2 sm:$0xf]
        %s3546 = scalar_lea.vmem [#allocation4], 48
        %v3547 = vld [vmem:[%s3546] ss:$2 sm:$0xf]
        %s3548 = scalar_lea.vmem [#allocation4], 56
        %v3549 = vld [vmem:[%s3548] ss:$2 sm:$0xf]
        %s3550 = scalar_lea.vmem [#allocation4], 64
        %v3551 = vld [vmem:[%s3550] ss:$2 sm:$0xf]
        %s3552 = scalar_lea.vmem [#allocation4], 72
        %v3553 = vld [vmem:[%s3552] ss:$2 sm:$0xf]
        %s3554 = scalar_lea.vmem [#allocation4], 80
        %v3555 = vld [vmem:[%s3554] ss:$2 sm:$0xf]
        %s3556 = scalar_lea.vmem [#allocation4], 88
        %v3557 = vld [vmem:[%s3556] ss:$2 sm:$0xf]
        %s3558 = scalar_lea.vmem [#allocation4], 96
        %v3559 = vld [vmem:[%s3558] ss:$2 sm:$0xf]
        %s3560 = scalar_lea.vmem [#allocation4], 104
        %v3561 = vld [vmem:[%s3560] ss:$2 sm:$0xf]
        %s3562 = scalar_lea.vmem [#allocation4], 112
        %v3563 = vld [vmem:[%s3562] ss:$2 sm:$0xf]
        %s3564 = scalar_lea.vmem [#allocation4], 120
        %v3565 = vld [vmem:[%s3564] ss:$2 sm:$0xf]
        %s3566 = scalar_lea.vmem [#allocation4], 1
        %v3567 = vld [vmem:[%s3566] ss:$2 sm:$0xf]
        %s3568 = scalar_lea.vmem [#allocation4], 9
        %v3569 = vld [vmem:[%s3568] ss:$2 sm:$0xf]
        %s3570 = scalar_lea.vmem [#allocation4], 17
        %v3571 = vld [vmem:[%s3570] ss:$2 sm:$0xf]
        %s3572 = scalar_lea.vmem [#allocation4], 25
        %v3573 = vld [vmem:[%s3572] ss:$2 sm:$0xf]
        %s3574 = scalar_lea.vmem [#allocation4], 33
        %v3575 = vld [vmem:[%s3574] ss:$2 sm:$0xf]
        %s3576 = scalar_lea.vmem [#allocation4], 41
        %v3577 = vld [vmem:[%s3576] ss:$2 sm:$0xf]
        %s3578 = scalar_lea.vmem [#allocation4], 49
        %v3579 = vld [vmem:[%s3578] ss:$2 sm:$0xf]
        %s3580 = scalar_lea.vmem [#allocation4], 57
        %v3581 = vld [vmem:[%s3580] ss:$2 sm:$0xf]
        %s3582 = scalar_lea.vmem [#allocation4], 65
        %v3583 = vld [vmem:[%s3582] ss:$2 sm:$0xf]
        %s3584 = scalar_lea.vmem [#allocation4], 73
        %v3585 = vld [vmem:[%s3584] ss:$2 sm:$0xf]
        %s3586 = scalar_lea.vmem [#allocation4], 81
        %v3587 = vld [vmem:[%s3586] ss:$2 sm:$0xf]
        %s3588 = scalar_lea.vmem [#allocation4], 89
        %v3589 = vld [vmem:[%s3588] ss:$2 sm:$0xf]
        %s3590 = scalar_lea.vmem [#allocation4], 97
        %v3591 = vld [vmem:[%s3590] ss:$2 sm:$0xf]
        %s3592 = scalar_lea.vmem [#allocation4], 105
        %v3593 = vld [vmem:[%s3592] ss:$2 sm:$0xf]
        %s3594 = scalar_lea.vmem [#allocation4], 113
        %v3595 = vld [vmem:[%s3594] ss:$2 sm:$0xf]
        %s3596 = scalar_lea.vmem [#allocation4], 121
        %v3597 = vld [vmem:[%s3596] ss:$2 sm:$0xf]
        %v3598 = vmax.f32 %v3535, %v3567
        %v3599 = vmax.f32 %v3537, %v3569
        %v3600 = vmax.f32 %v3539, %v3571
        %v3601 = vmax.f32 %v3541, %v3573
        %v3602 = vmax.f32 %v3543, %v3575
        %v3603 = vmax.f32 %v3545, %v3577
        %v3604 = vmax.f32 %v3547, %v3579
        %v3605 = vmax.f32 %v3549, %v3581
        %v3606 = vmax.f32 %v3551, %v3583
        %v3607 = vmax.f32 %v3553, %v3585
        %v3608 = vmax.f32 %v3555, %v3587
        %v3609 = vmax.f32 %v3557, %v3589
        %v3610 = vmax.f32 %v3559, %v3591
        %v3611 = vmax.f32 %v3561, %v3593
        %v3612 = vmax.f32 %v3563, %v3595
        %v3613 = vmax.f32 %v3565, %v3597
        %v3614 = vmax.f32 %v3598, %v3599
        %v3615 = vmax.f32 %v3600, %v3601
        %v3616 = vmax.f32 %v3602, %v3603
        %v3617 = vmax.f32 %v3604, %v3605
        %v3618 = vmax.f32 %v3606, %v3607
        %v3619 = vmax.f32 %v3608, %v3609
        %v3620 = vmax.f32 %v3610, %v3611
        %v3621 = vmax.f32 %v3612, %v3613
        %vm3622 = vcmask 518144
        %3623 = vst.msk [vmem:[#allocation5] sm:$0x7] %vm3622, 0
        %3624 = vst.msk [vmem:[#allocation5 + $0x4] sm:$0x7] %vm3622, 0
        %3625 = vst.msk [vmem:[#allocation5 + $0x8] sm:$0x7] %vm3622, 0
        %3626 = vst.msk [vmem:[#allocation5 + $0xc] sm:$0x7] %vm3622, 0
        %3627 = vst.msk [vmem:[#allocation5 + $0x10] sm:$0x7] %vm3622, 0
        %3628 = vst.msk [vmem:[#allocation5 + $0x14] sm:$0x7] %vm3622, 0
        %3629 = vst.msk [vmem:[#allocation5 + $0x18] sm:$0x7] %vm3622, 0
        %3630 = vst.msk [vmem:[#allocation5 + $0x1c] sm:$0x7] %vm3622, 0
        %3631 = vst.msk [vmem:[#allocation5 + $0x20] sm:$0x7] %vm3622, 0
        %3632 = vst.msk [vmem:[#allocation5 + $0x24] sm:$0x7] %vm3622, 0
        %3633 = vst.msk [vmem:[#allocation5 + $0x28] sm:$0x7] %vm3622, 0
        %3634 = vst.msk [vmem:[#allocation5 + $0x2c] sm:$0x7] %vm3622, 0
        %v3635 = vpack.c.bf16 %v3614, %v3614
        %v3636 = vpack.c.bf16 %v3615, %v3615
        %v3637 = vpack.c.bf16 %v3616, %v3616
        %v3638 = vpack.c.bf16 %v3617, %v3617
        %v3639 = vpack.c.bf16 %v3618, %v3618
        %v3640 = vpack.c.bf16 %v3619, %v3619
        %v3641 = vpack.c.bf16 %v3620, %v3620
        %v3642 = vpack.c.bf16 %v3621, %v3621
        %v3651 = vunpack.c.l.b16 %v3635
        %v3652 = vunpack.c.l.b16 %v3636
        %v3653 = vunpack.c.l.b16 %v3637
        %v3654 = vunpack.c.l.b16 %v3638
        %v3655 = vunpack.c.l.b16 %v3639
        %v3656 = vunpack.c.l.b16 %v3640
        %v3657 = vunpack.c.l.b16 %v3641
        %v3658 = vunpack.c.l.b16 %v3642
        %v3659 = vpack.c.b16 %v3651, %v3651
        %v3660 = vpack.c.b16 %v3652, %v3652
        %v3661 = vpack.c.b16 %v3653, %v3653
        %v3662 = vpack.c.b16 %v3654, %v3654
        %v3663 = vpack.c.b16 %v3655, %v3655
        %v3664 = vpack.c.b16 %v3656, %v3656
        %v3665 = vpack.c.b16 %v3657, %v3657
        %v3666 = vpack.c.b16 %v3658, %v3658
        %v3668 = vshrl.u32 %v3659, 16
        %v3670 = vrot.slane %v3668, 7
        %v3671 = vshll.u32 %v3659, 16
        %v3673 = vor.u32 %v3670, %v3671
        %v3675 = vshrl.u32 %v3660, 16
        %v3677 = vrot.slane %v3675, 7
        %v3678 = vshll.u32 %v3660, 16
        %v3680 = vor.u32 %v3677, %v3678
        %v3682 = vshrl.u32 %v3661, 16
        %v3684 = vrot.slane %v3682, 7
        %v3685 = vshll.u32 %v3661, 16
        %v3687 = vor.u32 %v3684, %v3685
        %v3689 = vshrl.u32 %v3662, 16
        %v3691 = vrot.slane %v3689, 7
        %v3692 = vshll.u32 %v3662, 16
        %v3694 = vor.u32 %v3691, %v3692
        %v3696 = vshrl.u32 %v3663, 16
        %v3698 = vrot.slane %v3696, 7
        %v3699 = vshll.u32 %v3663, 16
        %v3701 = vor.u32 %v3698, %v3699
        %v3703 = vshrl.u32 %v3664, 16
        %v3705 = vrot.slane %v3703, 7
        %v3706 = vshll.u32 %v3664, 16
        %v3708 = vor.u32 %v3705, %v3706
        %v3710 = vshrl.u32 %v3665, 16
        %v3712 = vrot.slane %v3710, 7
        %v3713 = vshll.u32 %v3665, 16
        %v3715 = vor.u32 %v3712, %v3713
        %v3717 = vshrl.u32 %v3666, 16
        %v3719 = vrot.slane %v3717, 7
        %v3720 = vshll.u32 %v3666, 16
        %v3722 = vor.u32 %v3719, %v3720
        %s3731 = scalar_lea.vmem [#allocation5], 4
        %vm3732 = vcmask 518144
        %vm3733 = vsmask.f32 2306
        %vm3734 = vmand %vm3732, %vm3733
        %v3735 = vld [vmem:[%s3731] sm:$0x7]
        %v3736 = vsel %vm3734, %v3673, %v3735
        %3737 = vst [vmem:[%s3731] sm:$0x7] %v3736
        %v3738 = vld [vmem:[%s3731 + $0x4] sm:$0x7]
        %v3739 = vsel %vm3734, %v3680, %v3738
        %3740 = vst [vmem:[%s3731 + $0x4] sm:$0x7] %v3739
        %v3741 = vld [vmem:[%s3731 + $0x8] sm:$0x7]
        %v3742 = vsel %vm3734, %v3687, %v3741
        %3743 = vst [vmem:[%s3731 + $0x8] sm:$0x7] %v3742
        %v3744 = vld [vmem:[%s3731 + $0xc] sm:$0x7]
        %v3745 = vsel %vm3734, %v3694, %v3744
        %3746 = vst [vmem:[%s3731 + $0xc] sm:$0x7] %v3745
        %v3747 = vld [vmem:[%s3731 + $0x18] sm:$0x7]
        %v3748 = vsel %vm3734, %v3701, %v3747
        %3749 = vst [vmem:[%s3731 + $0x18] sm:$0x7] %v3748
        %v3750 = vld [vmem:[%s3731 + $0x1c] sm:$0x7]
        %v3751 = vsel %vm3734, %v3708, %v3750
        %3752 = vst [vmem:[%s3731 + $0x1c] sm:$0x7] %v3751
        %v3753 = vld [vmem:[%s3731 + $0x20] sm:$0x7]
        %v3754 = vsel %vm3734, %v3715, %v3753
        %3755 = vst [vmem:[%s3731 + $0x20] sm:$0x7] %v3754
        %v3756 = vld [vmem:[%s3731 + $0x24] sm:$0x7]
        %v3757 = vsel %vm3734, %v3722, %v3756
        %3758 = vst [vmem:[%s3731 + $0x24] sm:$0x7] %v3757
        %v3759 = vld [vmem:[#allocation5] sm:$0x3]
        %v3760 = vld [vmem:[#allocation5 + $0x4] sm:$0x3]
        %v3761 = vld [vmem:[#allocation5 + $0x8] sm:$0x3]
        %v3762 = vld [vmem:[#allocation5 + $0xc] sm:$0x3]
        %v3763 = vld [vmem:[#allocation5 + $0x18] sm:$0x3]
        %v3764 = vld [vmem:[#allocation5 + $0x1c] sm:$0x3]
        %v3765 = vld [vmem:[#allocation5 + $0x20] sm:$0x3]
        %v3766 = vld [vmem:[#allocation5 + $0x24] sm:$0x3]
        %v3767 = vld [vmem:[#allocation5] sm:$0x7]
        %v3768 = vld [vmem:[#allocation5 + $0x4] sm:$0x7]
        %v3769 = vld [vmem:[#allocation5 + $0x8] sm:$0x7]
        %v3770 = vld [vmem:[#allocation5 + $0xc] sm:$0x7]
        %v3771 = vld [vmem:[#allocation5 + $0x18] sm:$0x7]
        %v3772 = vld [vmem:[#allocation5 + $0x1c] sm:$0x7]
        %v3773 = vld [vmem:[#allocation5 + $0x20] sm:$0x7]
        %v3774 = vld [vmem:[#allocation5 + $0x24] sm:$0x7]
        %v3775 = vld [vmem:[#allocation5] sm:$0x6]
        %v3776 = vld [vmem:[#allocation5 + $0x4] sm:$0x6]
        %v3777 = vld [vmem:[#allocation5 + $0x8] sm:$0x6]
        %v3778 = vld [vmem:[#allocation5 + $0xc] sm:$0x6]
        %v3779 = vld [vmem:[#allocation5 + $0x18] sm:$0x6]
        %v3780 = vld [vmem:[#allocation5 + $0x1c] sm:$0x6]
        %v3781 = vld [vmem:[#allocation5 + $0x20] sm:$0x6]
        %v3782 = vld [vmem:[#allocation5 + $0x24] sm:$0x6]
        %v3783 = vld [vmem:[%s3731] sm:$0x3]
        %v3784 = vld [vmem:[%s3731 + $0x4] sm:$0x3]
        %v3785 = vld [vmem:[%s3731 + $0x8] sm:$0x3]
        %v3786 = vld [vmem:[%s3731 + $0xc] sm:$0x3]
        %v3787 = vld [vmem:[%s3731 + $0x18] sm:$0x3]
        %v3788 = vld [vmem:[%s3731 + $0x1c] sm:$0x3]
        %v3789 = vld [vmem:[%s3731 + $0x20] sm:$0x3]
        %v3790 = vld [vmem:[%s3731 + $0x24] sm:$0x3]
        %v3791 = vld [vmem:[%s3731] sm:$0x7]
        %v3792 = vld [vmem:[%s3731 + $0x4] sm:$0x7]
        %v3793 = vld [vmem:[%s3731 + $0x8] sm:$0x7]
        %v3794 = vld [vmem:[%s3731 + $0xc] sm:$0x7]
        %v3795 = vld [vmem:[%s3731 + $0x18] sm:$0x7]
        %v3796 = vld [vmem:[%s3731 + $0x1c] sm:$0x7]
        %v3797 = vld [vmem:[%s3731 + $0x20] sm:$0x7]
        %v3798 = vld [vmem:[%s3731 + $0x24] sm:$0x7]
        %v3799 = vld [vmem:[%s3731] sm:$0x6]
        %v3800 = vld [vmem:[%s3731 + $0x4] sm:$0x6]
        %v3801 = vld [vmem:[%s3731 + $0x8] sm:$0x6]
        %v3802 = vld [vmem:[%s3731 + $0xc] sm:$0x6]
        %v3803 = vld [vmem:[%s3731 + $0x18] sm:$0x6]
        %v3804 = vld [vmem:[%s3731 + $0x1c] sm:$0x6]
        %v3805 = vld [vmem:[%s3731 + $0x20] sm:$0x6]
        %v3806 = vld [vmem:[%s3731 + $0x24] sm:$0x6]
        %s3807 = scalar_lea.vmem [#allocation5], 8
        %v3808 = vld [vmem:[%s3807] sm:$0x3]
        %v3809 = vld [vmem:[%s3807 + $0x4] sm:$0x3]
        %v3810 = vld [vmem:[%s3807 + $0x8] sm:$0x3]
        %v3811 = vld [vmem:[%s3807 + $0xc] sm:$0x3]
        %v3812 = vld [vmem:[%s3807 + $0x18] sm:$0x3]
        %v3813 = vld [vmem:[%s3807 + $0x1c] sm:$0x3]
        %v3814 = vld [vmem:[%s3807 + $0x20] sm:$0x3]
        %v3815 = vld [vmem:[%s3807 + $0x24] sm:$0x3]
        %v3816 = vld [vmem:[%s3807] sm:$0x7]
        %v3817 = vld [vmem:[%s3807 + $0x4] sm:$0x7]
        %v3818 = vld [vmem:[%s3807 + $0x8] sm:$0x7]
        %v3819 = vld [vmem:[%s3807 + $0xc] sm:$0x7]
        %v3820 = vld [vmem:[%s3807 + $0x18] sm:$0x7]
        %v3821 = vld [vmem:[%s3807 + $0x1c] sm:$0x7]
        %v3822 = vld [vmem:[%s3807 + $0x20] sm:$0x7]
        %v3823 = vld [vmem:[%s3807 + $0x24] sm:$0x7]
        %v3824 = vld [vmem:[%s3807] sm:$0x6]
        %v3825 = vld [vmem:[%s3807 + $0x4] sm:$0x6]
        %v3826 = vld [vmem:[%s3807 + $0x8] sm:$0x6]
        %v3827 = vld [vmem:[%s3807 + $0xc] sm:$0x6]
        %v3828 = vld [vmem:[%s3807 + $0x18] sm:$0x6]
        %v3829 = vld [vmem:[%s3807 + $0x1c] sm:$0x6]
        %v3830 = vld [vmem:[%s3807 + $0x20] sm:$0x6]
        %v3831 = vld [vmem:[%s3807 + $0x24] sm:$0x6]
        %v3840 = vunpack.c.l.b16 %v3767
        %v3841 = vunpack.c.l.b16 %v3768
        %v3842 = vunpack.c.l.b16 %v3769
        %v3843 = vunpack.c.l.b16 %v3770
        %v3844 = vunpack.c.l.b16 %v3771
        %v3845 = vunpack.c.l.b16 %v3772
        %v3846 = vunpack.c.l.b16 %v3773
        %v3847 = vunpack.c.l.b16 %v3774
        %v3848 = vpack.c.b16 %v3840, %v3840
        %v3849 = vpack.c.b16 %v3841, %v3841
        %v3850 = vpack.c.b16 %v3842, %v3842
        %v3851 = vpack.c.b16 %v3843, %v3843
        %v3852 = vpack.c.b16 %v3844, %v3844
        %v3853 = vpack.c.b16 %v3845, %v3845
        %v3854 = vpack.c.b16 %v3846, %v3846
        %v3855 = vpack.c.b16 %v3847, %v3847
        %v3857 = vshrl.u32 %v3848, 16
        %v3859 = vshll.u32 %v3848, 16
        %v3861 = vrot.slane %v3859, 1
        %v3862 = vor.u32 %v3857, %v3861
        %v3864 = vshrl.u32 %v3849, 16
        %v3866 = vshll.u32 %v3849, 16
        %v3868 = vrot.slane %v3866, 1
        %v3869 = vor.u32 %v3864, %v3868
        %v3871 = vshrl.u32 %v3850, 16
        %v3873 = vshll.u32 %v3850, 16
        %v3875 = vrot.slane %v3873, 1
        %v3876 = vor.u32 %v3871, %v3875
        %v3878 = vshrl.u32 %v3851, 16
        %v3880 = vshll.u32 %v3851, 16
        %v3882 = vrot.slane %v3880, 1
        %v3883 = vor.u32 %v3878, %v3882
        %v3885 = vshrl.u32 %v3852, 16
        %v3887 = vshll.u32 %v3852, 16
        %v3889 = vrot.slane %v3887, 1
        %v3890 = vor.u32 %v3885, %v3889
        %v3892 = vshrl.u32 %v3853, 16
        %v3894 = vshll.u32 %v3853, 16
        %v3896 = vrot.slane %v3894, 1
        %v3897 = vor.u32 %v3892, %v3896
        %v3899 = vshrl.u32 %v3854, 16
        %v3901 = vshll.u32 %v3854, 16
        %v3903 = vrot.slane %v3901, 1
        %v3904 = vor.u32 %v3899, %v3903
        %v3906 = vshrl.u32 %v3855, 16
        %v3908 = vshll.u32 %v3855, 16
        %v3910 = vrot.slane %v3908, 1
        %v3911 = vor.u32 %v3906, %v3910
        %3912 = vrot.lane.b32.xlu0 %v3862, 64
        %v3913 = vpop.permute.xlu0 %3912
        %3914 = vrot.lane.b32.xlu0 %v3869, 64
        %v3915 = vpop.permute.xlu0 %3914
        %3916 = vrot.lane.b32.xlu0 %v3876, 64
        %v3917 = vpop.permute.xlu0 %3916
        %3918 = vrot.lane.b32.xlu0 %v3883, 64
        %v3919 = vpop.permute.xlu0 %3918
        %3920 = vrot.lane.b32.xlu0 %v3890, 64
        %v3921 = vpop.permute.xlu0 %3920
        %3922 = vrot.lane.b32.xlu0 %v3897, 64
        %v3923 = vpop.permute.xlu0 %3922
        %3924 = vrot.lane.b32.xlu0 %v3904, 64
        %v3925 = vpop.permute.xlu0 %3924
        %3926 = vrot.lane.b32.xlu0 %v3911, 64
        %v3927 = vpop.permute.xlu0 %3926
        %v3936 = vunpack.c.l.b16 %v3775
        %v3937 = vunpack.c.l.b16 %v3776
        %v3938 = vunpack.c.l.b16 %v3777
        %v3939 = vunpack.c.l.b16 %v3778
        %v3940 = vunpack.c.l.b16 %v3779
        %v3941 = vunpack.c.l.b16 %v3780
        %v3942 = vunpack.c.l.b16 %v3781
        %v3943 = vunpack.c.l.b16 %v3782
        %v3944 = vpack.c.b16 %v3936, %v3936
        %v3945 = vpack.c.b16 %v3937, %v3937
        %v3946 = vpack.c.b16 %v3938, %v3938
        %v3947 = vpack.c.b16 %v3939, %v3939
        %v3948 = vpack.c.b16 %v3940, %v3940
        %v3949 = vpack.c.b16 %v3941, %v3941
        %v3950 = vpack.c.b16 %v3942, %v3942
        %v3951 = vpack.c.b16 %v3943, %v3943
        %v3952 = vrot.slane %v3944, 1
        %v3953 = vrot.slane %v3945, 1
        %v3954 = vrot.slane %v3946, 1
        %v3955 = vrot.slane %v3947, 1
        %v3956 = vrot.slane %v3948, 1
        %v3957 = vrot.slane %v3949, 1
        %v3958 = vrot.slane %v3950, 1
        %v3959 = vrot.slane %v3951, 1
        %v3968 = vunpack.c.l.b16 %v3783
        %v3969 = vunpack.c.l.b16 %v3784
        %v3970 = vunpack.c.l.b16 %v3785
        %v3971 = vunpack.c.l.b16 %v3786
        %v3972 = vunpack.c.l.b16 %v3787
        %v3973 = vunpack.c.l.b16 %v3788
        %v3974 = vunpack.c.l.b16 %v3789
        %v3975 = vunpack.c.l.b16 %v3790
        %v3976 = vpack.c.b16 %v3968, %v3968
        %v3977 = vpack.c.b16 %v3969, %v3969
        %v3978 = vpack.c.b16 %v3970, %v3970
        %v3979 = vpack.c.b16 %v3971, %v3971
        %v3980 = vpack.c.b16 %v3972, %v3972
        %v3981 = vpack.c.b16 %v3973, %v3973
        %v3982 = vpack.c.b16 %v3974, %v3974
        %v3983 = vpack.c.b16 %v3975, %v3975
        %3984 = vrot.lane.b32.xlu0 %v3976, 64
        %v3985 = vpop.permute.xlu0 %3984
        %3986 = vrot.lane.b32.xlu0 %v3977, 64
        %v3987 = vpop.permute.xlu0 %3986
        %3988 = vrot.lane.b32.xlu0 %v3978, 64
        %v3989 = vpop.permute.xlu0 %3988
        %3990 = vrot.lane.b32.xlu0 %v3979, 64
        %v3991 = vpop.permute.xlu0 %3990
        %3992 = vrot.lane.b32.xlu0 %v3980, 64
        %v3993 = vpop.permute.xlu0 %3992
        %3994 = vrot.lane.b32.xlu0 %v3981, 64
        %v3995 = vpop.permute.xlu0 %3994
        %3996 = vrot.lane.b32.xlu0 %v3982, 64
        %v3997 = vpop.permute.xlu0 %3996
        %3998 = vrot.lane.b32.xlu0 %v3983, 64
        %v3999 = vpop.permute.xlu0 %3998
        %v4008 = vunpack.c.l.b16 %v3791
        %v4009 = vunpack.c.l.b16 %v3792
        %v4010 = vunpack.c.l.b16 %v3793
        %v4011 = vunpack.c.l.b16 %v3794
        %v4012 = vunpack.c.l.b16 %v3795
        %v4013 = vunpack.c.l.b16 %v3796
        %v4014 = vunpack.c.l.b16 %v3797
        %v4015 = vunpack.c.l.b16 %v3798
        %v4016 = vpack.c.b16 %v4008, %v4008
        %v4017 = vpack.c.b16 %v4009, %v4009
        %v4018 = vpack.c.b16 %v4010, %v4010
        %v4019 = vpack.c.b16 %v4011, %v4011
        %v4020 = vpack.c.b16 %v4012, %v4012
        %v4021 = vpack.c.b16 %v4013, %v4013
        %v4022 = vpack.c.b16 %v4014, %v4014
        %v4023 = vpack.c.b16 %v4015, %v4015
        %v4025 = vshrl.u32 %v4016, 16
        %v4027 = vshll.u32 %v4016, 16
        %v4029 = vrot.slane %v4027, 1
        %v4030 = vor.u32 %v4025, %v4029
        %v4032 = vshrl.u32 %v4017, 16
        %v4034 = vshll.u32 %v4017, 16
        %v4036 = vrot.slane %v4034, 1
        %v4037 = vor.u32 %v4032, %v4036
        %v4039 = vshrl.u32 %v4018, 16
        %v4041 = vshll.u32 %v4018, 16
        %v4043 = vrot.slane %v4041, 1
        %v4044 = vor.u32 %v4039, %v4043
        %v4046 = vshrl.u32 %v4019, 16
        %v4048 = vshll.u32 %v4019, 16
        %v4050 = vrot.slane %v4048, 1
        %v4051 = vor.u32 %v4046, %v4050
        %v4053 = vshrl.u32 %v4020, 16
        %v4055 = vshll.u32 %v4020, 16
        %v4057 = vrot.slane %v4055, 1
        %v4058 = vor.u32 %v4053, %v4057
        %v4060 = vshrl.u32 %v4021, 16
        %v4062 = vshll.u32 %v4021, 16
        %v4064 = vrot.slane %v4062, 1
        %v4065 = vor.u32 %v4060, %v4064
        %v4067 = vshrl.u32 %v4022, 16
        %v4069 = vshll.u32 %v4022, 16
        %v4071 = vrot.slane %v4069, 1
        %v4072 = vor.u32 %v4067, %v4071
        %v4074 = vshrl.u32 %v4023, 16
        %v4076 = vshll.u32 %v4023, 16
        %v4078 = vrot.slane %v4076, 1
        %v4079 = vor.u32 %v4074, %v4078
        %v4088 = vunpack.c.l.b16 %v3799
        %v4089 = vunpack.c.l.b16 %v3800
        %v4090 = vunpack.c.l.b16 %v3801
        %v4091 = vunpack.c.l.b16 %v3802
        %v4092 = vunpack.c.l.b16 %v3803
        %v4093 = vunpack.c.l.b16 %v3804
        %v4094 = vunpack.c.l.b16 %v3805
        %v4095 = vunpack.c.l.b16 %v3806
        %v4096 = vpack.c.b16 %v4088, %v4088
        %v4097 = vpack.c.b16 %v4089, %v4089
        %v4098 = vpack.c.b16 %v4090, %v4090
        %v4099 = vpack.c.b16 %v4091, %v4091
        %v4100 = vpack.c.b16 %v4092, %v4092
        %v4101 = vpack.c.b16 %v4093, %v4093
        %v4102 = vpack.c.b16 %v4094, %v4094
        %v4103 = vpack.c.b16 %v4095, %v4095
        %v4104 = vrot.slane %v4096, 1
        %v4105 = vrot.slane %v4097, 1
        %v4106 = vrot.slane %v4098, 1
        %v4107 = vrot.slane %v4099, 1
        %v4108 = vrot.slane %v4100, 1
        %v4109 = vrot.slane %v4101, 1
        %v4110 = vrot.slane %v4102, 1
        %v4111 = vrot.slane %v4103, 1
        %4112 = vrot.lane.b32.xlu0 %v4104, 64
        %v4113 = vpop.permute.xlu0 %4112
        %4114 = vrot.lane.b32.xlu0 %v4105, 64
        %v4115 = vpop.permute.xlu0 %4114
        %4116 = vrot.lane.b32.xlu0 %v4106, 64
        %v4117 = vpop.permute.xlu0 %4116
        %4118 = vrot.lane.b32.xlu0 %v4107, 64
        %v4119 = vpop.permute.xlu0 %4118
        %4120 = vrot.lane.b32.xlu0 %v4108, 64
        %v4121 = vpop.permute.xlu0 %4120
        %4122 = vrot.lane.b32.xlu0 %v4109, 64
        %v4123 = vpop.permute.xlu0 %4122
        %4124 = vrot.lane.b32.xlu0 %v4110, 64
        %v4125 = vpop.permute.xlu0 %4124
        %4126 = vrot.lane.b32.xlu0 %v4111, 64
        %v4127 = vpop.permute.xlu0 %4126
        %v4136 = vunpack.c.l.b16 %v3816
        %v4137 = vunpack.c.l.b16 %v3817
        %v4138 = vunpack.c.l.b16 %v3818
        %v4139 = vunpack.c.l.b16 %v3819
        %v4140 = vunpack.c.l.b16 %v3820
        %v4141 = vunpack.c.l.b16 %v3821
        %v4142 = vunpack.c.l.b16 %v3822
        %v4143 = vunpack.c.l.b16 %v3823
        %v4144 = vpack.c.b16 %v4136, %v4136
        %v4145 = vpack.c.b16 %v4137, %v4137
        %v4146 = vpack.c.b16 %v4138, %v4138
        %v4147 = vpack.c.b16 %v4139, %v4139
        %v4148 = vpack.c.b16 %v4140, %v4140
        %v4149 = vpack.c.b16 %v4141, %v4141
        %v4150 = vpack.c.b16 %v4142, %v4142
        %v4151 = vpack.c.b16 %v4143, %v4143
        %v4153 = vshrl.u32 %v4144, 16
        %v4155 = vshll.u32 %v4144, 16
        %v4157 = vrot.slane %v4155, 1
        %v4158 = vor.u32 %v4153, %v4157
        %v4160 = vshrl.u32 %v4145, 16
        %v4162 = vshll.u32 %v4145, 16
        %v4164 = vrot.slane %v4162, 1
        %v4165 = vor.u32 %v4160, %v4164
        %v4167 = vshrl.u32 %v4146, 16
        %v4169 = vshll.u32 %v4146, 16
        %v4171 = vrot.slane %v4169, 1
        %v4172 = vor.u32 %v4167, %v4171
        %v4174 = vshrl.u32 %v4147, 16
        %v4176 = vshll.u32 %v4147, 16
        %v4178 = vrot.slane %v4176, 1
        %v4179 = vor.u32 %v4174, %v4178
        %v4181 = vshrl.u32 %v4148, 16
        %v4183 = vshll.u32 %v4148, 16
        %v4185 = vrot.slane %v4183, 1
        %v4186 = vor.u32 %v4181, %v4185
        %v4188 = vshrl.u32 %v4149, 16
        %v4190 = vshll.u32 %v4149, 16
        %v4192 = vrot.slane %v4190, 1
        %v4193 = vor.u32 %v4188, %v4192
        %v4195 = vshrl.u32 %v4150, 16
        %v4197 = vshll.u32 %v4150, 16
        %v4199 = vrot.slane %v4197, 1
        %v4200 = vor.u32 %v4195, %v4199
        %v4202 = vshrl.u32 %v4151, 16
        %v4204 = vshll.u32 %v4151, 16
        %v4206 = vrot.slane %v4204, 1
        %v4207 = vor.u32 %v4202, %v4206
        %4208 = vrot.lane.b32.xlu0 %v4158, 64
        %v4209 = vpop.permute.xlu0 %4208
        %4210 = vrot.lane.b32.xlu0 %v4165, 64
        %v4211 = vpop.permute.xlu0 %4210
        %4212 = vrot.lane.b32.xlu0 %v4172, 64
        %v4213 = vpop.permute.xlu0 %4212
        %4214 = vrot.lane.b32.xlu0 %v4179, 64
        %v4215 = vpop.permute.xlu0 %4214
        %4216 = vrot.lane.b32.xlu0 %v4186, 64
        %v4217 = vpop.permute.xlu0 %4216
        %4218 = vrot.lane.b32.xlu0 %v4193, 64
        %v4219 = vpop.permute.xlu0 %4218
        %4220 = vrot.lane.b32.xlu0 %v4200, 64
        %v4221 = vpop.permute.xlu0 %4220
        %4222 = vrot.lane.b32.xlu0 %v4207, 64
        %v4223 = vpop.permute.xlu0 %4222
        %v4232 = vunpack.c.l.b16 %v3824
        %v4233 = vunpack.c.l.b16 %v3825
        %v4234 = vunpack.c.l.b16 %v3826
        %v4235 = vunpack.c.l.b16 %v3827
        %v4236 = vunpack.c.l.b16 %v3828
        %v4237 = vunpack.c.l.b16 %v3829
        %v4238 = vunpack.c.l.b16 %v3830
        %v4239 = vunpack.c.l.b16 %v3831
        %v4240 = vpack.c.b16 %v4232, %v4232
        %v4241 = vpack.c.b16 %v4233, %v4233
        %v4242 = vpack.c.b16 %v4234, %v4234
        %v4243 = vpack.c.b16 %v4235, %v4235
        %v4244 = vpack.c.b16 %v4236, %v4236
        %v4245 = vpack.c.b16 %v4237, %v4237
        %v4246 = vpack.c.b16 %v4238, %v4238
        %v4247 = vpack.c.b16 %v4239, %v4239
        %v4248 = vrot.slane %v4240, 1
        %v4249 = vrot.slane %v4241, 1
        %v4250 = vrot.slane %v4242, 1
        %v4251 = vrot.slane %v4243, 1
        %v4252 = vrot.slane %v4244, 1
        %v4253 = vrot.slane %v4245, 1
        %v4254 = vrot.slane %v4246, 1
        %v4255 = vrot.slane %v4247, 1
        %v4258 = vsel %vm2836, %v3759, %v3913
        %v4261 = vsel %vm2836, %v3760, %v3915
        %v4264 = vsel %vm2836, %v3761, %v3917
        %v4267 = vsel %vm2836, %v3762, %v3919
        %v4270 = vsel %vm2836, %v3763, %v3921
        %v4273 = vsel %vm2836, %v3764, %v3923
        %v4276 = vsel %vm2836, %v3765, %v3925
        %v4279 = vsel %vm2836, %v3766, %v3927
        %v4282 = vsel %vm2836, %v3952, %v3985
        %v4285 = vsel %vm2836, %v3953, %v3987
        %v4288 = vsel %vm2836, %v3954, %v3989
        %v4291 = vsel %vm2836, %v3955, %v3991
        %v4294 = vsel %vm2836, %v3956, %v3993
        %v4297 = vsel %vm2836, %v3957, %v3995
        %v4300 = vsel %vm2836, %v3958, %v3997
        %v4303 = vsel %vm2836, %v3959, %v3999
        %v4306 = vsel %vm2836, %v4030, %v4113
        %v4309 = vsel %vm2836, %v4037, %v4115
        %v4312 = vsel %vm2836, %v4044, %v4117
        %v4315 = vsel %vm2836, %v4051, %v4119
        %v4318 = vsel %vm2836, %v4058, %v4121
        %v4321 = vsel %vm2836, %v4065, %v4123
        %v4324 = vsel %vm2836, %v4072, %v4125
        %v4327 = vsel %vm2836, %v4079, %v4127
        %v4330 = vsel %vm2836, %v3808, %v4209
        %v4333 = vsel %vm2836, %v3809, %v4211
        %v4336 = vsel %vm2836, %v3810, %v4213
        %v4339 = vsel %vm2836, %v3811, %v4215
        %v4342 = vsel %vm2836, %v3812, %v4217
        %v4345 = vsel %vm2836, %v3813, %v4219
        %v4348 = vsel %vm2836, %v3814, %v4221
        %v4351 = vsel %vm2836, %v3815, %v4223
        %v4384 = vcombine.low %v4258, %v4282
        %v4385 = vcombine.low %v4306, %v4330
        %v4387 = vunpack.c.l.s4 1983009808
        %v4388 = vunpack.c.0.s8 %v4387
        %v4389 = vlaneseq
        %v4390 = vshrl.u32 %v4389, 7
        %v4391 = vsub.s32 %v4388, %v4390
        %v4392 = vrot.slane %v4384, %v4391
        %v4394 = vunpack.c.l.s4 1983009808
        %v4395 = vunpack.c.0.s8 %v4394
        %v4396 = vlaneseq
        %v4397 = vshrl.u32 %v4396, 7
        %v4398 = vsub.s32 %v4395, %v4397
        %v4399 = vrot.slane %v4385, %v4398
        %v4400 = vcombine.low %v4392, %v4399
        %v4402 = vunpack.c.l.s4 1983009808
        %v4403 = vunpack.c.0.s8 %v4402
        %v4404 = vlaneseq
        %v4405 = vshrl.u32 %v4404, 7
        %v4406 = vsub.s32 %v4403, %v4405
        %v4407 = vrot.slane %v4248, %v4406
        %v4408 = vcombine.low %v4261, %v4285
        %v4409 = vcombine.low %v4309, %v4333
        %v4411 = vunpack.c.l.s4 1983009808
        %v4412 = vunpack.c.0.s8 %v4411
        %v4413 = vlaneseq
        %v4414 = vshrl.u32 %v4413, 7
        %v4415 = vsub.s32 %v4412, %v4414
        %v4416 = vrot.slane %v4408, %v4415
        %v4418 = vunpack.c.l.s4 1983009808
        %v4419 = vunpack.c.0.s8 %v4418
        %v4420 = vlaneseq
        %v4421 = vshrl.u32 %v4420, 7
        %v4422 = vsub.s32 %v4419, %v4421
        %v4423 = vrot.slane %v4409, %v4422
        %v4424 = vcombine.low %v4416, %v4423
        %v4426 = vunpack.c.l.s4 1983009808
        %v4427 = vunpack.c.0.s8 %v4426
        %v4428 = vlaneseq
        %v4429 = vshrl.u32 %v4428, 7
        %v4430 = vsub.s32 %v4427, %v4429
        %v4431 = vrot.slane %v4249, %v4430
        %v4432 = vcombine.low %v4264, %v4288
        %v4433 = vcombine.low %v4312, %v4336
        %v4435 = vunpack.c.l.s4 1983009808
        %v4436 = vunpack.c.0.s8 %v4435
        %v4437 = vlaneseq
        %v4438 = vshrl.u32 %v4437, 7
        %v4439 = vsub.s32 %v4436, %v4438
        %v4440 = vrot.slane %v4432, %v4439
        %v4442 = vunpack.c.l.s4 1983009808
        %v4443 = vunpack.c.0.s8 %v4442
        %v4444 = vlaneseq
        %v4445 = vshrl.u32 %v4444, 7
        %v4446 = vsub.s32 %v4443, %v4445
        %v4447 = vrot.slane %v4433, %v4446
        %v4448 = vcombine.low %v4440, %v4447
        %v4450 = vunpack.c.l.s4 1983009808
        %v4451 = vunpack.c.0.s8 %v4450
        %v4452 = vlaneseq
        %v4453 = vshrl.u32 %v4452, 7
        %v4454 = vsub.s32 %v4451, %v4453
        %v4455 = vrot.slane %v4250, %v4454
        %v4456 = vcombine.low %v4267, %v4291
        %v4457 = vcombine.low %v4315, %v4339
        %v4459 = vunpack.c.l.s4 1983009808
        %v4460 = vunpack.c.0.s8 %v4459
        %v4461 = vlaneseq
        %v4462 = vshrl.u32 %v4461, 7
        %v4463 = vsub.s32 %v4460, %v4462
        %v4464 = vrot.slane %v4456, %v4463
        %v4466 = vunpack.c.l.s4 1983009808
        %v4467 = vunpack.c.0.s8 %v4466
        %v4468 = vlaneseq
        %v4469 = vshrl.u32 %v4468, 7
        %v4470 = vsub.s32 %v4467, %v4469
        %v4471 = vrot.slane %v4457, %v4470
        %v4472 = vcombine.low %v4464, %v4471
        %v4474 = vunpack.c.l.s4 1983009808
        %v4475 = vunpack.c.0.s8 %v4474
        %v4476 = vlaneseq
        %v4477 = vshrl.u32 %v4476, 7
        %v4478 = vsub.s32 %v4475, %v4477
        %v4479 = vrot.slane %v4251, %v4478
        %v4480 = vcombine.low %v4270, %v4294
        %v4481 = vcombine.low %v4318, %v4342
        %v4483 = vunpack.c.l.s4 1983009808
        %v4484 = vunpack.c.0.s8 %v4483
        %v4485 = vlaneseq
        %v4486 = vshrl.u32 %v4485, 7
        %v4487 = vsub.s32 %v4484, %v4486
        %v4488 = vrot.slane %v4480, %v4487
        %v4490 = vunpack.c.l.s4 1983009808
        %v4491 = vunpack.c.0.s8 %v4490
        %v4492 = vlaneseq
        %v4493 = vshrl.u32 %v4492, 7
        %v4494 = vsub.s32 %v4491, %v4493
        %v4495 = vrot.slane %v4481, %v4494
        %v4496 = vcombine.low %v4488, %v4495
        %v4498 = vunpack.c.l.s4 1983009808
        %v4499 = vunpack.c.0.s8 %v4498
        %v4500 = vlaneseq
        %v4501 = vshrl.u32 %v4500, 7
        %v4502 = vsub.s32 %v4499, %v4501
        %v4503 = vrot.slane %v4252, %v4502
        %v4504 = vcombine.low %v4273, %v4297
        %v4505 = vcombine.low %v4321, %v4345
        %v4507 = vunpack.c.l.s4 1983009808
        %v4508 = vunpack.c.0.s8 %v4507
        %v4509 = vlaneseq
        %v4510 = vshrl.u32 %v4509, 7
        %v4511 = vsub.s32 %v4508, %v4510
        %v4512 = vrot.slane %v4504, %v4511
        %v4514 = vunpack.c.l.s4 1983009808
        %v4515 = vunpack.c.0.s8 %v4514
        %v4516 = vlaneseq
        %v4517 = vshrl.u32 %v4516, 7
        %v4518 = vsub.s32 %v4515, %v4517
        %v4519 = vrot.slane %v4505, %v4518
        %v4520 = vcombine.low %v4512, %v4519
        %v4522 = vunpack.c.l.s4 1983009808
        %v4523 = vunpack.c.0.s8 %v4522
        %v4524 = vlaneseq
        %v4525 = vshrl.u32 %v4524, 7
        %v4526 = vsub.s32 %v4523, %v4525
        %v4527 = vrot.slane %v4253, %v4526
        %v4528 = vcombine.low %v4276, %v4300
        %v4529 = vcombine.low %v4324, %v4348
        %v4531 = vunpack.c.l.s4 1983009808
        %v4532 = vunpack.c.0.s8 %v4531
        %v4533 = vlaneseq
        %v4534 = vshrl.u32 %v4533, 7
        %v4535 = vsub.s32 %v4532, %v4534
        %v4536 = vrot.slane %v4528, %v4535
        %v4538 = vunpack.c.l.s4 1983009808
        %v4539 = vunpack.c.0.s8 %v4538
        %v4540 = vlaneseq
        %v4541 = vshrl.u32 %v4540, 7
        %v4542 = vsub.s32 %v4539, %v4541
        %v4543 = vrot.slane %v4529, %v4542
        %v4544 = vcombine.low %v4536, %v4543
        %v4546 = vunpack.c.l.s4 1983009808
        %v4547 = vunpack.c.0.s8 %v4546
        %v4548 = vlaneseq
        %v4549 = vshrl.u32 %v4548, 7
        %v4550 = vsub.s32 %v4547, %v4549
        %v4551 = vrot.slane %v4254, %v4550
        %v4552 = vcombine.low %v4279, %v4303
        %v4553 = vcombine.low %v4327, %v4351
        %v4555 = vunpack.c.l.s4 1983009808
        %v4556 = vunpack.c.0.s8 %v4555
        %v4557 = vlaneseq
        %v4558 = vshrl.u32 %v4557, 7
        %v4559 = vsub.s32 %v4556, %v4558
        %v4560 = vrot.slane %v4552, %v4559
        %v4562 = vunpack.c.l.s4 1983009808
        %v4563 = vunpack.c.0.s8 %v4562
        %v4564 = vlaneseq
        %v4565 = vshrl.u32 %v4564, 7
        %v4566 = vsub.s32 %v4563, %v4565
        %v4567 = vrot.slane %v4553, %v4566
        %v4568 = vcombine.low %v4560, %v4567
        %v4570 = vunpack.c.l.s4 1983009808
        %v4571 = vunpack.c.0.s8 %v4570
        %v4572 = vlaneseq
        %v4573 = vshrl.u32 %v4572, 7
        %v4574 = vsub.s32 %v4571, %v4573
        %v4575 = vrot.slane %v4255, %v4574
        %v4576 = vld [vmem:[%s5] sm:$0xf]
        %v4577 = vld [vmem:[%s5 + $0x4] sm:$0xf]
        %v4578 = vld [vmem:[%s5 + $0x8] sm:$0xf]
        %v4579 = vld [vmem:[%s5 + $0xc] sm:$0xf]
        %v4580 = vld [vmem:[%s5 + $0x10] sm:$0xf]
        %v4581 = vld [vmem:[%s5 + $0x14] sm:$0xf]
        %v4582 = vld [vmem:[%s5 + $0x18] sm:$0xf]
        %v4583 = vld [vmem:[%s5 + $0x1c] sm:$0xf]
        %v4584 = vld [vmem:[%s5 + $0x20] sm:$0xf]
        %v4585 = vld [vmem:[%s5 + $0x24] sm:$0xf]
        %v4586 = vld [vmem:[%s5 + $0x28] sm:$0xf]
        %v4587 = vld [vmem:[%s5 + $0x2c] sm:$0xf]
        %v4588 = vld [vmem:[%s5 + $0x30] sm:$0xf]
        %v4589 = vld [vmem:[%s5 + $0x34] sm:$0xf]
        %v4590 = vld [vmem:[%s5 + $0x38] sm:$0xf]
        %v4591 = vld [vmem:[%s5 + $0x3c] sm:$0xf]
        %v4592 = vld [vmem:[%s5 + $0x40] sm:$0xf]
        %v4593 = vld [vmem:[%s5 + $0x44] sm:$0xf]
        %v4594 = vld [vmem:[%s5 + $0x48] sm:$0xf]
        %v4595 = vld [vmem:[%s5 + $0x4c] sm:$0xf]
        %v4596 = vld [vmem:[%s5 + $0x50] sm:$0xf]
        %v4597 = vld [vmem:[%s5 + $0x54] sm:$0xf]
        %v4598 = vld [vmem:[%s5 + $0x58] sm:$0xf]
        %v4599 = vld [vmem:[%s5 + $0x5c] sm:$0xf]
        %v4600 = vld [vmem:[%s5 + $0x60] sm:$0xf]
        %v4601 = vld [vmem:[%s5 + $0x64] sm:$0xf]
        %v4602 = vld [vmem:[%s5 + $0x68] sm:$0xf]
        %v4603 = vld [vmem:[%s5 + $0x6c] sm:$0xf]
        %v4604 = vld [vmem:[%s5 + $0x70] sm:$0xf]
        %v4605 = vld [vmem:[%s5 + $0x74] sm:$0xf]
        %v4606 = vld [vmem:[%s5 + $0x78] sm:$0xf]
        %v4607 = vld [vmem:[%s5 + $0x7c] sm:$0xf]
        %v4608 = vld [vmem:[%s5 + $0x80] sm:$0xf]
        %v4609 = vld [vmem:[%s5 + $0x84] sm:$0xf]
        %v4610 = vld [vmem:[%s5 + $0x88] sm:$0xf]
        %v4611 = vld [vmem:[%s5 + $0x8c] sm:$0xf]
        %v4612 = vld [vmem:[%s5 + $0x90] sm:$0xf]
        %v4613 = vld [vmem:[%s5 + $0x94] sm:$0xf]
        %v4614 = vld [vmem:[%s5 + $0x98] sm:$0xf]
        %v4615 = vld [vmem:[%s5 + $0x9c] sm:$0xf]
        %v4616 = vld [vmem:[%s5 + $0xa0] sm:$0xf]
        %v4617 = vld [vmem:[%s5 + $0xa4] sm:$0xf]
        %v4618 = vld [vmem:[%s5 + $0xa8] sm:$0xf]
        %v4619 = vld [vmem:[%s5 + $0xac] sm:$0xf]
        %v4620 = vld [vmem:[%s5 + $0xb0] sm:$0xf]
        %v4621 = vld [vmem:[%s5 + $0xb4] sm:$0xf]
        %v4622 = vld [vmem:[%s5 + $0xb8] sm:$0xf]
        %v4623 = vld [vmem:[%s5 + $0xbc] sm:$0xf]
        %v4624 = vld [vmem:[%s5 + $0xc0] sm:$0xf]
        %v4625 = vld [vmem:[%s5 + $0xc4] sm:$0xf]
        %v4626 = vld [vmem:[%s5 + $0xc8] sm:$0xf]
        %v4627 = vld [vmem:[%s5 + $0xcc] sm:$0xf]
        %v4628 = vld [vmem:[%s5 + $0xd0] sm:$0xf]
        %v4629 = vld [vmem:[%s5 + $0xd4] sm:$0xf]
        %v4630 = vld [vmem:[%s5 + $0xd8] sm:$0xf]
        %v4631 = vld [vmem:[%s5 + $0xdc] sm:$0xf]
        %v4632 = vld [vmem:[%s5 + $0xe0] sm:$0xf]
        %v4633 = vld [vmem:[%s5 + $0xe4] sm:$0xf]
        %v4634 = vld [vmem:[%s5 + $0xe8] sm:$0xf]
        %v4635 = vld [vmem:[%s5 + $0xec] sm:$0xf]
        %v4636 = vld [vmem:[%s5 + $0xf0] sm:$0xf]
        %v4637 = vld [vmem:[%s5 + $0xf4] sm:$0xf]
        %v4638 = vld [vmem:[%s5 + $0xf8] sm:$0xf]
        %v4639 = vld [vmem:[%s5 + $0xfc] sm:$0xf]
        %v4640 = vld [vmem:[%s5 + $0x100] sm:$0xf]
        %v4641 = vld [vmem:[%s5 + $0x104] sm:$0xf]
        %v4642 = vld [vmem:[%s5 + $0x108] sm:$0xf]
        %v4643 = vld [vmem:[%s5 + $0x10c] sm:$0xf]
        %v4644 = vld [vmem:[%s5 + $0x110] sm:$0xf]
        %v4645 = vld [vmem:[%s5 + $0x114] sm:$0xf]
        %v4646 = vld [vmem:[%s5 + $0x118] sm:$0xf]
        %v4647 = vld [vmem:[%s5 + $0x11c] sm:$0xf]
        %v4648 = vld [vmem:[%s6] sm:$0x1]
        %v4650 = vlaneseq
        %v4651 = vshrl.u32 %v4650, 7
        %v4652 = vsub.s32 0, %v4651
        %v4653 = vrot.slane %v4648, %v4652
        %v4655 = vcombine.low %v4400, %v4424
        %v4656 = vcombine.high %v4400, %v4424
        %v4657 = vcombine.low %v4448, %v4472
        %v4658 = vcombine.high %v4448, %v4472
        %v4660 = vunpack.c.l.s4 1983009808
        %v4661 = vunpack.c.0.s8 %v4660
        %v4662 = vlaneseq
        %v4663 = vshrl.u32 %v4662, 7
        %v4664 = vsub.s32 %v4661, %v4663
        %v4665 = vrot.slane %v4655, %v4664
        %v4667 = vunpack.c.l.s4 1983009808
        %v4668 = vunpack.c.0.s8 %v4667
        %v4669 = vlaneseq
        %v4670 = vshrl.u32 %v4669, 7
        %v4671 = vsub.s32 %v4668, %v4670
        %v4672 = vrot.slane %v4656, %v4671
        %v4674 = vunpack.c.l.s4 1983009808
        %v4675 = vunpack.c.0.s8 %v4674
        %v4676 = vlaneseq
        %v4677 = vshrl.u32 %v4676, 7
        %v4678 = vsub.s32 %v4675, %v4677
        %v4679 = vrot.slane %v4657, %v4678
        %v4681 = vunpack.c.l.s4 1983009808
        %v4682 = vunpack.c.0.s8 %v4681
        %v4683 = vlaneseq
        %v4684 = vshrl.u32 %v4683, 7
        %v4685 = vsub.s32 %v4682, %v4684
        %v4686 = vrot.slane %v4658, %v4685
        %v4687 = vcombine.low %v4665, %v4679
        %v4688 = vcombine.high %v4665, %v4679
        %v4689 = vcombine.low %v4672, %v4686
        %v4690 = vcombine.high %v4672, %v4686
        %v4691 = vcombine.low %v4407, %v4431
        %v4692 = vcombine.low %v4455, %v4479
        %v4694 = vunpack.c.l.s4 1983009808
        %v4695 = vunpack.c.0.s8 %v4694
        %v4696 = vlaneseq
        %v4697 = vshrl.u32 %v4696, 7
        %v4698 = vsub.s32 %v4695, %v4697
        %v4699 = vrot.slane %v4691, %v4698
        %v4701 = vunpack.c.l.s4 1983009808
        %v4702 = vunpack.c.0.s8 %v4701
        %v4703 = vlaneseq
        %v4704 = vshrl.u32 %v4703, 7
        %v4705 = vsub.s32 %v4702, %v4704
        %v4706 = vrot.slane %v4692, %v4705
        %v4707 = vcombine.low %v4699, %v4706
        %v4708 = vcombine.low %v4496, %v4520
        %v4709 = vcombine.high %v4496, %v4520
        %v4710 = vcombine.low %v4544, %v4568
        %v4711 = vcombine.high %v4544, %v4568
        %v4713 = vunpack.c.l.s4 1983009808
        %v4714 = vunpack.c.0.s8 %v4713
        %v4715 = vlaneseq
        %v4716 = vshrl.u32 %v4715, 7
        %v4717 = vsub.s32 %v4714, %v4716
        %v4718 = vrot.slane %v4708, %v4717
        %v4720 = vunpack.c.l.s4 1983009808
        %v4721 = vunpack.c.0.s8 %v4720
        %v4722 = vlaneseq
        %v4723 = vshrl.u32 %v4722, 7
        %v4724 = vsub.s32 %v4721, %v4723
        %v4725 = vrot.slane %v4709, %v4724
        %v4727 = vunpack.c.l.s4 1983009808
        %v4728 = vunpack.c.0.s8 %v4727
        %v4729 = vlaneseq
        %v4730 = vshrl.u32 %v4729, 7
        %v4731 = vsub.s32 %v4728, %v4730
        %v4732 = vrot.slane %v4710, %v4731
        %v4734 = vunpack.c.l.s4 1983009808
        %v4735 = vunpack.c.0.s8 %v4734
        %v4736 = vlaneseq
        %v4737 = vshrl.u32 %v4736, 7
        %v4738 = vsub.s32 %v4735, %v4737
        %v4739 = vrot.slane %v4711, %v4738
        %v4740 = vcombine.low %v4718, %v4732
        %v4741 = vcombine.high %v4718, %v4732
        %v4742 = vcombine.low %v4725, %v4739
        %v4743 = vcombine.high %v4725, %v4739
        %v4744 = vcombine.low %v4503, %v4527
        %v4745 = vcombine.low %v4551, %v4575
        %v4747 = vunpack.c.l.s4 1983009808
        %v4748 = vunpack.c.0.s8 %v4747
        %v4749 = vlaneseq
        %v4750 = vshrl.u32 %v4749, 7
        %v4751 = vsub.s32 %v4748, %v4750
        %v4752 = vrot.slane %v4744, %v4751
        %v4754 = vunpack.c.l.s4 1983009808
        %v4755 = vunpack.c.0.s8 %v4754
        %v4756 = vlaneseq
        %v4757 = vshrl.u32 %v4756, 7
        %v4758 = vsub.s32 %v4755, %v4757
        %v4759 = vrot.slane %v4745, %v4758
        %v4760 = vcombine.low %v4752, %v4759
        %v4841 = vunpack.c.l.b16 %v4576
        %v4842 = vunpack.c.l.b16 %v4577
        %v4843 = vunpack.c.l.b16 %v4578
        %v4844 = vunpack.c.l.b16 %v4579
        %v4845 = vunpack.c.l.b16 %v4580
        %v4846 = vunpack.c.l.b16 %v4581
        %v4847 = vunpack.c.l.b16 %v4582
        %v4848 = vunpack.c.l.b16 %v4583
        %v4849 = vunpack.c.l.b16 %v4584
        %v4850 = vunpack.c.l.b16 %v4585
        %v4851 = vunpack.c.l.b16 %v4586
        %v4852 = vunpack.c.l.b16 %v4587
        %v4853 = vunpack.c.l.b16 %v4588
        %v4854 = vunpack.c.l.b16 %v4589
        %v4855 = vunpack.c.l.b16 %v4590
        %v4856 = vunpack.c.l.b16 %v4591
        %v4857 = vunpack.c.l.b16 %v4592
        %v4858 = vunpack.c.l.b16 %v4593
        %v4859 = vunpack.c.l.b16 %v4594
        %v4860 = vunpack.c.l.b16 %v4595
        %v4861 = vunpack.c.l.b16 %v4596
        %v4862 = vunpack.c.l.b16 %v4597
        %v4863 = vunpack.c.l.b16 %v4598
        %v4864 = vunpack.c.l.b16 %v4599
        %v4865 = vunpack.c.l.b16 %v4600
        %v4866 = vunpack.c.l.b16 %v4601
        %v4867 = vunpack.c.l.b16 %v4602
        %v4868 = vunpack.c.l.b16 %v4603
        %v4869 = vunpack.c.l.b16 %v4604
        %v4870 = vunpack.c.l.b16 %v4605
        %v4871 = vunpack.c.l.b16 %v4606
        %v4872 = vunpack.c.l.b16 %v4607
        %v4873 = vunpack.c.l.b16 %v4608
        %v4874 = vunpack.c.l.b16 %v4609
        %v4875 = vunpack.c.l.b16 %v4610
        %v4876 = vunpack.c.l.b16 %v4611
        %v4877 = vunpack.c.l.b16 %v4612
        %v4878 = vunpack.c.l.b16 %v4613
        %v4879 = vunpack.c.l.b16 %v4614
        %v4880 = vunpack.c.l.b16 %v4615
        %v4881 = vunpack.c.l.b16 %v4616
        %v4882 = vunpack.c.l.b16 %v4617
        %v4883 = vunpack.c.l.b16 %v4618
        %v4884 = vunpack.c.l.b16 %v4619
        %v4885 = vunpack.c.l.b16 %v4620
        %v4886 = vunpack.c.l.b16 %v4621
        %v4887 = vunpack.c.l.b16 %v4622
        %v4888 = vunpack.c.l.b16 %v4623
        %v4889 = vunpack.c.l.b16 %v4624
        %v4890 = vunpack.c.l.b16 %v4625
        %v4891 = vunpack.c.l.b16 %v4626
        %v4892 = vunpack.c.l.b16 %v4627
        %v4893 = vunpack.c.l.b16 %v4628
        %v4894 = vunpack.c.l.b16 %v4629
        %v4895 = vunpack.c.l.b16 %v4630
        %v4896 = vunpack.c.l.b16 %v4631
        %v4897 = vunpack.c.l.b16 %v4632
        %v4898 = vunpack.c.l.b16 %v4633
        %v4899 = vunpack.c.l.b16 %v4634
        %v4900 = vunpack.c.l.b16 %v4635
        %v4901 = vunpack.c.l.b16 %v4636
        %v4902 = vunpack.c.l.b16 %v4637
        %v4903 = vunpack.c.l.b16 %v4638
        %v4904 = vunpack.c.l.b16 %v4639
        %v4905 = vunpack.c.l.b16 %v4640
        %v4906 = vunpack.c.l.b16 %v4641
        %v4907 = vunpack.c.l.b16 %v4642
        %v4908 = vunpack.c.l.b16 %v4643
        %v4909 = vunpack.c.l.b16 %v4644
        %v4910 = vunpack.c.l.b16 %v4645
        %v4911 = vunpack.c.l.b16 %v4646
        %v4912 = vunpack.c.l.b16 %v4647
        %v4913 = vpack.c.b16 %v4842, %v4841
        %v4914 = vpack.c.b16 %v4844, %v4843
        %v4915 = vpack.c.b16 %v4846, %v4845
        %v4916 = vpack.c.b16 %v4848, %v4847
        %v4917 = vpack.c.b16 %v4850, %v4849
        %v4918 = vpack.c.b16 %v4852, %v4851
        %v4919 = vpack.c.b16 %v4854, %v4853
        %v4920 = vpack.c.b16 %v4856, %v4855
        %v4921 = vpack.c.b16 %v4858, %v4857
        %v4922 = vpack.c.b16 %v4860, %v4859
        %v4923 = vpack.c.b16 %v4862, %v4861
        %v4924 = vpack.c.b16 %v4864, %v4863
        %v4925 = vpack.c.b16 %v4866, %v4865
        %v4926 = vpack.c.b16 %v4868, %v4867
        %v4927 = vpack.c.b16 %v4870, %v4869
        %v4928 = vpack.c.b16 %v4872, %v4871
        %v4929 = vpack.c.b16 %v4874, %v4873
        %v4930 = vpack.c.b16 %v4876, %v4875
        %v4931 = vpack.c.b16 %v4878, %v4877
        %v4932 = vpack.c.b16 %v4880, %v4879
        %v4933 = vpack.c.b16 %v4882, %v4881
        %v4934 = vpack.c.b16 %v4884, %v4883
        %v4935 = vpack.c.b16 %v4886, %v4885
        %v4936 = vpack.c.b16 %v4888, %v4887
        %v4937 = vpack.c.b16 %v4890, %v4889
        %v4938 = vpack.c.b16 %v4892, %v4891
        %v4939 = vpack.c.b16 %v4894, %v4893
        %v4940 = vpack.c.b16 %v4896, %v4895
        %v4941 = vpack.c.b16 %v4898, %v4897
        %v4942 = vpack.c.b16 %v4900, %v4899
        %v4943 = vpack.c.b16 %v4902, %v4901
        %v4944 = vpack.c.b16 %v4904, %v4903
        %v4945 = vpack.c.b16 %v4906, %v4905
        %v4946 = vpack.c.b16 %v4908, %v4907
        %v4947 = vpack.c.b16 %v4910, %v4909
        %v4948 = vpack.c.b16 %v4912, %v4911
        %v4986 = vsel %vm2836, %v4707, 0
        %v4989 = vsel %vm2836, %v4760, 0
        %4991 = vmatprep.subr.bf16.mxu0 0
        %4992 = vmatpush1.bf16.msra.mxu0 %v4913
        %4993 = vmatprep.subr.bf16.mxu0 0
        %4994 = vmatpush1.bf16.msra.mxu0 %v4914
        %4995 = vmatprep.subr.bf16.mxu0 0
        %4996 = vmatpush1.bf16.msra.mxu0 %v4915
        %4997 = vmatprep.subr.bf16.mxu0 0
        %4998 = vmatpush1.bf16.msra.mxu0 %v4916
        %4999 = vmatprep.subr.bf16.mxu0 0
        %5000 = vmatpush1.bf16.msra.mxu0 %v4917
        %5001 = vmatprep.subr.bf16.mxu0 0
        %5002 = vmatpush1.bf16.msra.mxu0 %v4918
        %5003 = vmatprep.subr.bf16.mxu0 0
        %5004 = vmatpush1.bf16.msra.mxu0 %v4919
        %5005 = vmatprep.subr.bf16.mxu0 0
        %5006 = vmatpush1.bf16.msra.mxu0 %v4920
        %5007 = vmatprep.subr.bf16.mxu0 0
        %5008 = vmatpush1.bf16.msra.mxu0 %v4921
        %5009 = vmatprep.subr.bf16.mxu0 0
        %5010 = vmatpush1.bf16.msra.mxu0 %v4922
        %5011 = vmatprep.subr.bf16.mxu0 0
        %5012 = vmatpush1.bf16.msra.mxu0 %v4923
        %5013 = vmatprep.subr.bf16.mxu0 0
        %5014 = vmatpush1.bf16.msra.mxu0 %v4924
        %5015 = vmatprep.subr.bf16.mxu0 0
        %5016 = vmatpush1.bf16.msra.mxu0 %v4925
        %5017 = vmatprep.subr.bf16.mxu0 0
        %5018 = vmatpush1.bf16.msra.mxu0 %v4926
        %5019 = vmatprep.subr.bf16.mxu0 0
        %5020 = vmatpush1.bf16.msra.mxu0 %v4927
        %5021 = vmatprep.subr.bf16.mxu0 0
        %5022 = vmatpush1.bf16.msra.mxu0 %v4928
        %5023 = vmatprep.mubr.bf16.mxu0 %v4688
        %5024 = vmatmul.mubr.bf16.gmra.mrb[0].mxu0 %v4687
        %v5025 = vpop.f32.mrb[0].mxu0
        %v5026 = vadd.f32 %v4653, %v5025
        %v5027 = vpop.f32.mrb[0].mxu0
        %v5028 = vpop.f32.mrb[0].mxu0
        %v5029 = vadd.f32 %v4653, %v5028
        %v5030 = vpop.f32.mrb[0].mxu0
        %5031 = vmatprep.mubr.bf16.mxu0 %v4741
        %5032 = vmatmul.mubr.bf16.gmra.mrb[0].mxu0 %v4740
        %v5033 = vpop.f32.mrb[0].mxu0
        %v5034 = vadd.f32 %v4653, %v5033
        %v5035 = vpop.f32.mrb[0].mxu0
        %v5036 = vpop.f32.mrb[0].mxu0
        %v5037 = vadd.f32 %v4653, %v5036
        %v5038 = vpop.f32.mrb[0].mxu0
        %5039 = vdwg.mxu0
        %5040 = vmatprep.subr.bf16.mxu0 0
        %5041 = vmatpush1.bf16.msra.mxu0 %v4929
        %5042 = vmatprep.subr.bf16.mxu0 0
        %5043 = vmatpush1.bf16.msra.mxu0 %v4930
        %5044 = vmatprep.subr.bf16.mxu0 0
        %5045 = vmatpush1.bf16.msra.mxu0 %v4931
        %5046 = vmatprep.subr.bf16.mxu0 0
        %5047 = vmatpush1.bf16.msra.mxu0 %v4932
        %5048 = vmatprep.subr.bf16.mxu0 0
        %5049 = vmatpush1.bf16.msra.mxu0 %v4933
        %5050 = vmatprep.subr.bf16.mxu0 0
        %5051 = vmatpush1.bf16.msra.mxu0 %v4934
        %5052 = vmatprep.subr.bf16.mxu0 0
        %5053 = vmatpush1.bf16.msra.mxu0 %v4935
        %5054 = vmatprep.subr.bf16.mxu0 0
        %5055 = vmatpush1.bf16.msra.mxu0 %v4936
        %5056 = vmatprep.subr.bf16.mxu0 0
        %5057 = vmatpush1.bf16.msra.mxu0 %v4937
        %5058 = vmatprep.subr.bf16.mxu0 0
        %5059 = vmatpush1.bf16.msra.mxu0 %v4938
        %5060 = vmatprep.subr.bf16.mxu0 0
        %5061 = vmatpush1.bf16.msra.mxu0 %v4939
        %5062 = vmatprep.subr.bf16.mxu0 0
        %5063 = vmatpush1.bf16.msra.mxu0 %v4940
        %5064 = vmatprep.subr.bf16.mxu0 0
        %5065 = vmatpush1.bf16.msra.mxu0 %v4941
        %5066 = vmatprep.subr.bf16.mxu0 0
        %5067 = vmatpush1.bf16.msra.mxu0 %v4942
        %5068 = vmatprep.subr.bf16.mxu0 0
        %5069 = vmatpush1.bf16.msra.mxu0 %v4943
        %5070 = vmatprep.subr.bf16.mxu0 0
        %5071 = vmatpush1.bf16.msra.mxu0 %v4944
        %5072 = vmatprep.mubr.bf16.mxu0 %v4690
        %5073 = vmatmul.mubr.bf16.gmra.mrb[0].mxu0 %v4689
        %v5074 = vpop.f32.mrb[0].mxu0
        %v5075 = vadd.f32 %v5026, %v5074
        %v5076 = vpop.f32.mrb[0].mxu0
        %v5077 = vpop.f32.mrb[0].mxu0
        %v5078 = vadd.f32 %v5029, %v5077
        %v5079 = vpop.f32.mrb[0].mxu0
        %5080 = vmatprep.mubr.bf16.mxu0 %v4743
        %5081 = vmatmul.mubr.bf16.gmra.mrb[0].mxu0 %v4742
        %v5082 = vpop.f32.mrb[0].mxu0
        %v5083 = vadd.f32 %v5034, %v5082
        %v5084 = vpop.f32.mrb[0].mxu0
        %v5085 = vpop.f32.mrb[0].mxu0
        %v5086 = vadd.f32 %v5037, %v5085
        %v5087 = vpop.f32.mrb[0].mxu0
        %5088 = vdwg.mxu0
        %5089 = vmatprep.subr.bf16.mxu0 0
        %5090 = vmatpush1.bf16.msra.mxu0 %v4945
        %5091 = vmatprep.subr.bf16.mxu0 0
        %5092 = vmatpush1.bf16.msra.mxu0 %v4946
        %5093 = vmatprep.subr.bf16.mxu0 0
        %5094 = vmatpush1.bf16.msra.mxu0 %v4947
        %5095 = vmatprep.subr.bf16.mxu0 0
        %5096 = vmatpush1.bf16.msra.mxu0 %v4948
        %5097 = vmatprep.subr.bf16.mxu0 0
        %5098 = vmatpush1.bf16.msra.mxu0 0
        %5099 = vmatprep.subr.bf16.mxu0 0
        %5100 = vmatpush1.bf16.msra.mxu0 0
        %5101 = vmatprep.subr.bf16.mxu0 0
        %5102 = vmatpush1.bf16.msra.mxu0 0
        %5103 = vmatprep.subr.bf16.mxu0 0
        %5104 = vmatpush1.bf16.msra.mxu0 0
        %5105 = vmatprep.subr.bf16.mxu0 0
        %5106 = vmatpush1.bf16.msra.mxu0 0
        %5107 = vmatprep.subr.bf16.mxu0 0
        %5108 = vmatpush1.bf16.msra.mxu0 0
        %5109 = vmatprep.subr.bf16.mxu0 0
        %5110 = vmatpush1.bf16.msra.mxu0 0
        %5111 = vmatprep.subr.bf16.mxu0 0
        %5112 = vmatpush1.bf16.msra.mxu0 0
        %5113 = vmatprep.subr.bf16.mxu0 0
        %5114 = vmatpush1.bf16.msra.mxu0 0
        %5115 = vmatprep.subr.bf16.mxu0 0
        %5116 = vmatpush1.bf16.msra.mxu0 0
        %5117 = vmatprep.subr.bf16.mxu0 0
        %5118 = vmatpush1.bf16.msra.mxu0 0
        %5119 = vmatprep.subr.bf16.mxu0 0
        %5120 = vmatpush1.bf16.msra.mxu0 0
        %5121 = vmatprep.mubr.bf16.mxu0 0
        %5122 = vmatmul.mubr.bf16.gmra.mrb[0].mxu0 %v4986
        %v5123 = vpop.f32.mrb[0].mxu0
        %v5124 = vadd.f32 %v5075, %v5123
        %v5125 = vpop.f32.mrb[0].mxu0
        %v5126 = vpop.f32.mrb[0].mxu0
        %v5127 = vadd.f32 %v5078, %v5126
        %v5128 = vpop.f32.mrb[0].mxu0
        %5129 = vmatprep.mubr.bf16.mxu0 0
        %5130 = vmatmul.mubr.bf16.gmra.mrb[0].mxu0 %v4989
        %v5131 = vpop.f32.mrb[0].mxu0
        %v5132 = vadd.f32 %v5083, %v5131
        %v5133 = vpop.f32.mrb[0].mxu0
        %v5134 = vpop.f32.mrb[0].mxu0
        %v5135 = vadd.f32 %v5086, %v5134
        %v5136 = vpop.f32.mrb[0].mxu0
        %5137 = vdwg.mxu0
        %v5138 = vmax.f32 %v5124, 0.0
        %v5139 = vmax.f32 %v5127, 0.0
        %v5140 = vmax.f32 %v5132, 0.0
        %v5141 = vmax.f32 %v5135, 0.0
        %v5142 = vmax.f32 %v5138, %v5139
        %v5143 = vrot.slane %v5142, 4
        %v5144 = vmax.f32 %v5142, %v5143
        %v5145 = vrot.slane %v5144, 2
        %v5146 = vmax.f32 %v5144, %v5145
        %v5147 = vrot.slane %v5146, 1
        %v5148 = vmax.f32 %v5146, %v5147
        %v5149 = vmax.f32 %v5140, %v5141
        %v5150 = vrot.slane %v5149, 4
        %v5151 = vmax.f32 %v5149, %v5150
        %v5152 = vrot.slane %v5151, 2
        %v5153 = vmax.f32 %v5151, %v5152
        %v5154 = vrot.slane %v5153, 1
        %v5155 = vmax.f32 %v5153, %v5154
        %v5156 = vpack.c.bf16 %v5148, %v5148
        %v5157 = vpack.c.bf16 %v5155, %v5155
        %v5158 = vld [vmem:[%s7] sm:$0xf]
        %v5159 = vld [vmem:[%s7 + $0x4] sm:$0xf]
        %v5160 = vld [vmem:[%s7 + $0x8] sm:$0xf]
        %v5161 = vld [vmem:[%s7 + $0xc] sm:$0xf]
        %v5162 = vld [vmem:[%s7 + $0x10] sm:$0xf]
        %v5163 = vld [vmem:[%s7 + $0x14] sm:$0xf]
        %v5164 = vld [vmem:[%s7 + $0x18] sm:$0xf]
        %v5165 = vld [vmem:[%s7 + $0x1c] sm:$0xf]
        %v5166 = vld [vmem:[%s7 + $0x20] sm:$0xf]
        %v5167 = vld [vmem:[%s7 + $0x24] sm:$0xf]
        %v5168 = vld [vmem:[%s7 + $0x28] sm:$0xf]
        %v5169 = vld [vmem:[%s7 + $0x2c] sm:$0xf]
        %v5170 = vld [vmem:[%s7 + $0x30] sm:$0xf]
        %v5171 = vld [vmem:[%s7 + $0x34] sm:$0xf]
        %v5172 = vld [vmem:[%s7 + $0x38] sm:$0xf]
        %v5173 = vld [vmem:[%s7 + $0x3c] sm:$0xf]
        %v5174 = vld [vmem:[%s8] sm:$0x1]
        %v5176 = vlaneseq
        %v5177 = vshrl.u32 %v5176, 7
        %v5178 = vsub.s32 0, %v5177
        %v5179 = vrot.slane %v5174, %v5178
        %v5183 = vunpack.c.l.b16 %v5156
        %v5184 = vunpack.c.l.b16 %v5157
        %vm5185 = vcmask 1041409
        %v5186 = vsel %vm5185, %v5184, %v5183
        %v5187 = vpack.c.b16 %v5186, %v5186
        %v5205 = vunpack.c.l.b16 %v5158
        %v5206 = vunpack.c.l.b16 %v5159
        %v5207 = vunpack.c.l.b16 %v5160
        %v5208 = vunpack.c.l.b16 %v5161
        %v5209 = vunpack.c.l.b16 %v5162
        %v5210 = vunpack.c.l.b16 %v5163
        %v5211 = vunpack.c.l.b16 %v5164
        %v5212 = vunpack.c.l.b16 %v5165
        %v5213 = vunpack.c.l.b16 %v5166
        %v5214 = vunpack.c.l.b16 %v5167
        %v5215 = vunpack.c.l.b16 %v5168
        %v5216 = vunpack.c.l.b16 %v5169
        %v5217 = vunpack.c.l.b16 %v5170
        %v5218 = vunpack.c.l.b16 %v5171
        %v5219 = vunpack.c.l.b16 %v5172
        %v5220 = vunpack.c.l.b16 %v5173
        %v5221 = vpack.c.b16 %v5206, %v5205
        %v5222 = vpack.c.b16 %v5208, %v5207
        %v5223 = vpack.c.b16 %v5210, %v5209
        %v5224 = vpack.c.b16 %v5212, %v5211
        %v5225 = vpack.c.b16 %v5214, %v5213
        %v5226 = vpack.c.b16 %v5216, %v5215
        %v5227 = vpack.c.b16 %v5218, %v5217
        %v5228 = vpack.c.b16 %v5220, %v5219
        %5237 = vmatprep.subr.bf16.mxu0 0
        %5238 = vmatpush1.bf16.msra.mxu0 %v5221
        %5239 = vmatprep.subr.bf16.mxu0 0
        %5240 = vmatpush1.bf16.msra.mxu0 %v5222
        %5241 = vmatprep.subr.bf16.mxu0 0
        %5242 = vmatpush1.bf16.msra.mxu0 %v5223
        %5243 = vmatprep.subr.bf16.mxu0 0
        %5244 = vmatpush1.bf16.msra.mxu0 %v5224
        %5245 = vmatprep.subr.bf16.mxu0 0
        %5246 = vmatpush1.bf16.msra.mxu0 %v5225
        %5247 = vmatprep.subr.bf16.mxu0 0
        %5248 = vmatpush1.bf16.msra.mxu0 %v5226
        %5249 = vmatprep.subr.bf16.mxu0 0
        %5250 = vmatpush1.bf16.msra.mxu0 %v5227
        %5251 = vmatprep.subr.bf16.mxu0 0
        %5252 = vmatpush1.bf16.msra.mxu0 %v5228
        %5253 = vmatprep.subr.bf16.mxu0 0
        %5254 = vmatpush1.bf16.msra.mxu0 0
        %5255 = vmatprep.subr.bf16.mxu0 0
        %5256 = vmatpush1.bf16.msra.mxu0 0
        %5257 = vmatprep.subr.bf16.mxu0 0
        %5258 = vmatpush1.bf16.msra.mxu0 0
        %5259 = vmatprep.subr.bf16.mxu0 0
        %5260 = vmatpush1.bf16.msra.mxu0 0
        %5261 = vmatprep.subr.bf16.mxu0 0
        %5262 = vmatpush1.bf16.msra.mxu0 0
        %5263 = vmatprep.subr.bf16.mxu0 0
        %5264 = vmatpush1.bf16.msra.mxu0 0
        %5265 = vmatprep.subr.bf16.mxu0 0
        %5266 = vmatpush1.bf16.msra.mxu0 0
        %5267 = vmatprep.subr.bf16.mxu0 0
        %5268 = vmatpush1.bf16.msra.mxu0 0
        %5269 = vmatprep.mubr.bf16.mxu0 0
        %5270 = vmatmul.mubr.bf16.gmra.mrb[0].mxu0 %v5187
        %v5271 = vpop.f32.mrb[0].mxu0
        %v5272 = vadd.f32 %v5179, %v5271
        %v5273 = vpop.f32.mrb[0].mxu0
        %v5274 = vpop.f32.mrb[0].mxu0
        %v5275 = vpop.f32.mrb[0].mxu0
        %5276 = vdwg.mxu0
        %5277 = vst [vmem:[%s328] sm:$0x3] %v5272
        %s5278 = sand.u32 %s225, 1
        %s5279 = scalar_lea.sflag [#allocation7], %s5278
        %s5280 = sand.u32 %s225, 1
        %s5281 = smul.addr %s5280, 2
        %s5282 = scalar_lea.vmem [#allocation6], %s5281
        // Predicated region
        $region57: #{tpu_custom_call.1} parent=55 // pred_check
          %p5283 = pneg %p235
        $region58: #{tpu_custom_call.1} parent=55 // pred_check_branch
          %5285 = sbr.rel (%p5283) target = $region60
        $region59: #{tpu_custom_call.1} parent=55 // pred_region
          %s5287 = ssub.s32 32, 32
          %5288 = vsyncadd %s5279, %s5287
          %s5289 = smul.addr %s23, 32
          %s5290 = scalar_lea.hbm %s9, %s5289
          %s5292 = sshll.u32 %s5282, 4
          %s5293 = int_to_ptr.vmem [resolvable:$true] %s5292
          %5295 = dma.vmem_to_hbm [thread:$0]  %s5293, 32, %s5290, %s5279
        $region60: #{tpu_custom_call.1} parent=55 // pred_fallthru
          _
      $region56: #{tpu_custom_call.1} parent=5 // pred_fallthru
        _
      %p5296 = scmp.le.s32.totalorder 2, %s18
      // Predicated region
      $region61: #{tpu_custom_call.1} parent=5 // pred_check
        %p5297 = pneg %p5296
      $region62: #{tpu_custom_call.1} parent=5 // pred_check_branch
        %5299 = sbr.rel (%p5297) target = $region64
      $region63: #{tpu_custom_call.1} parent=5 // pred_region
        %s5300 = ssub.s32 %s18, 2
        // Predicated region
        $region65: #{tpu_custom_call.1} parent=63 // pred_check
          %p5301 = pneg %p241
        $region66: #{tpu_custom_call.1} parent=63 // pred_check_branch
          %5303 = sbr.rel (%p5301) target = $region68
        $region67: #{tpu_custom_call.1} parent=63 // pred_region
          %s5304 = sand.u32 %s226, 1
          %s5305 = scalar_lea.sflag [#allocation7], %s5304
          %s5306 = sand.u32 %s226, 1
          %s5307 = smul.addr %s5306, 2
          %s5308 = scalar_lea.vmem [#allocation6], %s5307
          %5309 = dma.done %s5305, 32
        $region68: #{tpu_custom_call.1} parent=63 // pred_fallthru
          _
      $region64: #{tpu_custom_call.1} parent=5 // pred_fallthru
        _
    $region6: #{tpu_custom_call.1} parent=1 // loop_footer
      %s22 = sadd.s32 1, %s18
    $region7: #{tpu_custom_call.1} parent=1 // loop_footer_branch
      %17 = sbr.rel target = $region3
    $region8: #{tpu_custom_call.1} parent=1 // loop_exit
      _
    %5310 = vsyncpa [#allocation7], 1
    %s5311 = scalar_lea.sflag [#allocation7], 1
    %5312 = vsyncpa %s5311, 1

</llo_original>
